<compile_context>
chip_gen: v6e
topology: v6e:2x2x1
jax: 0.10.0
libtpu: 0.0.40
codegen_flags: <defaults>
</compile_context>

<pallas_src>
import numpy as np

import jax
import jax.numpy as jnp
from jax.experimental import pallas as pl
from jax.experimental.pallas import tpu as pltpu


def _round_up(x, m):
    return ((x + m - 1) // m) * m


# ----------------------------------------------------------------------------
# Fused Pallas kernel: entire LeNet forward for ONE batch tile of BT samples.
# ----------------------------------------------------------------------------
def _lenet_fused_kernel(x_ref, tt_ref, b1_ref, u_ref, b2_ref,
                        w1_ref, fb1_ref, w2_ref, fb2_ref, w3_ref, fb3_ref,
                        o_ref):
    f32 = jnp.float32
    bf16 = jnp.bfloat16
    bt = o_ref.shape[0]                                   # batch tile (mult of 8)

    # ---- conv1 (1->6, 5x5) + ReLU + fused 2x2 max-pool ----------------------
    # x_ref[v0] is the K-concatenated Toeplitz LHS for candidate v0 = 2p+d:
    # x_ref[v0][a*bt + b, i*32 + col] = x[b, 4a+v0+i, col]        (bf16, lane-dense)
    # One dot per (v0, e) candidate: (7*bt, 160) x (160, 128) -> f32.
    P = []                                                # P[p]: (7*bt, 128) f32
    for p in range(2):
        cands = []
        for d in range(2):
            lhs = x_ref[2 * p + d]                        # (7*bt, 160) bf16
            for e in range(2):
                cands.append(jnp.dot(lhs, tt_ref[e],
                                     preferred_element_type=f32))
        m = jnp.maximum(jnp.maximum(cands[0], cands[1]),
                        jnp.maximum(cands[2], cands[3]))
        P.append(jnp.maximum(m + b1_ref[...], 0.0))       # relu(max) == max(relu)

    # ---- conv2 (6->16, 5x5) + ReLU + fused 2x2 max-pool ----------------------
    # K-concatenated LHS per candidate d: 5 sublane-tile-aligned row slices of
    # P[parity], concatenated along 128-wide lane tiles -> (5*bt, 640).
    cands2 = []
    for d in range(2):
        pieces = []
        for i in range(5):
            p_i = (d + i) % 2
            ao = (d + i) // 2                             # 0, 1 or 2 -> aligned rows
            pieces.append(P[p_i][ao * bt:(ao + 5) * bt, :])
        lhs2 = jnp.concatenate(pieces, axis=1).astype(bf16)   # (5*bt, 640)
        for e in range(2):
            cands2.append(jnp.dot(lhs2, u_ref[e],
                                  preferred_element_type=f32))
    m2 = jnp.maximum(jnp.maximum(cands2[0], cands2[1]),
                     jnp.maximum(cands2[2], cands2[3]))
    x2 = jnp.maximum(m2 + b2_ref[...], 0.0)               # (5*bt, 128) f32

    # ---- fc1 -> ReLU -> fc2 -> ReLU -> fc3 (batch is M; one dot each) --------
    x2c = jnp.concatenate([x2[ph * bt:(ph + 1) * bt, :] for ph in range(5)],
                          axis=1).astype(bf16)            # (bt, 640)
    h1 = jnp.maximum(jnp.dot(x2c, w1_ref[...], preferred_element_type=f32)
                     + fb1_ref[...], 0.0)                 # (bt, 128)
    h2 = jnp.maximum(jnp.dot(h1.astype(bf16), w2_ref[...],
                             preferred_element_type=f32) + fb2_ref[...], 0.0)
    out = jnp.dot(h2.astype(bf16), w3_ref[...],
                  preferred_element_type=f32) + fb3_ref[...]
    o_ref[...] = out                                      # lane-dense (bt, 128) store


# ----------------------------------------------------------------------------
# One-time weight transforms (done at init, NOT per forward). All matmul
# weights are K-concatenated, zero-padded to 128 lanes and stored in bf16.
# ----------------------------------------------------------------------------
def prepare_params(params):
    w1 = np.asarray(params["conv1_w"], np.float32)        # (6, 1, 5, 5)
    b1 = np.asarray(params["conv1_b"], np.float32)        # (6,)
    w2 = np.asarray(params["conv2_w"], np.float32)        # (16, 6, 5, 5)
    b2 = np.asarray(params["conv2_b"], np.float32)        # (16,)

    # conv1 Toeplitz, K-concatenated over the 5 kernel rows (K = 5*32 = 160),
    # N = 6*14 pooled columns, padded to 128 lanes.
    TTc = np.zeros((2, 160, 128), np.float32)
    for e in range(2):
        for i in range(5):
            for c1 in range(6):
                for pw in range(14):
                    for j in range(5):
                        TTc[e, i * 32 + 2 * pw + e + j, c1 * 14 + pw] = w1[c1, 0, i, j]
    b1p = np.zeros((1, 128), np.float32)
    b1p[0, :84] = np.repeat(b1, 14)

    # conv2, K-concatenated over the 5 kernel rows; each K block is one 128-lane
    # tile of pool1 (only the first 84 rows are live), N = 16*5 padded to 128.
    Uc = np.zeros((2, 640, 128), np.float32)
    for e in range(2):
        for i in range(5):
            for c2 in range(16):
                for c1 in range(6):
                    for pw in range(5):
                        for j in range(5):
                            Uc[e, i * 128 + c1 * 14 + 2 * pw + e + j, c2 * 5 + pw] = \
                                w2[c2, c1, i, j]
    b2p = np.zeros((1, 128), np.float32)
    b2p[0, :80] = np.repeat(b2, 5)

    # fc1: rows laid out as ph2*128 + (c2*5 + pw2) to consume the kernel's x2
    # layout directly; cols padded to 128.
    fc1_w = np.asarray(params["fc1_w"], np.float32)       # (120, 400)
    W1b = fc1_w.reshape(120, 16, 5, 5).transpose(2, 1, 3, 0).reshape(5, 80, 120)
    W1c = np.zeros((5, 128, 128), np.float32)
    W1c[:, :80, :120] = W1b
    W1c = W1c.reshape(640, 128)
    fb1 = np.zeros((1, 128), np.float32)
    fb1[0, :120] = np.asarray(params["fc1_b"], np.float32)

    W2c = np.zeros((128, 128), np.float32)
    W2c[:120, :84] = np.asarray(params["fc2_w"], np.float32).T
    fb2 = np.zeros((1, 128), np.float32)
    fb2[0, :84] = np.asarray(params["fc2_b"], np.float32)

    W3c = np.zeros((128, 128), np.float32)
    W3c[:84, :10] = np.asarray(params["fc3_w"], np.float32).T
    fb3 = np.zeros((1, 128), np.float32)
    fb3[0, :10] = np.asarray(params["fc3_b"], np.float32)

    bf16 = jnp.bfloat16
    return dict(
        TTc=jnp.asarray(TTc, bf16), b1p=jnp.asarray(b1p),
        Uc=jnp.asarray(Uc, bf16), b2p=jnp.asarray(b2p),
        W1c=jnp.asarray(W1c, bf16), fb1=jnp.asarray(fb1),
        W2c=jnp.asarray(W2c, bf16), fb2=jnp.asarray(fb2),
        W3c=jnp.asarray(W3c, bf16), fb3=jnp.asarray(fb3),
    )


# ----------------------------------------------------------------------------
# Forward pass: one fused pallas_call, grid over batch TILES ("parallel").
# ----------------------------------------------------------------------------
def net_forward(prepped, x, *, batch_tile=128):
    B = x.shape[0]
    assert x.shape[1:] == (1, 32, 32), x.shape
    bt = _round_up(min(batch_tile, _round_up(B, 8)), 8)   # sublane-tile aligned
    Bpad = _round_up(B, bt)
    G = Bpad // bt

    xr = x.reshape(B, 32, 32)
    if Bpad != B:
        xr = jnp.pad(xr, ((0, Bpad - B), (0, 0), (0, 0)))

    # Lane-dense, batch-stacked conv1 LHS (pure slices/stacks, fused by XLA):
    # L1[v0, g*7*bt + a*bt + b, i*32 + col] = x[g*bt + b, 4a + v0 + i, col]
    cand = []
    for v0 in range(4):
        blocks = [xr[:, v0 + i: v0 + i + 25: 4, :] for i in range(5)]  # (Bpad,7,32)
        cand.append(jnp.stack(blocks, axis=2))                          # (Bpad,7,5,32)
    L1 = jnp.stack(cand, axis=0)                                        # (4,Bpad,7,5,32)
    L1 = (L1.reshape(4, G, bt, 7, 5, 32)
            .transpose(0, 1, 3, 2, 4, 5)
            .reshape(4, G * 7 * bt, 160)
            .astype(jnp.bfloat16))

    weight_args = (prepped["TTc"], prepped["b1p"], prepped["Uc"], prepped["b2p"],
                   prepped["W1c"], prepped["fb1"], prepped["W2c"], prepped["fb2"],
                   prepped["W3c"], prepped["fb3"])

    flops = G * (2 * 8 * (7 * bt) * 160 * 128      # conv1: 8 dots
                 + 2 * 4 * (5 * bt) * 640 * 128    # conv2: 4 dots
                 + 2 * bt * 640 * 128              # fc1
                 + 2 * 2 * bt * 128 * 128)         # fc2 + fc3
    bytes_accessed = (int(L1.size) * 2
                      + sum(int(a.size) * a.dtype.itemsize for a in weight_args)
                      + Bpad * 128 * 4)

    out = pl.pallas_call(
        _lenet_fused_kernel,
        out_shape=jax.ShapeDtypeStruct((Bpad, 128), jnp.float32),
        grid=(G,),
        in_specs=[
            pl.BlockSpec((4, 7 * bt, 160), lambda g: (0, g, 0)),  # conv1 LHS (per tile)
            pl.BlockSpec((2, 160, 128), lambda g: (0, 0, 0)),     # TTc (resident)
            pl.BlockSpec((1, 128), lambda g: (0, 0)),             # conv1 bias
            pl.BlockSpec((2, 640, 128), lambda g: (0, 0, 0)),     # Uc (resident)
            pl.BlockSpec((1, 128), lambda g: (0, 0)),             # conv2 bias
            pl.BlockSpec((640, 128), lambda g: (0, 0)),           # fc1 W
            pl.BlockSpec((1, 128), lambda g: (0, 0)),             # fc1 bias
            pl.BlockSpec((128, 128), lambda g: (0, 0)),           # fc2 W
            pl.BlockSpec((1, 128), lambda g: (0, 0)),             # fc2 bias
            pl.BlockSpec((128, 128), lambda g: (0, 0)),           # fc3 W
            pl.BlockSpec((1, 128), lambda g: (0, 0)),             # fc3 bias
        ],
        out_specs=pl.BlockSpec((bt, 128), lambda g: (g, 0)),      # lane-dense store
        compiler_params=pltpu.CompilerParams(
            dimension_semantics=("parallel",),      # v7x: batch tiles split over 2 TCs
            vmem_limit_bytes=32 * 1024 * 1024),
        cost_estimate=pl.CostEstimate(flops=flops, transcendentals=0,
                                      bytes_accessed=bytes_accessed),
    )(L1, *weight_args)
    return out[:B, :10]


# ----------------------------------------------------------------------------
# Parameters (deterministic, shapes from Net.__init__)
# ----------------------------------------------------------------------------
def init_params(key):
    def uniform(key, shape, fan_in):
        bound = 1.0 / jnp.sqrt(jnp.float32(fan_in))
        return jax.random.uniform(key, shape, jnp.float32, -bound, bound)

    ks = jax.random.split(key, 10)
    return {
        "conv1_w": uniform(ks[0], (6, 1, 5, 5), 1 * 5 * 5),
        "conv1_b": uniform(ks[1], (6,), 1 * 5 * 5),
        "conv2_w": uniform(ks[2], (16, 6, 5, 5), 6 * 5 * 5),
        "conv2_b": uniform(ks[3], (16,), 6 * 5 * 5),
        "fc1_w": uniform(ks[4], (120, 400), 400),   # PyTorch Linear: (out, in)
        "fc1_b": uniform(ks[5], (120,), 400),
        "fc2_w": uniform(ks[6], (84, 120), 120),
        "fc2_b": uniform(ks[7], (84,), 120),
        "fc3_w": uniform(ks[8], (10, 84), 84),
        "fc3_b": uniform(ks[9], (10,), 84),
    }


# ----------------------------------------------------------------------------
# Pure-JAX f32 reference (correctness check only)
# ----------------------------------------------------------------------------
def net_forward_ref(params, x):
    def conv(x, w, b):
        y = jax.lax.conv_general_dilated(
            x, w, window_strides=(1, 1), padding="VALID",
            dimension_numbers=("NCHW", "OIHW", "NCHW"))
        return jnp.maximum(y + b[None, :, None, None], 0.0)

    def pool(x):
        B, C, H, W = x.shape
        return x.reshape(B, C, H // 2, 2, W // 2, 2).max(axis=(3, 5))

    x = pool(conv(x, params["conv1_w"], params["conv1_b"]))
    x = pool(conv(x, params["conv2_w"], params["conv2_b"]))
    x = x.reshape(x.shape[0], -1)
    x = jnp.maximum(x @ params["fc1_w"].T + params["fc1_b"], 0.0)
    x = jnp.maximum(x @ params["fc2_w"].T + params["fc2_b"], 0.0)
    x = x @ params["fc3_w"].T + params["fc3_b"]
    return x


if __name__ == "__main__":
    key = jax.random.PRNGKey(0)
    k_params, k_x = jax.random.split(key)
    params = init_params(k_params)
    prepped = prepare_params(params)                       # one-time weight transforms
    x = jax.random.normal(k_x, (2, 1, 32, 32), jnp.float32)  # NCHW LeNet input

    fwd = jax.jit(net_forward)
    out = jax.block_until_ready(fwd(prepped, x))
    ref = jax.block_until_ready(net_forward_ref(params, x))

    assert out.shape == (2, 10), out.shape
    # bf16 MXU operands with f32 accumulation -> loosened tolerance vs f32 ref.
    assert jnp.allclose(out, ref, rtol=5e-2, atol=5e-2), (
        f"max abs diff {jnp.max(jnp.abs(out - ref))}")
    print("KERNEL_OK")
</pallas_src>

<mosaic_0001>
module attributes {stable_mosaic.version = 11 : i64} {
  func.func @_lenet_fused_kernel(%arg0: i32, %arg1: memref<4x56x160xbf16, #tpu.memory_space<vmem>>, %arg2: memref<2x160x128xbf16, #tpu.memory_space<vmem>>, %arg3: memref<1x128xf32, #tpu.memory_space<vmem>>, %arg4: memref<2x640x128xbf16, #tpu.memory_space<vmem>>, %arg5: memref<1x128xf32, #tpu.memory_space<vmem>>, %arg6: memref<640x128xbf16, #tpu.memory_space<vmem>>, %arg7: memref<1x128xf32, #tpu.memory_space<vmem>>, %arg8: memref<128x128xbf16, #tpu.memory_space<vmem>>, %arg9: memref<1x128xf32, #tpu.memory_space<vmem>>, %arg10: memref<128x128xbf16, #tpu.memory_space<vmem>>, %arg11: memref<1x128xf32, #tpu.memory_space<vmem>>, %arg12: memref<8x128xf32, #tpu.memory_space<vmem>>) attributes {dimension_semantics = [#tpu.dimension_semantics<parallel>], iteration_bounds = array<i64: 1>, scalar_prefetch = 0 : i64, scratch_operands = 0 : i64, tpu.core_type = #tpu.core_type<tc>, window_params = [{transform_indices = @transform_0, window_bounds = array<i64: 4, 56, 160>}, {pipeline_mode = #tpu.pipeline_mode<synchronous>, transform_indices = @transform_1, window_bounds = array<i64: 2, 160, 128>}, {pipeline_mode = #tpu.pipeline_mode<synchronous>, transform_indices = @transform_2, window_bounds = array<i64: 1, 128>}, {pipeline_mode = #tpu.pipeline_mode<synchronous>, transform_indices = @transform_3, window_bounds = array<i64: 2, 640, 128>}, {pipeline_mode = #tpu.pipeline_mode<synchronous>, transform_indices = @transform_4, window_bounds = array<i64: 1, 128>}, {pipeline_mode = #tpu.pipeline_mode<synchronous>, transform_indices = @transform_5, window_bounds = array<i64: 640, 128>}, {pipeline_mode = #tpu.pipeline_mode<synchronous>, transform_indices = @transform_6, window_bounds = array<i64: 1, 128>}, {pipeline_mode = #tpu.pipeline_mode<synchronous>, transform_indices = @transform_7, window_bounds = array<i64: 128, 128>}, {pipeline_mode = #tpu.pipeline_mode<synchronous>, transform_indices = @transform_8, window_bounds = array<i64: 1, 128>}, {pipeline_mode = #tpu.pipeline_mode<synchronous>, transform_indices = @transform_9, window_bounds = array<i64: 128, 128>}, {pipeline_mode = #tpu.pipeline_mode<synchronous>, transform_indices = @transform_10, window_bounds = array<i64: 1, 128>}, {transform_indices = @transform_11, window_bounds = array<i64: 8, 128>}]} {
    %c0 = arith.constant 0 : index
    %c0_0 = arith.constant 0 : index
    %c0_1 = arith.constant 0 : index
    %0 = vector.load %arg1[%c0, %c0_0, %c0_1] : memref<4x56x160xbf16, #tpu.memory_space<vmem>>, vector<1x56x160xbf16>
    %1 = vector.shape_cast %0 : vector<1x56x160xbf16> to vector<56x160xbf16>
    %c0_2 = arith.constant 0 : index
    %c0_3 = arith.constant 0 : index
    %c0_4 = arith.constant 0 : index
    %2 = vector.load %arg2[%c0_2, %c0_3, %c0_4] : memref<2x160x128xbf16, #tpu.memory_space<vmem>>, vector<1x160x128xbf16>
    %3 = vector.shape_cast %2 : vector<1x160x128xbf16> to vector<160x128xbf16>
    %cst = arith.constant dense<0.000000e+00> : vector<56x128xf32>
    %4 = tpu.matmul %1, %3, %cst {dimension_numbers = #tpu.dot_dimension_numbers<[1], [0], [0], [1], [0, 0, 1, 1], [], []>} : vector<56x160xbf16>, vector<160x128xbf16>, vector<56x128xf32> -> vector<56x128xf32>
    %c1 = arith.constant 1 : index
    %c0_5 = arith.constant 0 : index
    %c0_6 = arith.constant 0 : index
    %5 = vector.load %arg2[%c1, %c0_5, %c0_6] : memref<2x160x128xbf16, #tpu.memory_space<vmem>>, vector<1x160x128xbf16>
    %6 = vector.shape_cast %5 : vector<1x160x128xbf16> to vector<160x128xbf16>
    %cst_7 = arith.constant dense<0.000000e+00> : vector<56x128xf32>
    %7 = tpu.matmul %1, %6, %cst_7 {dimension_numbers = #tpu.dot_dimension_numbers<[1], [0], [0], [1], [0, 0, 1, 1], [], []>} : vector<56x160xbf16>, vector<160x128xbf16>, vector<56x128xf32> -> vector<56x128xf32>
    %c1_8 = arith.constant 1 : index
    %c0_9 = arith.constant 0 : index
    %c0_10 = arith.constant 0 : index
    %8 = vector.load %arg1[%c1_8, %c0_9, %c0_10] : memref<4x56x160xbf16, #tpu.memory_space<vmem>>, vector<1x56x160xbf16>
    %9 = vector.shape_cast %8 : vector<1x56x160xbf16> to vector<56x160xbf16>
    %c0_11 = arith.constant 0 : index
    %c0_12 = arith.constant 0 : index
    %c0_13 = arith.constant 0 : index
    %10 = vector.load %arg2[%c0_11, %c0_12, %c0_13] : memref<2x160x128xbf16, #tpu.memory_space<vmem>>, vector<1x160x128xbf16>
    %11 = vector.shape_cast %10 : vector<1x160x128xbf16> to vector<160x128xbf16>
    %cst_14 = arith.constant dense<0.000000e+00> : vector<56x128xf32>
    %12 = tpu.matmul %9, %11, %cst_14 {dimension_numbers = #tpu.dot_dimension_numbers<[1], [0], [0], [1], [0, 0, 1, 1], [], []>} : vector<56x160xbf16>, vector<160x128xbf16>, vector<56x128xf32> -> vector<56x128xf32>
    %c1_15 = arith.constant 1 : index
    %c0_16 = arith.constant 0 : index
    %c0_17 = arith.constant 0 : index
    %13 = vector.load %arg2[%c1_15, %c0_16, %c0_17] : memref<2x160x128xbf16, #tpu.memory_space<vmem>>, vector<1x160x128xbf16>
    %14 = vector.shape_cast %13 : vector<1x160x128xbf16> to vector<160x128xbf16>
    %cst_18 = arith.constant dense<0.000000e+00> : vector<56x128xf32>
    %15 = tpu.matmul %9, %14, %cst_18 {dimension_numbers = #tpu.dot_dimension_numbers<[1], [0], [0], [1], [0, 0, 1, 1], [], []>} : vector<56x160xbf16>, vector<160x128xbf16>, vector<56x128xf32> -> vector<56x128xf32>
    %16 = arith.maximumf %4, %7 : vector<56x128xf32>
    %17 = arith.maximumf %12, %15 : vector<56x128xf32>
    %18 = arith.maximumf %16, %17 : vector<56x128xf32>
    %c0_19 = arith.constant 0 : index
    %c0_20 = arith.constant 0 : index
    %19 = vector.load %arg3[%c0_19, %c0_20] : memref<1x128xf32, #tpu.memory_space<vmem>>, vector<1x128xf32>
    %20 = vector.broadcast %19 : vector<1x128xf32> to vector<56x128xf32>
    %21 = arith.addf %18, %20 : vector<56x128xf32>
    %cst_21 = arith.constant 0.000000e+00 : f32
    %22 = vector.broadcast %cst_21 : f32 to vector<56x128xf32>
    %23 = arith.maximumf %21, %22 : vector<56x128xf32>
    %c2 = arith.constant 2 : index
    %c0_22 = arith.constant 0 : index
    %c0_23 = arith.constant 0 : index
    %24 = vector.load %arg1[%c2, %c0_22, %c0_23] : memref<4x56x160xbf16, #tpu.memory_space<vmem>>, vector<1x56x160xbf16>
    %25 = vector.shape_cast %24 : vector<1x56x160xbf16> to vector<56x160xbf16>
    %c0_24 = arith.constant 0 : index
    %c0_25 = arith.constant 0 : index
    %c0_26 = arith.constant 0 : index
    %26 = vector.load %arg2[%c0_24, %c0_25, %c0_26] : memref<2x160x128xbf16, #tpu.memory_space<vmem>>, vector<1x160x128xbf16>
    %27 = vector.shape_cast %26 : vector<1x160x128xbf16> to vector<160x128xbf16>
    %cst_27 = arith.constant dense<0.000000e+00> : vector<56x128xf32>
    %28 = tpu.matmul %25, %27, %cst_27 {dimension_numbers = #tpu.dot_dimension_numbers<[1], [0], [0], [1], [0, 0, 1, 1], [], []>} : vector<56x160xbf16>, vector<160x128xbf16>, vector<56x128xf32> -> vector<56x128xf32>
    %c1_28 = arith.constant 1 : index
    %c0_29 = arith.constant 0 : index
    %c0_30 = arith.constant 0 : index
    %29 = vector.load %arg2[%c1_28, %c0_29, %c0_30] : memref<2x160x128xbf16, #tpu.memory_space<vmem>>, vector<1x160x128xbf16>
    %30 = vector.shape_cast %29 : vector<1x160x128xbf16> to vector<160x128xbf16>
    %cst_31 = arith.constant dense<0.000000e+00> : vector<56x128xf32>
    %31 = tpu.matmul %25, %30, %cst_31 {dimension_numbers = #tpu.dot_dimension_numbers<[1], [0], [0], [1], [0, 0, 1, 1], [], []>} : vector<56x160xbf16>, vector<160x128xbf16>, vector<56x128xf32> -> vector<56x128xf32>
    %c3 = arith.constant 3 : index
    %c0_32 = arith.constant 0 : index
    %c0_33 = arith.constant 0 : index
    %32 = vector.load %arg1[%c3, %c0_32, %c0_33] : memref<4x56x160xbf16, #tpu.memory_space<vmem>>, vector<1x56x160xbf16>
    %33 = vector.shape_cast %32 : vector<1x56x160xbf16> to vector<56x160xbf16>
    %c0_34 = arith.constant 0 : index
    %c0_35 = arith.constant 0 : index
    %c0_36 = arith.constant 0 : index
    %34 = vector.load %arg2[%c0_34, %c0_35, %c0_36] : memref<2x160x128xbf16, #tpu.memory_space<vmem>>, vector<1x160x128xbf16>
    %35 = vector.shape_cast %34 : vector<1x160x128xbf16> to vector<160x128xbf16>
    %cst_37 = arith.constant dense<0.000000e+00> : vector<56x128xf32>
    %36 = tpu.matmul %33, %35, %cst_37 {dimension_numbers = #tpu.dot_dimension_numbers<[1], [0], [0], [1], [0, 0, 1, 1], [], []>} : vector<56x160xbf16>, vector<160x128xbf16>, vector<56x128xf32> -> vector<56x128xf32>
    %c1_38 = arith.constant 1 : index
    %c0_39 = arith.constant 0 : index
    %c0_40 = arith.constant 0 : index
    %37 = vector.load %arg2[%c1_38, %c0_39, %c0_40] : memref<2x160x128xbf16, #tpu.memory_space<vmem>>, vector<1x160x128xbf16>
    %38 = vector.shape_cast %37 : vector<1x160x128xbf16> to vector<160x128xbf16>
    %cst_41 = arith.constant dense<0.000000e+00> : vector<56x128xf32>
    %39 = tpu.matmul %33, %38, %cst_41 {dimension_numbers = #tpu.dot_dimension_numbers<[1], [0], [0], [1], [0, 0, 1, 1], [], []>} : vector<56x160xbf16>, vector<160x128xbf16>, vector<56x128xf32> -> vector<56x128xf32>
    %40 = arith.maximumf %28, %31 : vector<56x128xf32>
    %41 = arith.maximumf %36, %39 : vector<56x128xf32>
    %42 = arith.maximumf %40, %41 : vector<56x128xf32>
    %c0_42 = arith.constant 0 : index
    %c0_43 = arith.constant 0 : index
    %43 = vector.load %arg3[%c0_42, %c0_43] : memref<1x128xf32, #tpu.memory_space<vmem>>, vector<1x128xf32>
    %44 = vector.broadcast %43 : vector<1x128xf32> to vector<56x128xf32>
    %45 = arith.addf %42, %44 : vector<56x128xf32>
    %cst_44 = arith.constant 0.000000e+00 : f32
    %46 = vector.broadcast %cst_44 : f32 to vector<56x128xf32>
    %47 = arith.maximumf %45, %46 : vector<56x128xf32>
    %48 = vector.extract_strided_slice %23 {offsets = [0, 0], sizes = [40, 128], strides = [1, 1]} : vector<56x128xf32> to vector<40x128xf32>
    %49 = vector.extract_strided_slice %47 {offsets = [0, 0], sizes = [40, 128], strides = [1, 1]} : vector<56x128xf32> to vector<40x128xf32>
    %50 = vector.extract_strided_slice %23 {offsets = [8, 0], sizes = [40, 128], strides = [1, 1]} : vector<56x128xf32> to vector<40x128xf32>
    %51 = vector.extract_strided_slice %47 {offsets = [8, 0], sizes = [40, 128], strides = [1, 1]} : vector<56x128xf32> to vector<40x128xf32>
    %52 = vector.extract_strided_slice %23 {offsets = [16, 0], sizes = [40, 128], strides = [1, 1]} : vector<56x128xf32> to vector<40x128xf32>
    %53 = tpu.concatenate %48, %49, %50, %51, %52 in 1 : vector<40x128xf32>, vector<40x128xf32>, vector<40x128xf32>, vector<40x128xf32>, vector<40x128xf32> -> vector<40x640xf32>
    %54 = arith.truncf %53 : vector<40x640xf32> to vector<40x640xbf16>
    %c0_45 = arith.constant 0 : index
    %c0_46 = arith.constant 0 : index
    %c0_47 = arith.constant 0 : index
    %55 = vector.load %arg4[%c0_45, %c0_46, %c0_47] : memref<2x640x128xbf16, #tpu.memory_space<vmem>>, vector<1x640x128xbf16>
    %56 = vector.shape_cast %55 : vector<1x640x128xbf16> to vector<640x128xbf16>
    %cst_48 = arith.constant dense<0.000000e+00> : vector<40x128xf32>
    %57 = tpu.matmul %54, %56, %cst_48 {dimension_numbers = #tpu.dot_dimension_numbers<[1], [0], [0], [1], [0, 0, 1, 1], [], []>} : vector<40x640xbf16>, vector<640x128xbf16>, vector<40x128xf32> -> vector<40x128xf32>
    %c1_49 = arith.constant 1 : index
    %c0_50 = arith.constant 0 : index
    %c0_51 = arith.constant 0 : index
    %58 = vector.load %arg4[%c1_49, %c0_50, %c0_51] : memref<2x640x128xbf16, #tpu.memory_space<vmem>>, vector<1x640x128xbf16>
    %59 = vector.shape_cast %58 : vector<1x640x128xbf16> to vector<640x128xbf16>
    %cst_52 = arith.constant dense<0.000000e+00> : vector<40x128xf32>
    %60 = tpu.matmul %54, %59, %cst_52 {dimension_numbers = #tpu.dot_dimension_numbers<[1], [0], [0], [1], [0, 0, 1, 1], [], []>} : vector<40x640xbf16>, vector<640x128xbf16>, vector<40x128xf32> -> vector<40x128xf32>
    %61 = vector.extract_strided_slice %47 {offsets = [0, 0], sizes = [40, 128], strides = [1, 1]} : vector<56x128xf32> to vector<40x128xf32>
    %62 = vector.extract_strided_slice %23 {offsets = [8, 0], sizes = [40, 128], strides = [1, 1]} : vector<56x128xf32> to vector<40x128xf32>
    %63 = vector.extract_strided_slice %47 {offsets = [8, 0], sizes = [40, 128], strides = [1, 1]} : vector<56x128xf32> to vector<40x128xf32>
    %64 = vector.extract_strided_slice %23 {offsets = [16, 0], sizes = [40, 128], strides = [1, 1]} : vector<56x128xf32> to vector<40x128xf32>
    %65 = vector.extract_strided_slice %47 {offsets = [16, 0], sizes = [40, 128], strides = [1, 1]} : vector<56x128xf32> to vector<40x128xf32>
    %66 = tpu.concatenate %61, %62, %63, %64, %65 in 1 : vector<40x128xf32>, vector<40x128xf32>, vector<40x128xf32>, vector<40x128xf32>, vector<40x128xf32> -> vector<40x640xf32>
    %67 = arith.truncf %66 : vector<40x640xf32> to vector<40x640xbf16>
    %c0_53 = arith.constant 0 : index
    %c0_54 = arith.constant 0 : index
    %c0_55 = arith.constant 0 : index
    %68 = vector.load %arg4[%c0_53, %c0_54, %c0_55] : memref<2x640x128xbf16, #tpu.memory_space<vmem>>, vector<1x640x128xbf16>
    %69 = vector.shape_cast %68 : vector<1x640x128xbf16> to vector<640x128xbf16>
    %cst_56 = arith.constant dense<0.000000e+00> : vector<40x128xf32>
    %70 = tpu.matmul %67, %69, %cst_56 {dimension_numbers = #tpu.dot_dimension_numbers<[1], [0], [0], [1], [0, 0, 1, 1], [], []>} : vector<40x640xbf16>, vector<640x128xbf16>, vector<40x128xf32> -> vector<40x128xf32>
    %c1_57 = arith.constant 1 : index
    %c0_58 = arith.constant 0 : index
    %c0_59 = arith.constant 0 : index
    %71 = vector.load %arg4[%c1_57, %c0_58, %c0_59] : memref<2x640x128xbf16, #tpu.memory_space<vmem>>, vector<1x640x128xbf16>
    %72 = vector.shape_cast %71 : vector<1x640x128xbf16> to vector<640x128xbf16>
    %cst_60 = arith.constant dense<0.000000e+00> : vector<40x128xf32>
    %73 = tpu.matmul %67, %72, %cst_60 {dimension_numbers = #tpu.dot_dimension_numbers<[1], [0], [0], [1], [0, 0, 1, 1], [], []>} : vector<40x640xbf16>, vector<640x128xbf16>, vector<40x128xf32> -> vector<40x128xf32>
    %74 = arith.maximumf %57, %60 : vector<40x128xf32>
    %75 = arith.maximumf %70, %73 : vector<40x128xf32>
    %76 = arith.maximumf %74, %75 : vector<40x128xf32>
    %c0_61 = arith.constant 0 : index
    %c0_62 = arith.constant 0 : index
    %77 = vector.load %arg5[%c0_61, %c0_62] : memref<1x128xf32, #tpu.memory_space<vmem>>, vector<1x128xf32>
    %78 = vector.broadcast %77 : vector<1x128xf32> to vector<40x128xf32>
    %79 = arith.addf %76, %78 : vector<40x128xf32>
    %cst_63 = arith.constant 0.000000e+00 : f32
    %80 = vector.broadcast %cst_63 : f32 to vector<40x128xf32>
    %81 = arith.maximumf %79, %80 : vector<40x128xf32>
    %82 = vector.extract_strided_slice %81 {offsets = [0, 0], sizes = [8, 128], strides = [1, 1]} : vector<40x128xf32> to vector<8x128xf32>
    %83 = vector.extract_strided_slice %81 {offsets = [8, 0], sizes = [8, 128], strides = [1, 1]} : vector<40x128xf32> to vector<8x128xf32>
    %84 = vector.extract_strided_slice %81 {offsets = [16, 0], sizes = [8, 128], strides = [1, 1]} : vector<40x128xf32> to vector<8x128xf32>
    %85 = vector.extract_strided_slice %81 {offsets = [24, 0], sizes = [8, 128], strides = [1, 1]} : vector<40x128xf32> to vector<8x128xf32>
    %86 = vector.extract_strided_slice %81 {offsets = [32, 0], sizes = [8, 128], strides = [1, 1]} : vector<40x128xf32> to vector<8x128xf32>
    %87 = tpu.concatenate %82, %83, %84, %85, %86 in 1 : vector<8x128xf32>, vector<8x128xf32>, vector<8x128xf32>, vector<8x128xf32>, vector<8x128xf32> -> vector<8x640xf32>
    %88 = arith.truncf %87 : vector<8x640xf32> to vector<8x640xbf16>
    %c0_64 = arith.constant 0 : index
    %c0_65 = arith.constant 0 : index
    %89 = vector.load %arg6[%c0_64, %c0_65] : memref<640x128xbf16, #tpu.memory_space<vmem>>, vector<640x128xbf16>
    %cst_66 = arith.constant dense<0.000000e+00> : vector<8x128xf32>
    %90 = tpu.matmul %88, %89, %cst_66 {dimension_numbers = #tpu.dot_dimension_numbers<[1], [0], [0], [1], [0, 0, 1, 1], [], []>} : vector<8x640xbf16>, vector<640x128xbf16>, vector<8x128xf32> -> vector<8x128xf32>
    %c0_67 = arith.constant 0 : index
    %c0_68 = arith.constant 0 : index
    %91 = vector.load %arg7[%c0_67, %c0_68] : memref<1x128xf32, #tpu.memory_space<vmem>>, vector<1x128xf32>
    %92 = vector.broadcast %91 : vector<1x128xf32> to vector<8x128xf32>
    %93 = arith.addf %90, %92 : vector<8x128xf32>
    %cst_69 = arith.constant 0.000000e+00 : f32
    %94 = vector.broadcast %cst_69 : f32 to vector<8x128xf32>
    %95 = arith.maximumf %93, %94 : vector<8x128xf32>
    %96 = arith.truncf %95 : vector<8x128xf32> to vector<8x128xbf16>
    %c0_70 = arith.constant 0 : index
    %c0_71 = arith.constant 0 : index
    %97 = vector.load %arg8[%c0_70, %c0_71] : memref<128x128xbf16, #tpu.memory_space<vmem>>, vector<128x128xbf16>
    %cst_72 = arith.constant dense<0.000000e+00> : vector<8x128xf32>
    %98 = tpu.matmul %96, %97, %cst_72 {dimension_numbers = #tpu.dot_dimension_numbers<[1], [0], [0], [1], [0, 0, 1, 1], [], []>} : vector<8x128xbf16>, vector<128x128xbf16>, vector<8x128xf32> -> vector<8x128xf32>
    %c0_73 = arith.constant 0 : index
    %c0_74 = arith.constant 0 : index
    %99 = vector.load %arg9[%c0_73, %c0_74] : memref<1x128xf32, #tpu.memory_space<vmem>>, vector<1x128xf32>
    %100 = vector.broadcast %99 : vector<1x128xf32> to vector<8x128xf32>
    %101 = arith.addf %98, %100 : vector<8x128xf32>
    %cst_75 = arith.constant 0.000000e+00 : f32
    %102 = vector.broadcast %cst_75 : f32 to vector<8x128xf32>
    %103 = arith.maximumf %101, %102 : vector<8x128xf32>
    %104 = arith.truncf %103 : vector<8x128xf32> to vector<8x128xbf16>
    %c0_76 = arith.constant 0 : index
    %c0_77 = arith.constant 0 : index
    %105 = vector.load %arg10[%c0_76, %c0_77] : memref<128x128xbf16, #tpu.memory_space<vmem>>, vector<128x128xbf16>
    %cst_78 = arith.constant dense<0.000000e+00> : vector<8x128xf32>
    %106 = tpu.matmul %104, %105, %cst_78 {dimension_numbers = #tpu.dot_dimension_numbers<[1], [0], [0], [1], [0, 0, 1, 1], [], []>} : vector<8x128xbf16>, vector<128x128xbf16>, vector<8x128xf32> -> vector<8x128xf32>
    %c0_79 = arith.constant 0 : index
    %c0_80 = arith.constant 0 : index
    %107 = vector.load %arg11[%c0_79, %c0_80] : memref<1x128xf32, #tpu.memory_space<vmem>>, vector<1x128xf32>
    %108 = vector.broadcast %107 : vector<1x128xf32> to vector<8x128xf32>
    %109 = arith.addf %106, %108 : vector<8x128xf32>
    %c0_81 = arith.constant 0 : index
    %c0_82 = arith.constant 0 : index
    %110 = vector.load %arg12[%c0_81, %c0_82] : memref<8x128xf32, #tpu.memory_space<vmem>>, vector<8x128xf32>
    tpu.vector_store %arg12[%c0_81, %c0_82], %109 {strides = array<i32>} : memref<8x128xf32, #tpu.memory_space<vmem>>, vector<8x128xf32>,
    return
  }
  func.func @transform_0(%arg0: i32) -> (i32, i32, i32) {
    %c0_i32 = arith.constant 0 : i32
    %c0_i32_0 = arith.constant 0 : i32
    %c0_i32_1 = arith.constant 0 : i32
    return %c0_i32, %arg0, %c0_i32_0 : i32, i32, i32
  }
  func.func @transform_1(%arg0: i32) -> (i32, i32, i32) {
    %c0_i32 = arith.constant 0 : i32
    %c0_i32_0 = arith.constant 0 : i32
    %c0_i32_1 = arith.constant 0 : i32
    %c0_i32_2 = arith.constant 0 : i32
    return %c0_i32, %c0_i32_0, %c0_i32_1 : i32, i32, i32
  }
  func.func @transform_2(%arg0: i32) -> (i32, i32) {
    %c0_i32 = arith.constant 0 : i32
    %c0_i32_0 = arith.constant 0 : i32
    %c0_i32_1 = arith.constant 0 : i32
    return %c0_i32, %c0_i32_0 : i32, i32
  }
  func.func @transform_3(%arg0: i32) -> (i32, i32, i32) {
    %c0_i32 = arith.constant 0 : i32
    %c0_i32_0 = arith.constant 0 : i32
    %c0_i32_1 = arith.constant 0 : i32
    %c0_i32_2 = arith.constant 0 : i32
    return %c0_i32, %c0_i32_0, %c0_i32_1 : i32, i32, i32
  }
  func.func @transform_4(%arg0: i32) -> (i32, i32) {
    %c0_i32 = arith.constant 0 : i32
    %c0_i32_0 = arith.constant 0 : i32
    %c0_i32_1 = arith.constant 0 : i32
    return %c0_i32, %c0_i32_0 : i32, i32
  }
  func.func @transform_5(%arg0: i32) -> (i32, i32) {
    %c0_i32 = arith.constant 0 : i32
    %c0_i32_0 = arith.constant 0 : i32
    %c0_i32_1 = arith.constant 0 : i32
    return %c0_i32, %c0_i32_0 : i32, i32
  }
  func.func @transform_6(%arg0: i32) -> (i32, i32) {
    %c0_i32 = arith.constant 0 : i32
    %c0_i32_0 = arith.constant 0 : i32
    %c0_i32_1 = arith.constant 0 : i32
    return %c0_i32, %c0_i32_0 : i32, i32
  }
  func.func @transform_7(%arg0: i32) -> (i32, i32) {
    %c0_i32 = arith.constant 0 : i32
    %c0_i32_0 = arith.constant 0 : i32
    %c0_i32_1 = arith.constant 0 : i32
    return %c0_i32, %c0_i32_0 : i32, i32
  }
  func.func @transform_8(%arg0: i32) -> (i32, i32) {
    %c0_i32 = arith.constant 0 : i32
    %c0_i32_0 = arith.constant 0 : i32
    %c0_i32_1 = arith.constant 0 : i32
    return %c0_i32, %c0_i32_0 : i32, i32
  }
  func.func @transform_9(%arg0: i32) -> (i32, i32) {
    %c0_i32 = arith.constant 0 : i32
    %c0_i32_0 = arith.constant 0 : i32
    %c0_i32_1 = arith.constant 0 : i32
    return %c0_i32, %c0_i32_0 : i32, i32
  }
  func.func @transform_10(%arg0: i32) -> (i32, i32) {
    %c0_i32 = arith.constant 0 : i32
    %c0_i32_0 = arith.constant 0 : i32
    %c0_i32_1 = arith.constant 0 : i32
    return %c0_i32, %c0_i32_0 : i32, i32
  }
  func.func @transform_11(%arg0: i32) -> (i32, i32) {
    %c0_i32 = arith.constant 0 : i32
    %c0_i32_0 = arith.constant 0 : i32
    return %arg0, %c0_i32 : i32, i32
  }
}

</mosaic_0001>

<llo_original>
// kernel: net_forward.1
$region0: #{net_forward.1}
  #allocation0 [shape = 'u32[]', space=smem, size = 0x4, offset = 0x4, fixed_abs, tag = 'smem constant byte address 0x4 - core index']
  #allocation1 [shape = 'u32[144,128]{1,0:T(1,128)}', space=vmem, size = 0x12000, scoped, tag = 'internal scratch']
  %s0 = inlined_call_operand.vmem [shape: bf16[4,56,160], index: 0, kind: input, shape index: {}]
  %s1 = inlined_call_operand.vmem [shape: bf16[2,160,128], index: 1, kind: input, shape index: {}]
  %s2 = inlined_call_operand.vmem [shape: f32[1,128], index: 2, kind: input, shape index: {}]
  %s3 = inlined_call_operand.vmem [shape: bf16[2,640,128], index: 3, kind: input, shape index: {}]
  %s4 = inlined_call_operand.vmem [shape: f32[1,128], index: 4, kind: input, shape index: {}]
  %s5 = inlined_call_operand.vmem [shape: bf16[640,128], index: 5, kind: input, shape index: {}]
  %s6 = inlined_call_operand.vmem [shape: f32[1,128], index: 6, kind: input, shape index: {}]
  %s7 = inlined_call_operand.vmem [shape: bf16[128,128], index: 7, kind: input, shape index: {}]
  %s8 = inlined_call_operand.vmem [shape: f32[1,128], index: 8, kind: input, shape index: {}]
  %s9 = inlined_call_operand.vmem [shape: bf16[128,128], index: 9, kind: input, shape index: {}]
  %s10 = inlined_call_operand.vmem [shape: f32[1,128], index: 10, kind: input, shape index: {}]
  %s11 = inlined_call_operand.vmem [shape: f32[8,128], index: 11, kind: output, shape index: {}]
  %s12 = sld [smem:[#allocation0]]
  $region54: #{net_forward.1} parent=0
    _
  %s14 = ssub.s32 1, %s12
  %s15 = scalar_select 0, %s14, %s12
  // Predicated region
  $region2: #{net_forward.1} parent=0 // pred_check
    _
  $region3: #{net_forward.1} parent=0 // pred_check_branch
    %17 = sbr.rel (0) target = $region5
  $region4: #{net_forward.1} parent=0 // pred_region
    _
  $region5: #{net_forward.1} parent=0 // pred_fallthru
    _
  // Predicated region
  $region6: #{net_forward.1} parent=0 // pred_check
    _
  $region7: #{net_forward.1} parent=0 // pred_check_branch
    %19 = sbr.rel (0) target = $region9
  $region8: #{net_forward.1} parent=0 // pred_region
    _
  $region9: #{net_forward.1} parent=0 // pred_fallthru
    _
  // Predicated region
  $region10: #{net_forward.1} parent=0 // pred_check
    _
  $region11: #{net_forward.1} parent=0 // pred_check_branch
    %21 = sbr.rel (0) target = $region13
  $region12: #{net_forward.1} parent=0 // pred_region
    _
  $region13: #{net_forward.1} parent=0 // pred_fallthru
    _
  // Predicated region
  $region14: #{net_forward.1} parent=0 // pred_check
    _
  $region15: #{net_forward.1} parent=0 // pred_check_branch
    %23 = sbr.rel (0) target = $region17
  $region16: #{net_forward.1} parent=0 // pred_region
    _
  $region17: #{net_forward.1} parent=0 // pred_fallthru
    _
  // Predicated region
  $region18: #{net_forward.1} parent=0 // pred_check
    _
  $region19: #{net_forward.1} parent=0 // pred_check_branch
    %25 = sbr.rel (0) target = $region21
  $region20: #{net_forward.1} parent=0 // pred_region
    _
  $region21: #{net_forward.1} parent=0 // pred_fallthru
    _
  // Predicated region
  $region22: #{net_forward.1} parent=0 // pred_check
    _
  $region23: #{net_forward.1} parent=0 // pred_check_branch
    %27 = sbr.rel (0) target = $region25
  $region24: #{net_forward.1} parent=0 // pred_region
    _
  $region25: #{net_forward.1} parent=0 // pred_fallthru
    _
  // Predicated region
  $region26: #{net_forward.1} parent=0 // pred_check
    _
  $region27: #{net_forward.1} parent=0 // pred_check_branch
    %29 = sbr.rel (0) target = $region29
  $region28: #{net_forward.1} parent=0 // pred_region
    _
  $region29: #{net_forward.1} parent=0 // pred_fallthru
    _
  // Predicated region
  $region30: #{net_forward.1} parent=0 // pred_check
    _
  $region31: #{net_forward.1} parent=0 // pred_check_branch
    %31 = sbr.rel (0) target = $region33
  $region32: #{net_forward.1} parent=0 // pred_region
    _
  $region33: #{net_forward.1} parent=0 // pred_fallthru
    _
  // Predicated region
  $region34: #{net_forward.1} parent=0 // pred_check
    _
  $region35: #{net_forward.1} parent=0 // pred_check_branch
    %33 = sbr.rel (0) target = $region37
  $region36: #{net_forward.1} parent=0 // pred_region
    _
  $region37: #{net_forward.1} parent=0 // pred_fallthru
    _
  // Predicated region
  $region38: #{net_forward.1} parent=0 // pred_check
    _
  $region39: #{net_forward.1} parent=0 // pred_check_branch
    %35 = sbr.rel (0) target = $region41
  $region40: #{net_forward.1} parent=0 // pred_region
    _
  $region41: #{net_forward.1} parent=0 // pred_fallthru
    _
  // Predicated region
  $region42: #{net_forward.1} parent=0 // pred_check
    _
  $region43: #{net_forward.1} parent=0 // pred_check_branch
    %37 = sbr.rel (0) target = $region45
  $region44: #{net_forward.1} parent=0 // pred_region
    _
  $region45: #{net_forward.1} parent=0 // pred_fallthru
    _
  %v39 = vld [vmem:[%s0] sm:$0xff]
  %v40 = vld [vmem:[%s0 + $0x8] sm:$0xff]
  %v41 = vld [vmem:[%s0 + $0x10] sm:$0xff]
  %v42 = vld [vmem:[%s0 + $0x18] sm:$0xff]
  %v43 = vld [vmem:[%s0 + $0x20] sm:$0xff]
  %v44 = vld [vmem:[%s0 + $0x28] sm:$0xff]
  %v45 = vld [vmem:[%s0 + $0x30] sm:$0xff]
  %v46 = vld [vmem:[%s1] sm:$0xf]
  %v47 = vld [vmem:[%s1 + $0x4] sm:$0xf]
  %v48 = vld [vmem:[%s1 + $0x8] sm:$0xf]
  %v49 = vld [vmem:[%s1 + $0xc] sm:$0xf]
  %v50 = vld [vmem:[%s1 + $0x10] sm:$0xf]
  %v51 = vld [vmem:[%s1 + $0x14] sm:$0xf]
  %v52 = vld [vmem:[%s1 + $0x18] sm:$0xf]
  %v53 = vld [vmem:[%s1 + $0x1c] sm:$0xf]
  %v54 = vld [vmem:[%s1 + $0x20] sm:$0xf]
  %v55 = vld [vmem:[%s1 + $0x24] sm:$0xf]
  %v56 = vld [vmem:[%s1 + $0x28] sm:$0xf]
  %v57 = vld [vmem:[%s1 + $0x2c] sm:$0xf]
  %v58 = vld [vmem:[%s1 + $0x30] sm:$0xf]
  %v59 = vld [vmem:[%s1 + $0x34] sm:$0xf]
  %v60 = vld [vmem:[%s1 + $0x38] sm:$0xf]
  %v61 = vld [vmem:[%s1 + $0x3c] sm:$0xf]
  %v62 = vld [vmem:[%s1 + $0x40] sm:$0xf]
  %v63 = vld [vmem:[%s1 + $0x44] sm:$0xf]
  %v64 = vld [vmem:[%s1 + $0x48] sm:$0xf]
  %v65 = vld [vmem:[%s1 + $0x4c] sm:$0xf]
  %v73 = vunpack.c.l.b16 %v39
  %v74 = vunpack.c.h.b16 %v39
  %v75 = vunpack.c.l.b16 %v40
  %v76 = vunpack.c.h.b16 %v40
  %v77 = vunpack.c.l.b16 %v41
  %v78 = vunpack.c.h.b16 %v41
  %v79 = vunpack.c.l.b16 %v42
  %v80 = vunpack.c.h.b16 %v42
  %v81 = vunpack.c.l.b16 %v43
  %v82 = vunpack.c.h.b16 %v43
  %v83 = vunpack.c.l.b16 %v44
  %v84 = vunpack.c.h.b16 %v44
  %v85 = vunpack.c.l.b16 %v45
  %v86 = vunpack.c.h.b16 %v45
  %v87 = vpack.c.b16 %v75, %v73
  %v88 = vpack.c.b16 %v76, %v74
  %v89 = vpack.c.b16 %v79, %v77
  %v90 = vpack.c.b16 %v80, %v78
  %v91 = vpack.c.b16 %v83, %v81
  %v92 = vpack.c.b16 %v84, %v82
  %v93 = vpack.c.b16 %v85, %v85
  %v94 = vpack.c.b16 %v86, %v86
  %v119 = vunpack.c.l.b16 %v46
  %v120 = vunpack.c.l.b16 %v47
  %v121 = vunpack.c.l.b16 %v48
  %v122 = vunpack.c.l.b16 %v49
  %v123 = vunpack.c.l.b16 %v50
  %v124 = vunpack.c.l.b16 %v51
  %v125 = vunpack.c.l.b16 %v52
  %v126 = vunpack.c.l.b16 %v53
  %v127 = vunpack.c.l.b16 %v54
  %v128 = vunpack.c.l.b16 %v55
  %v129 = vunpack.c.l.b16 %v56
  %v130 = vunpack.c.l.b16 %v57
  %v131 = vunpack.c.l.b16 %v58
  %v132 = vunpack.c.l.b16 %v59
  %v133 = vunpack.c.l.b16 %v60
  %v134 = vunpack.c.l.b16 %v61
  %v135 = vunpack.c.l.b16 %v62
  %v136 = vunpack.c.l.b16 %v63
  %v137 = vunpack.c.l.b16 %v64
  %v138 = vunpack.c.l.b16 %v65
  %v139 = vpack.c.b16 %v120, %v119
  %v140 = vpack.c.b16 %v122, %v121
  %v141 = vpack.c.b16 %v124, %v123
  %v142 = vpack.c.b16 %v126, %v125
  %v143 = vpack.c.b16 %v128, %v127
  %v144 = vpack.c.b16 %v130, %v129
  %v145 = vpack.c.b16 %v132, %v131
  %v146 = vpack.c.b16 %v134, %v133
  %v147 = vpack.c.b16 %v136, %v135
  %v148 = vpack.c.b16 %v138, %v137
  %vm159 = vcmask 261120
  %v161 = vsel %vm159, %v88, 0
  %v164 = vsel %vm159, %v90, 0
  %v167 = vsel %vm159, %v92, 0
  %v170 = vsel %vm159, %v94, 0
  %172 = vmatprep.subr.bf16.mxu0 0
  %173 = vmatpush1.bf16.msra.mxu0 %v146
  %174 = vmatprep.subr.bf16.mxu0 0
  %175 = vmatpush1.bf16.msra.mxu0 %v145
  %176 = vmatprep.subr.bf16.mxu0 0
  %177 = vmatpush1.bf16.msra.mxu0 %v144
  %178 = vmatprep.subr.bf16.mxu0 0
  %179 = vmatpush1.bf16.msra.mxu0 %v143
  %180 = vmatprep.subr.bf16.mxu0 0
  %181 = vmatpush1.bf16.msra.mxu0 %v142
  %182 = vmatprep.subr.bf16.mxu0 0
  %183 = vmatpush1.bf16.msra.mxu0 %v141
  %184 = vmatprep.subr.bf16.mxu0 0
  %185 = vmatpush1.bf16.msra.mxu0 %v140
  %186 = vmatprep.subr.bf16.mxu0 0
  %187 = vmatpush1.bf16.msra.mxu0 %v139
  %188 = vmatprep.subr.bf16.mxu0 0
  %189 = vmatpush2.bf16.msra.mxu0 0
  %190 = vmatprep.subr.bf16.mxu0 0
  %191 = vmatpush2.bf16.msra.mxu0 0
  %192 = vmatprep.subr.bf16.mxu0 0
  %193 = vmatpush2.bf16.msra.mxu0 0
  %194 = vmatprep.subr.bf16.mxu0 0
  %195 = vmatpush2.bf16.msra.mxu0 0
  %196 = vmatprep.subr.bf16.mxu0 0
  %197 = vmatpush2.bf16.msra.mxu0 0
  %198 = vmatprep.subr.bf16.mxu0 0
  %199 = vmatpush2.bf16.msra.mxu0 0
  %200 = vmatprep.subr.bf16.mxu0 0
  %201 = vmatpush2.bf16.msra.mxu0 %v148
  %202 = vmatprep.subr.bf16.mxu0 0
  %203 = vmatpush2.bf16.msra.mxu0 %v147
  %204 = vmatprep.mubr.bf16.mxu0 %v161
  %205 = vmatmul.mubr.bf16.gmra.mxu0 %v87
  %v206 = vpop.f32.mrf.mxu0
  %v207 = vadd.f32 0.0, %v206
  %v208 = vpop.f32.mrf.mxu0
  %v209 = vpop.f32.mrf.mxu0
  %v210 = vadd.f32 0.0, %v209
  %v211 = vpop.f32.mrf.mxu0
  %212 = vmatprep.mubr.bf16.mxu0 %v164
  %213 = vmatmul.mubr.bf16.gmra.mxu0 %v89
  %v214 = vpop.f32.mrf.mxu0
  %v215 = vadd.f32 0.0, %v214
  %v216 = vpop.f32.mrf.mxu0
  %v217 = vpop.f32.mrf.mxu0
  %v218 = vadd.f32 0.0, %v217
  %v219 = vpop.f32.mrf.mxu0
  %220 = vmatprep.mubr.bf16.mxu0 %v167
  %221 = vmatmul.mubr.bf16.gmra.mxu0 %v91
  %v222 = vpop.f32.mrf.mxu0
  %v223 = vadd.f32 0.0, %v222
  %v224 = vpop.f32.mrf.mxu0
  %v225 = vpop.f32.mrf.mxu0
  %v226 = vadd.f32 0.0, %v225
  %v227 = vpop.f32.mrf.mxu0
  %228 = vmatprep.mubr.bf16.mxu0 %v170
  %229 = vmatmul.mubr.bf16.gmra.mxu0 %v93
  %v230 = vpop.f32.mrf.mxu0
  %v231 = vadd.f32 0.0, %v230
  %v232 = vpop.f32.mrf.mxu0
  %v233 = vpop.f32.mrf.mxu0
  %v234 = vpop.f32.mrf.mxu0
  %235 = vdwg.mxu0
  %s236 = scalar_lea.vmem %s1, 80
  %v237 = vld [vmem:[%s236] sm:$0xf]
  %v238 = vld [vmem:[%s236 + $0x4] sm:$0xf]
  %v239 = vld [vmem:[%s236 + $0x8] sm:$0xf]
  %v240 = vld [vmem:[%s236 + $0xc] sm:$0xf]
  %v241 = vld [vmem:[%s236 + $0x10] sm:$0xf]
  %v242 = vld [vmem:[%s236 + $0x14] sm:$0xf]
  %v243 = vld [vmem:[%s236 + $0x18] sm:$0xf]
  %v244 = vld [vmem:[%s236 + $0x1c] sm:$0xf]
  %v245 = vld [vmem:[%s236 + $0x20] sm:$0xf]
  %v246 = vld [vmem:[%s236 + $0x24] sm:$0xf]
  %v247 = vld [vmem:[%s236 + $0x28] sm:$0xf]
  %v248 = vld [vmem:[%s236 + $0x2c] sm:$0xf]
  %v249 = vld [vmem:[%s236 + $0x30] sm:$0xf]
  %v250 = vld [vmem:[%s236 + $0x34] sm:$0xf]
  %v251 = vld [vmem:[%s236 + $0x38] sm:$0xf]
  %v252 = vld [vmem:[%s236 + $0x3c] sm:$0xf]
  %v253 = vld [vmem:[%s236 + $0x40] sm:$0xf]
  %v254 = vld [vmem:[%s236 + $0x44] sm:$0xf]
  %v255 = vld [vmem:[%s236 + $0x48] sm:$0xf]
  %v256 = vld [vmem:[%s236 + $0x4c] sm:$0xf]
  %v277 = vunpack.c.l.b16 %v237
  %v278 = vunpack.c.l.b16 %v238
  %v279 = vunpack.c.l.b16 %v239
  %v280 = vunpack.c.l.b16 %v240
  %v281 = vunpack.c.l.b16 %v241
  %v282 = vunpack.c.l.b16 %v242
  %v283 = vunpack.c.l.b16 %v243
  %v284 = vunpack.c.l.b16 %v244
  %v285 = vunpack.c.l.b16 %v245
  %v286 = vunpack.c.l.b16 %v246
  %v287 = vunpack.c.l.b16 %v247
  %v288 = vunpack.c.l.b16 %v248
  %v289 = vunpack.c.l.b16 %v249
  %v290 = vunpack.c.l.b16 %v250
  %v291 = vunpack.c.l.b16 %v251
  %v292 = vunpack.c.l.b16 %v252
  %v293 = vunpack.c.l.b16 %v253
  %v294 = vunpack.c.l.b16 %v254
  %v295 = vunpack.c.l.b16 %v255
  %v296 = vunpack.c.l.b16 %v256
  %v297 = vpack.c.b16 %v278, %v277
  %v298 = vpack.c.b16 %v280, %v279
  %v299 = vpack.c.b16 %v282, %v281
  %v300 = vpack.c.b16 %v284, %v283
  %v301 = vpack.c.b16 %v286, %v285
  %v302 = vpack.c.b16 %v288, %v287
  %v303 = vpack.c.b16 %v290, %v289
  %v304 = vpack.c.b16 %v292, %v291
  %v305 = vpack.c.b16 %v294, %v293
  %v306 = vpack.c.b16 %v296, %v295
  %317 = vmatprep.subr.bf16.mxu0 0
  %318 = vmatpush1.bf16.msra.mxu0 %v304
  %319 = vmatprep.subr.bf16.mxu0 0
  %320 = vmatpush1.bf16.msra.mxu0 %v303
  %321 = vmatprep.subr.bf16.mxu0 0
  %322 = vmatpush1.bf16.msra.mxu0 %v302
  %323 = vmatprep.subr.bf16.mxu0 0
  %324 = vmatpush1.bf16.msra.mxu0 %v301
  %325 = vmatprep.subr.bf16.mxu0 0
  %326 = vmatpush1.bf16.msra.mxu0 %v300
  %327 = vmatprep.subr.bf16.mxu0 0
  %328 = vmatpush1.bf16.msra.mxu0 %v299
  %329 = vmatprep.subr.bf16.mxu0 0
  %330 = vmatpush1.bf16.msra.mxu0 %v298
  %331 = vmatprep.subr.bf16.mxu0 0
  %332 = vmatpush1.bf16.msra.mxu0 %v297
  %333 = vmatprep.subr.bf16.mxu0 0
  %334 = vmatpush2.bf16.msra.mxu0 0
  %335 = vmatprep.subr.bf16.mxu0 0
  %336 = vmatpush2.bf16.msra.mxu0 0
  %337 = vmatprep.subr.bf16.mxu0 0
  %338 = vmatpush2.bf16.msra.mxu0 0
  %339 = vmatprep.subr.bf16.mxu0 0
  %340 = vmatpush2.bf16.msra.mxu0 0
  %341 = vmatprep.subr.bf16.mxu0 0
  %342 = vmatpush2.bf16.msra.mxu0 0
  %343 = vmatprep.subr.bf16.mxu0 0
  %344 = vmatpush2.bf16.msra.mxu0 0
  %345 = vmatprep.subr.bf16.mxu0 0
  %346 = vmatpush2.bf16.msra.mxu0 %v306
  %347 = vmatprep.subr.bf16.mxu0 0
  %348 = vmatpush2.bf16.msra.mxu0 %v305
  %349 = vmatprep.mubr.bf16.mxu0 %v161
  %350 = vmatmul.mubr.bf16.gmra.mxu0 %v87
  %v351 = vpop.f32.mrf.mxu0
  %v352 = vadd.f32 0.0, %v351
  %v353 = vpop.f32.mrf.mxu0
  %v354 = vpop.f32.mrf.mxu0
  %v355 = vadd.f32 0.0, %v354
  %v356 = vpop.f32.mrf.mxu0
  %357 = vmatprep.mubr.bf16.mxu0 %v164
  %358 = vmatmul.mubr.bf16.gmra.mxu0 %v89
  %v359 = vpop.f32.mrf.mxu0
  %v360 = vadd.f32 0.0, %v359
  %v361 = vpop.f32.mrf.mxu0
  %v362 = vpop.f32.mrf.mxu0
  %v363 = vadd.f32 0.0, %v362
  %v364 = vpop.f32.mrf.mxu0
  %365 = vmatprep.mubr.bf16.mxu0 %v167
  %366 = vmatmul.mubr.bf16.gmra.mxu0 %v91
  %v367 = vpop.f32.mrf.mxu0
  %v368 = vadd.f32 0.0, %v367
  %v369 = vpop.f32.mrf.mxu0
  %v370 = vpop.f32.mrf.mxu0
  %v371 = vadd.f32 0.0, %v370
  %v372 = vpop.f32.mrf.mxu0
  %373 = vmatprep.mubr.bf16.mxu0 %v170
  %374 = vmatmul.mubr.bf16.gmra.mxu0 %v93
  %v375 = vpop.f32.mrf.mxu0
  %v376 = vadd.f32 0.0, %v375
  %v377 = vpop.f32.mrf.mxu0
  %v378 = vpop.f32.mrf.mxu0
  %v379 = vpop.f32.mrf.mxu0
  %380 = vdwg.mxu0
  %s381 = scalar_lea.vmem %s0, 56
  %v382 = vld [vmem:[%s381] sm:$0xff]
  %v383 = vld [vmem:[%s381 + $0x8] sm:$0xff]
  %v384 = vld [vmem:[%s381 + $0x10] sm:$0xff]
  %v385 = vld [vmem:[%s381 + $0x18] sm:$0xff]
  %v386 = vld [vmem:[%s381 + $0x20] sm:$0xff]
  %v387 = vld [vmem:[%s381 + $0x28] sm:$0xff]
  %v388 = vld [vmem:[%s381 + $0x30] sm:$0xff]
  %v396 = vunpack.c.l.b16 %v382
  %v397 = vunpack.c.h.b16 %v382
  %v398 = vunpack.c.l.b16 %v383
  %v399 = vunpack.c.h.b16 %v383
  %v400 = vunpack.c.l.b16 %v384
  %v401 = vunpack.c.h.b16 %v384
  %v402 = vunpack.c.l.b16 %v385
  %v403 = vunpack.c.h.b16 %v385
  %v404 = vunpack.c.l.b16 %v386
  %v405 = vunpack.c.h.b16 %v386
  %v406 = vunpack.c.l.b16 %v387
  %v407 = vunpack.c.h.b16 %v387
  %v408 = vunpack.c.l.b16 %v388
  %v409 = vunpack.c.h.b16 %v388
  %v410 = vpack.c.b16 %v398, %v396
  %v411 = vpack.c.b16 %v399, %v397
  %v412 = vpack.c.b16 %v402, %v400
  %v413 = vpack.c.b16 %v403, %v401
  %v414 = vpack.c.b16 %v406, %v404
  %v415 = vpack.c.b16 %v407, %v405
  %v416 = vpack.c.b16 %v408, %v408
  %v417 = vpack.c.b16 %v409, %v409
  %v423 = vsel %vm159, %v411, 0
  %v426 = vsel %vm159, %v413, 0
  %v429 = vsel %vm159, %v415, 0
  %v432 = vsel %vm159, %v417, 0
  %434 = vmatprep.subr.bf16.mxu0 0
  %435 = vmatpush1.bf16.msra.mxu0 %v146
  %436 = vmatprep.subr.bf16.mxu0 0
  %437 = vmatpush1.bf16.msra.mxu0 %v145
  %438 = vmatprep.subr.bf16.mxu0 0
  %439 = vmatpush1.bf16.msra.mxu0 %v144
  %440 = vmatprep.subr.bf16.mxu0 0
  %441 = vmatpush1.bf16.msra.mxu0 %v143
  %442 = vmatprep.subr.bf16.mxu0 0
  %443 = vmatpush1.bf16.msra.mxu0 %v142
  %444 = vmatprep.subr.bf16.mxu0 0
  %445 = vmatpush1.bf16.msra.mxu0 %v141
  %446 = vmatprep.subr.bf16.mxu0 0
  %447 = vmatpush1.bf16.msra.mxu0 %v140
  %448 = vmatprep.subr.bf16.mxu0 0
  %449 = vmatpush1.bf16.msra.mxu0 %v139
  %450 = vmatprep.subr.bf16.mxu0 0
  %451 = vmatpush2.bf16.msra.mxu0 0
  %452 = vmatprep.subr.bf16.mxu0 0
  %453 = vmatpush2.bf16.msra.mxu0 0
  %454 = vmatprep.subr.bf16.mxu0 0
  %455 = vmatpush2.bf16.msra.mxu0 0
  %456 = vmatprep.subr.bf16.mxu0 0
  %457 = vmatpush2.bf16.msra.mxu0 0
  %458 = vmatprep.subr.bf16.mxu0 0
  %459 = vmatpush2.bf16.msra.mxu0 0
  %460 = vmatprep.subr.bf16.mxu0 0
  %461 = vmatpush2.bf16.msra.mxu0 0
  %462 = vmatprep.subr.bf16.mxu0 0
  %463 = vmatpush2.bf16.msra.mxu0 %v148
  %464 = vmatprep.subr.bf16.mxu0 0
  %465 = vmatpush2.bf16.msra.mxu0 %v147
  %466 = vmatprep.mubr.bf16.mxu0 %v423
  %467 = vmatmul.mubr.bf16.gmra.mxu0 %v410
  %v468 = vpop.f32.mrf.mxu0
  %v469 = vadd.f32 0.0, %v468
  %v470 = vpop.f32.mrf.mxu0
  %v471 = vpop.f32.mrf.mxu0
  %v472 = vadd.f32 0.0, %v471
  %v473 = vpop.f32.mrf.mxu0
  %474 = vmatprep.mubr.bf16.mxu0 %v426
  %475 = vmatmul.mubr.bf16.gmra.mxu0 %v412
  %v476 = vpop.f32.mrf.mxu0
  %v477 = vadd.f32 0.0, %v476
  %v478 = vpop.f32.mrf.mxu0
  %v479 = vpop.f32.mrf.mxu0
  %v480 = vadd.f32 0.0, %v479
  %v481 = vpop.f32.mrf.mxu0
  %482 = vmatprep.mubr.bf16.mxu0 %v429
  %483 = vmatmul.mubr.bf16.gmra.mxu0 %v414
  %v484 = vpop.f32.mrf.mxu0
  %v485 = vadd.f32 0.0, %v484
  %v486 = vpop.f32.mrf.mxu0
  %v487 = vpop.f32.mrf.mxu0
  %v488 = vadd.f32 0.0, %v487
  %v489 = vpop.f32.mrf.mxu0
  %490 = vmatprep.mubr.bf16.mxu0 %v432
  %491 = vmatmul.mubr.bf16.gmra.mxu0 %v416
  %v492 = vpop.f32.mrf.mxu0
  %v493 = vadd.f32 0.0, %v492
  %v494 = vpop.f32.mrf.mxu0
  %v495 = vpop.f32.mrf.mxu0
  %v496 = vpop.f32.mrf.mxu0
  %497 = vdwg.mxu0
  %498 = vmatprep.subr.bf16.mxu0 0
  %499 = vmatpush1.bf16.msra.mxu0 %v304
  %500 = vmatprep.subr.bf16.mxu0 0
  %501 = vmatpush1.bf16.msra.mxu0 %v303
  %502 = vmatprep.subr.bf16.mxu0 0
  %503 = vmatpush1.bf16.msra.mxu0 %v302
  %504 = vmatprep.subr.bf16.mxu0 0
  %505 = vmatpush1.bf16.msra.mxu0 %v301
  %506 = vmatprep.subr.bf16.mxu0 0
  %507 = vmatpush1.bf16.msra.mxu0 %v300
  %508 = vmatprep.subr.bf16.mxu0 0
  %509 = vmatpush1.bf16.msra.mxu0 %v299
  %510 = vmatprep.subr.bf16.mxu0 0
  %511 = vmatpush1.bf16.msra.mxu0 %v298
  %512 = vmatprep.subr.bf16.mxu0 0
  %513 = vmatpush1.bf16.msra.mxu0 %v297
  %514 = vmatprep.subr.bf16.mxu0 0
  %515 = vmatpush2.bf16.msra.mxu0 0
  %516 = vmatprep.subr.bf16.mxu0 0
  %517 = vmatpush2.bf16.msra.mxu0 0
  %518 = vmatprep.subr.bf16.mxu0 0
  %519 = vmatpush2.bf16.msra.mxu0 0
  %520 = vmatprep.subr.bf16.mxu0 0
  %521 = vmatpush2.bf16.msra.mxu0 0
  %522 = vmatprep.subr.bf16.mxu0 0
  %523 = vmatpush2.bf16.msra.mxu0 0
  %524 = vmatprep.subr.bf16.mxu0 0
  %525 = vmatpush2.bf16.msra.mxu0 0
  %526 = vmatprep.subr.bf16.mxu0 0
  %527 = vmatpush2.bf16.msra.mxu0 %v306
  %528 = vmatprep.subr.bf16.mxu0 0
  %529 = vmatpush2.bf16.msra.mxu0 %v305
  %530 = vmatprep.mubr.bf16.mxu0 %v423
  %531 = vmatmul.mubr.bf16.gmra.mxu0 %v410
  %v532 = vpop.f32.mrf.mxu0
  %v533 = vadd.f32 0.0, %v532
  %v534 = vpop.f32.mrf.mxu0
  %v535 = vpop.f32.mrf.mxu0
  %v536 = vadd.f32 0.0, %v535
  %v537 = vpop.f32.mrf.mxu0
  %538 = vmatprep.mubr.bf16.mxu0 %v426
  %539 = vmatmul.mubr.bf16.gmra.mxu0 %v412
  %v540 = vpop.f32.mrf.mxu0
  %v541 = vadd.f32 0.0, %v540
  %v542 = vpop.f32.mrf.mxu0
  %v543 = vpop.f32.mrf.mxu0
  %v544 = vadd.f32 0.0, %v543
  %v545 = vpop.f32.mrf.mxu0
  %546 = vmatprep.mubr.bf16.mxu0 %v429
  %547 = vmatmul.mubr.bf16.gmra.mxu0 %v414
  %v548 = vpop.f32.mrf.mxu0
  %v549 = vadd.f32 0.0, %v548
  %v550 = vpop.f32.mrf.mxu0
  %v551 = vpop.f32.mrf.mxu0
  %v552 = vadd.f32 0.0, %v551
  %v553 = vpop.f32.mrf.mxu0
  %554 = vmatprep.mubr.bf16.mxu0 %v432
  %555 = vmatmul.mubr.bf16.gmra.mxu0 %v416
  %v556 = vpop.f32.mrf.mxu0
  %v557 = vadd.f32 0.0, %v556
  %v558 = vpop.f32.mrf.mxu0
  %v559 = vpop.f32.mrf.mxu0
  %v560 = vpop.f32.mrf.mxu0
  %561 = vdwg.mxu0
  %v562 = vmax.f32 %v207, %v352
  %v563 = vmax.f32 %v210, %v355
  %v564 = vmax.f32 %v215, %v360
  %v565 = vmax.f32 %v218, %v363
  %v566 = vmax.f32 %v223, %v368
  %v567 = vmax.f32 %v226, %v371
  %v568 = vmax.f32 %v231, %v376
  %v569 = vmax.f32 %v469, %v533
  %v570 = vmax.f32 %v472, %v536
  %v571 = vmax.f32 %v477, %v541
  %v572 = vmax.f32 %v480, %v544
  %v573 = vmax.f32 %v485, %v549
  %v574 = vmax.f32 %v488, %v552
  %v575 = vmax.f32 %v493, %v557
  %v576 = vmax.f32 %v562, %v569
  %v577 = vmax.f32 %v563, %v570
  %v578 = vmax.f32 %v564, %v571
  %v579 = vmax.f32 %v565, %v572
  %v580 = vmax.f32 %v566, %v573
  %v581 = vmax.f32 %v567, %v574
  %v582 = vmax.f32 %v568, %v575
  %v583 = vld [vmem:[%s2] sm:$0x1]
  %v585 = vlaneseq
  %v586 = vshrl.u32 %v585, 7
  %v587 = vsub.s32 0, %v586
  %v588 = vrot.slane %v583, %v587
  %v590 = vadd.f32 %v576, %v588
  %v591 = vadd.f32 %v577, %v588
  %v592 = vadd.f32 %v578, %v588
  %v593 = vadd.f32 %v579, %v588
  %v594 = vadd.f32 %v580, %v588
  %v595 = vadd.f32 %v581, %v588
  %v596 = vadd.f32 %v582, %v588
  %v597 = vmax.f32 %v590, 0.0
  %v598 = vmax.f32 %v591, 0.0
  %v599 = vmax.f32 %v592, 0.0
  %v600 = vmax.f32 %v593, 0.0
  %v601 = vmax.f32 %v594, 0.0
  %v602 = vmax.f32 %v595, 0.0
  %v603 = vmax.f32 %v596, 0.0
  %s604 = scalar_lea.vmem %s0, 112
  %v605 = vld [vmem:[%s604] sm:$0xff]
  %v606 = vld [vmem:[%s604 + $0x8] sm:$0xff]
  %v607 = vld [vmem:[%s604 + $0x10] sm:$0xff]
  %v608 = vld [vmem:[%s604 + $0x18] sm:$0xff]
  %v609 = vld [vmem:[%s604 + $0x20] sm:$0xff]
  %v610 = vld [vmem:[%s604 + $0x28] sm:$0xff]
  %v611 = vld [vmem:[%s604 + $0x30] sm:$0xff]
  %v619 = vunpack.c.l.b16 %v605
  %v620 = vunpack.c.h.b16 %v605
  %v621 = vunpack.c.l.b16 %v606
  %v622 = vunpack.c.h.b16 %v606
  %v623 = vunpack.c.l.b16 %v607
  %v624 = vunpack.c.h.b16 %v607
  %v625 = vunpack.c.l.b16 %v608
  %v626 = vunpack.c.h.b16 %v608
  %v627 = vunpack.c.l.b16 %v609
  %v628 = vunpack.c.h.b16 %v609
  %v629 = vunpack.c.l.b16 %v610
  %v630 = vunpack.c.h.b16 %v610
  %v631 = vunpack.c.l.b16 %v611
  %v632 = vunpack.c.h.b16 %v611
  %v633 = vpack.c.b16 %v621, %v619
  %v634 = vpack.c.b16 %v622, %v620
  %v635 = vpack.c.b16 %v625, %v623
  %v636 = vpack.c.b16 %v626, %v624
  %v637 = vpack.c.b16 %v629, %v627
  %v638 = vpack.c.b16 %v630, %v628
  %v639 = vpack.c.b16 %v631, %v631
  %v640 = vpack.c.b16 %v632, %v632
  %v646 = vsel %vm159, %v634, 0
  %v649 = vsel %vm159, %v636, 0
  %v652 = vsel %vm159, %v638, 0
  %v655 = vsel %vm159, %v640, 0
  %657 = vmatprep.subr.bf16.mxu0 0
  %658 = vmatpush1.bf16.msra.mxu0 %v146
  %659 = vmatprep.subr.bf16.mxu0 0
  %660 = vmatpush1.bf16.msra.mxu0 %v145
  %661 = vmatprep.subr.bf16.mxu0 0
  %662 = vmatpush1.bf16.msra.mxu0 %v144
  %663 = vmatprep.subr.bf16.mxu0 0
  %664 = vmatpush1.bf16.msra.mxu0 %v143
  %665 = vmatprep.subr.bf16.mxu0 0
  %666 = vmatpush1.bf16.msra.mxu0 %v142
  %667 = vmatprep.subr.bf16.mxu0 0
  %668 = vmatpush1.bf16.msra.mxu0 %v141
  %669 = vmatprep.subr.bf16.mxu0 0
  %670 = vmatpush1.bf16.msra.mxu0 %v140
  %671 = vmatprep.subr.bf16.mxu0 0
  %672 = vmatpush1.bf16.msra.mxu0 %v139
  %673 = vmatprep.subr.bf16.mxu0 0
  %674 = vmatpush2.bf16.msra.mxu0 0
  %675 = vmatprep.subr.bf16.mxu0 0
  %676 = vmatpush2.bf16.msra.mxu0 0
  %677 = vmatprep.subr.bf16.mxu0 0
  %678 = vmatpush2.bf16.msra.mxu0 0
  %679 = vmatprep.subr.bf16.mxu0 0
  %680 = vmatpush2.bf16.msra.mxu0 0
  %681 = vmatprep.subr.bf16.mxu0 0
  %682 = vmatpush2.bf16.msra.mxu0 0
  %683 = vmatprep.subr.bf16.mxu0 0
  %684 = vmatpush2.bf16.msra.mxu0 0
  %685 = vmatprep.subr.bf16.mxu0 0
  %686 = vmatpush2.bf16.msra.mxu0 %v148
  %687 = vmatprep.subr.bf16.mxu0 0
  %688 = vmatpush2.bf16.msra.mxu0 %v147
  %689 = vmatprep.mubr.bf16.mxu0 %v646
  %690 = vmatmul.mubr.bf16.gmra.mxu0 %v633
  %v691 = vpop.f32.mrf.mxu0
  %v692 = vadd.f32 0.0, %v691
  %v693 = vpop.f32.mrf.mxu0
  %v694 = vpop.f32.mrf.mxu0
  %v695 = vadd.f32 0.0, %v694
  %v696 = vpop.f32.mrf.mxu0
  %697 = vmatprep.mubr.bf16.mxu0 %v649
  %698 = vmatmul.mubr.bf16.gmra.mxu0 %v635
  %v699 = vpop.f32.mrf.mxu0
  %v700 = vadd.f32 0.0, %v699
  %v701 = vpop.f32.mrf.mxu0
  %v702 = vpop.f32.mrf.mxu0
  %v703 = vadd.f32 0.0, %v702
  %v704 = vpop.f32.mrf.mxu0
  %705 = vmatprep.mubr.bf16.mxu0 %v652
  %706 = vmatmul.mubr.bf16.gmra.mxu0 %v637
  %v707 = vpop.f32.mrf.mxu0
  %v708 = vadd.f32 0.0, %v707
  %v709 = vpop.f32.mrf.mxu0
  %v710 = vpop.f32.mrf.mxu0
  %v711 = vadd.f32 0.0, %v710
  %v712 = vpop.f32.mrf.mxu0
  %713 = vmatprep.mubr.bf16.mxu0 %v655
  %714 = vmatmul.mubr.bf16.gmra.mxu0 %v639
  %v715 = vpop.f32.mrf.mxu0
  %v716 = vadd.f32 0.0, %v715
  %v717 = vpop.f32.mrf.mxu0
  %v718 = vpop.f32.mrf.mxu0
  %v719 = vpop.f32.mrf.mxu0
  %720 = vdwg.mxu0
  %721 = vmatprep.subr.bf16.mxu0 0
  %722 = vmatpush1.bf16.msra.mxu0 %v304
  %723 = vmatprep.subr.bf16.mxu0 0
  %724 = vmatpush1.bf16.msra.mxu0 %v303
  %725 = vmatprep.subr.bf16.mxu0 0
  %726 = vmatpush1.bf16.msra.mxu0 %v302
  %727 = vmatprep.subr.bf16.mxu0 0
  %728 = vmatpush1.bf16.msra.mxu0 %v301
  %729 = vmatprep.subr.bf16.mxu0 0
  %730 = vmatpush1.bf16.msra.mxu0 %v300
  %731 = vmatprep.subr.bf16.mxu0 0
  %732 = vmatpush1.bf16.msra.mxu0 %v299
  %733 = vmatprep.subr.bf16.mxu0 0
  %734 = vmatpush1.bf16.msra.mxu0 %v298
  %735 = vmatprep.subr.bf16.mxu0 0
  %736 = vmatpush1.bf16.msra.mxu0 %v297
  %737 = vmatprep.subr.bf16.mxu0 0
  %738 = vmatpush2.bf16.msra.mxu0 0
  %739 = vmatprep.subr.bf16.mxu0 0
  %740 = vmatpush2.bf16.msra.mxu0 0
  %741 = vmatprep.subr.bf16.mxu0 0
  %742 = vmatpush2.bf16.msra.mxu0 0
  %743 = vmatprep.subr.bf16.mxu0 0
  %744 = vmatpush2.bf16.msra.mxu0 0
  %745 = vmatprep.subr.bf16.mxu0 0
  %746 = vmatpush2.bf16.msra.mxu0 0
  %747 = vmatprep.subr.bf16.mxu0 0
  %748 = vmatpush2.bf16.msra.mxu0 0
  %749 = vmatprep.subr.bf16.mxu0 0
  %750 = vmatpush2.bf16.msra.mxu0 %v306
  %751 = vmatprep.subr.bf16.mxu0 0
  %752 = vmatpush2.bf16.msra.mxu0 %v305
  %753 = vmatprep.mubr.bf16.mxu0 %v646
  %754 = vmatmul.mubr.bf16.gmra.mxu0 %v633
  %v755 = vpop.f32.mrf.mxu0
  %v756 = vadd.f32 0.0, %v755
  %v757 = vpop.f32.mrf.mxu0
  %v758 = vpop.f32.mrf.mxu0
  %v759 = vadd.f32 0.0, %v758
  %v760 = vpop.f32.mrf.mxu0
  %761 = vmatprep.mubr.bf16.mxu0 %v649
  %762 = vmatmul.mubr.bf16.gmra.mxu0 %v635
  %v763 = vpop.f32.mrf.mxu0
  %v764 = vadd.f32 0.0, %v763
  %v765 = vpop.f32.mrf.mxu0
  %v766 = vpop.f32.mrf.mxu0
  %v767 = vadd.f32 0.0, %v766
  %v768 = vpop.f32.mrf.mxu0
  %769 = vmatprep.mubr.bf16.mxu0 %v652
  %770 = vmatmul.mubr.bf16.gmra.mxu0 %v637
  %v771 = vpop.f32.mrf.mxu0
  %v772 = vadd.f32 0.0, %v771
  %v773 = vpop.f32.mrf.mxu0
  %v774 = vpop.f32.mrf.mxu0
  %v775 = vadd.f32 0.0, %v774
  %v776 = vpop.f32.mrf.mxu0
  %777 = vmatprep.mubr.bf16.mxu0 %v655
  %778 = vmatmul.mubr.bf16.gmra.mxu0 %v639
  %v779 = vpop.f32.mrf.mxu0
  %v780 = vadd.f32 0.0, %v779
  %v781 = vpop.f32.mrf.mxu0
  %v782 = vpop.f32.mrf.mxu0
  %v783 = vpop.f32.mrf.mxu0
  %784 = vdwg.mxu0
  %s785 = scalar_lea.vmem %s0, 168
  %v786 = vld [vmem:[%s785] sm:$0xff]
  %v787 = vld [vmem:[%s785 + $0x8] sm:$0xff]
  %v788 = vld [vmem:[%s785 + $0x10] sm:$0xff]
  %v789 = vld [vmem:[%s785 + $0x18] sm:$0xff]
  %v790 = vld [vmem:[%s785 + $0x20] sm:$0xff]
  %v791 = vld [vmem:[%s785 + $0x28] sm:$0xff]
  %v792 = vld [vmem:[%s785 + $0x30] sm:$0xff]
  %v800 = vunpack.c.l.b16 %v786
  %v801 = vunpack.c.h.b16 %v786
  %v802 = vunpack.c.l.b16 %v787
  %v803 = vunpack.c.h.b16 %v787
  %v804 = vunpack.c.l.b16 %v788
  %v805 = vunpack.c.h.b16 %v788
  %v806 = vunpack.c.l.b16 %v789
  %v807 = vunpack.c.h.b16 %v789
  %v808 = vunpack.c.l.b16 %v790
  %v809 = vunpack.c.h.b16 %v790
  %v810 = vunpack.c.l.b16 %v791
  %v811 = vunpack.c.h.b16 %v791
  %v812 = vunpack.c.l.b16 %v792
  %v813 = vunpack.c.h.b16 %v792
  %v814 = vpack.c.b16 %v802, %v800
  %v815 = vpack.c.b16 %v803, %v801
  %v816 = vpack.c.b16 %v806, %v804
  %v817 = vpack.c.b16 %v807, %v805
  %v818 = vpack.c.b16 %v810, %v808
  %v819 = vpack.c.b16 %v811, %v809
  %v820 = vpack.c.b16 %v812, %v812
  %v821 = vpack.c.b16 %v813, %v813
  %v827 = vsel %vm159, %v815, 0
  %v830 = vsel %vm159, %v817, 0
  %v833 = vsel %vm159, %v819, 0
  %v836 = vsel %vm159, %v821, 0
  %838 = vmatprep.subr.bf16.mxu0 0
  %839 = vmatpush1.bf16.msra.mxu0 %v146
  %840 = vmatprep.subr.bf16.mxu0 0
  %841 = vmatpush1.bf16.msra.mxu0 %v145
  %842 = vmatprep.subr.bf16.mxu0 0
  %843 = vmatpush1.bf16.msra.mxu0 %v144
  %844 = vmatprep.subr.bf16.mxu0 0
  %845 = vmatpush1.bf16.msra.mxu0 %v143
  %846 = vmatprep.subr.bf16.mxu0 0
  %847 = vmatpush1.bf16.msra.mxu0 %v142
  %848 = vmatprep.subr.bf16.mxu0 0
  %849 = vmatpush1.bf16.msra.mxu0 %v141
  %850 = vmatprep.subr.bf16.mxu0 0
  %851 = vmatpush1.bf16.msra.mxu0 %v140
  %852 = vmatprep.subr.bf16.mxu0 0
  %853 = vmatpush1.bf16.msra.mxu0 %v139
  %854 = vmatprep.subr.bf16.mxu0 0
  %855 = vmatpush2.bf16.msra.mxu0 0
  %856 = vmatprep.subr.bf16.mxu0 0
  %857 = vmatpush2.bf16.msra.mxu0 0
  %858 = vmatprep.subr.bf16.mxu0 0
  %859 = vmatpush2.bf16.msra.mxu0 0
  %860 = vmatprep.subr.bf16.mxu0 0
  %861 = vmatpush2.bf16.msra.mxu0 0
  %862 = vmatprep.subr.bf16.mxu0 0
  %863 = vmatpush2.bf16.msra.mxu0 0
  %864 = vmatprep.subr.bf16.mxu0 0
  %865 = vmatpush2.bf16.msra.mxu0 0
  %866 = vmatprep.subr.bf16.mxu0 0
  %867 = vmatpush2.bf16.msra.mxu0 %v148
  %868 = vmatprep.subr.bf16.mxu0 0
  %869 = vmatpush2.bf16.msra.mxu0 %v147
  %870 = vmatprep.mubr.bf16.mxu0 %v827
  %871 = vmatmul.mubr.bf16.gmra.mxu0 %v814
  %v872 = vpop.f32.mrf.mxu0
  %v873 = vadd.f32 0.0, %v872
  %v874 = vpop.f32.mrf.mxu0
  %v875 = vpop.f32.mrf.mxu0
  %v876 = vadd.f32 0.0, %v875
  %v877 = vpop.f32.mrf.mxu0
  %878 = vmatprep.mubr.bf16.mxu0 %v830
  %879 = vmatmul.mubr.bf16.gmra.mxu0 %v816
  %v880 = vpop.f32.mrf.mxu0
  %v881 = vadd.f32 0.0, %v880
  %v882 = vpop.f32.mrf.mxu0
  %v883 = vpop.f32.mrf.mxu0
  %v884 = vadd.f32 0.0, %v883
  %v885 = vpop.f32.mrf.mxu0
  %886 = vmatprep.mubr.bf16.mxu0 %v833
  %887 = vmatmul.mubr.bf16.gmra.mxu0 %v818
  %v888 = vpop.f32.mrf.mxu0
  %v889 = vadd.f32 0.0, %v888
  %v890 = vpop.f32.mrf.mxu0
  %v891 = vpop.f32.mrf.mxu0
  %v892 = vadd.f32 0.0, %v891
  %v893 = vpop.f32.mrf.mxu0
  %894 = vmatprep.mubr.bf16.mxu0 %v836
  %895 = vmatmul.mubr.bf16.gmra.mxu0 %v820
  %v896 = vpop.f32.mrf.mxu0
  %v897 = vadd.f32 0.0, %v896
  %v898 = vpop.f32.mrf.mxu0
  %v899 = vpop.f32.mrf.mxu0
  %v900 = vpop.f32.mrf.mxu0
  %901 = vdwg.mxu0
  %902 = vmatprep.subr.bf16.mxu0 0
  %903 = vmatpush1.bf16.msra.mxu0 %v304
  %904 = vmatprep.subr.bf16.mxu0 0
  %905 = vmatpush1.bf16.msra.mxu0 %v303
  %906 = vmatprep.subr.bf16.mxu0 0
  %907 = vmatpush1.bf16.msra.mxu0 %v302
  %908 = vmatprep.subr.bf16.mxu0 0
  %909 = vmatpush1.bf16.msra.mxu0 %v301
  %910 = vmatprep.subr.bf16.mxu0 0
  %911 = vmatpush1.bf16.msra.mxu0 %v300
  %912 = vmatprep.subr.bf16.mxu0 0
  %913 = vmatpush1.bf16.msra.mxu0 %v299
  %914 = vmatprep.subr.bf16.mxu0 0
  %915 = vmatpush1.bf16.msra.mxu0 %v298
  %916 = vmatprep.subr.bf16.mxu0 0
  %917 = vmatpush1.bf16.msra.mxu0 %v297
  %918 = vmatprep.subr.bf16.mxu0 0
  %919 = vmatpush2.bf16.msra.mxu0 0
  %920 = vmatprep.subr.bf16.mxu0 0
  %921 = vmatpush2.bf16.msra.mxu0 0
  %922 = vmatprep.subr.bf16.mxu0 0
  %923 = vmatpush2.bf16.msra.mxu0 0
  %924 = vmatprep.subr.bf16.mxu0 0
  %925 = vmatpush2.bf16.msra.mxu0 0
  %926 = vmatprep.subr.bf16.mxu0 0
  %927 = vmatpush2.bf16.msra.mxu0 0
  %928 = vmatprep.subr.bf16.mxu0 0
  %929 = vmatpush2.bf16.msra.mxu0 0
  %930 = vmatprep.subr.bf16.mxu0 0
  %931 = vmatpush2.bf16.msra.mxu0 %v306
  %932 = vmatprep.subr.bf16.mxu0 0
  %933 = vmatpush2.bf16.msra.mxu0 %v305
  %934 = vmatprep.mubr.bf16.mxu0 %v827
  %935 = vmatmul.mubr.bf16.gmra.mxu0 %v814
  %v936 = vpop.f32.mrf.mxu0
  %v937 = vadd.f32 0.0, %v936
  %v938 = vpop.f32.mrf.mxu0
  %v939 = vpop.f32.mrf.mxu0
  %v940 = vadd.f32 0.0, %v939
  %v941 = vpop.f32.mrf.mxu0
  %942 = vmatprep.mubr.bf16.mxu0 %v830
  %943 = vmatmul.mubr.bf16.gmra.mxu0 %v816
  %v944 = vpop.f32.mrf.mxu0
  %v945 = vadd.f32 0.0, %v944
  %v946 = vpop.f32.mrf.mxu0
  %v947 = vpop.f32.mrf.mxu0
  %v948 = vadd.f32 0.0, %v947
  %v949 = vpop.f32.mrf.mxu0
  %950 = vmatprep.mubr.bf16.mxu0 %v833
  %951 = vmatmul.mubr.bf16.gmra.mxu0 %v818
  %v952 = vpop.f32.mrf.mxu0
  %v953 = vadd.f32 0.0, %v952
  %v954 = vpop.f32.mrf.mxu0
  %v955 = vpop.f32.mrf.mxu0
  %v956 = vadd.f32 0.0, %v955
  %v957 = vpop.f32.mrf.mxu0
  %958 = vmatprep.mubr.bf16.mxu0 %v836
  %959 = vmatmul.mubr.bf16.gmra.mxu0 %v820
  %v960 = vpop.f32.mrf.mxu0
  %v961 = vadd.f32 0.0, %v960
  %v962 = vpop.f32.mrf.mxu0
  %v963 = vpop.f32.mrf.mxu0
  %v964 = vpop.f32.mrf.mxu0
  %965 = vdwg.mxu0
  %v966 = vmax.f32 %v692, %v756
  %v967 = vmax.f32 %v695, %v759
  %v968 = vmax.f32 %v700, %v764
  %v969 = vmax.f32 %v703, %v767
  %v970 = vmax.f32 %v708, %v772
  %v971 = vmax.f32 %v711, %v775
  %v972 = vmax.f32 %v716, %v780
  %v973 = vmax.f32 %v873, %v937
  %v974 = vmax.f32 %v876, %v940
  %v975 = vmax.f32 %v881, %v945
  %v976 = vmax.f32 %v884, %v948
  %v977 = vmax.f32 %v889, %v953
  %v978 = vmax.f32 %v892, %v956
  %v979 = vmax.f32 %v897, %v961
  %v980 = vmax.f32 %v966, %v973
  %v981 = vmax.f32 %v967, %v974
  %v982 = vmax.f32 %v968, %v975
  %v983 = vmax.f32 %v969, %v976
  %v984 = vmax.f32 %v970, %v977
  %v985 = vmax.f32 %v971, %v978
  %v986 = vmax.f32 %v972, %v979
  %v987 = vadd.f32 %v980, %v588
  %v988 = vadd.f32 %v981, %v588
  %v989 = vadd.f32 %v982, %v588
  %v990 = vadd.f32 %v983, %v588
  %v991 = vadd.f32 %v984, %v588
  %v992 = vadd.f32 %v985, %v588
  %v993 = vadd.f32 %v986, %v588
  %v994 = vmax.f32 %v987, 0.0
  %v995 = vmax.f32 %v988, 0.0
  %v996 = vmax.f32 %v989, 0.0
  %v997 = vmax.f32 %v990, 0.0
  %v998 = vmax.f32 %v991, 0.0
  %v999 = vmax.f32 %v992, 0.0
  %v1000 = vmax.f32 %v993, 0.0
  %v1001 = vpack.c.bf16 %v598, %v597
  %v1002 = vpack.c.bf16 %v995, %v994
  %v1003 = vpack.c.bf16 %v599, %v598
  %v1004 = vpack.c.bf16 %v996, %v995
  %v1005 = vpack.c.bf16 %v600, %v599
  %v1006 = vpack.c.bf16 %v997, %v996
  %v1007 = vpack.c.bf16 %v601, %v600
  %v1008 = vpack.c.bf16 %v998, %v997
  %v1009 = vpack.c.bf16 %v602, %v601
  %v1010 = vpack.c.bf16 %v601, %v601
  %v1011 = vpack.c.bf16 %v998, %v998
  %v1012 = vpack.c.bf16 %v602, %v602
  %v1013 = vpack.c.bf16 %v999, %v999
  %v1014 = vpack.c.bf16 %v603, %v603
  %v1015 = vld [vmem:[%s3] sm:$0xf]
  %v1016 = vld [vmem:[%s3 + $0x4] sm:$0xf]
  %v1017 = vld [vmem:[%s3 + $0x8] sm:$0xf]
  %v1018 = vld [vmem:[%s3 + $0xc] sm:$0xf]
  %v1019 = vld [vmem:[%s3 + $0x10] sm:$0xf]
  %v1020 = vld [vmem:[%s3 + $0x14] sm:$0xf]
  %v1021 = vld [vmem:[%s3 + $0x18] sm:$0xf]
  %v1022 = vld [vmem:[%s3 + $0x1c] sm:$0xf]
  %v1023 = vld [vmem:[%s3 + $0x20] sm:$0xf]
  %v1024 = vld [vmem:[%s3 + $0x24] sm:$0xf]
  %v1025 = vld [vmem:[%s3 + $0x28] sm:$0xf]
  %v1026 = vld [vmem:[%s3 + $0x2c] sm:$0xf]
  %v1027 = vld [vmem:[%s3 + $0x30] sm:$0xf]
  %v1028 = vld [vmem:[%s3 + $0x34] sm:$0xf]
  %v1029 = vld [vmem:[%s3 + $0x38] sm:$0xf]
  %v1030 = vld [vmem:[%s3 + $0x3c] sm:$0xf]
  %v1031 = vld [vmem:[%s3 + $0x40] sm:$0xf]
  %v1032 = vld [vmem:[%s3 + $0x44] sm:$0xf]
  %v1033 = vld [vmem:[%s3 + $0x48] sm:$0xf]
  %v1034 = vld [vmem:[%s3 + $0x4c] sm:$0xf]
  %v1035 = vld [vmem:[%s3 + $0x50] sm:$0xf]
  %v1036 = vld [vmem:[%s3 + $0x54] sm:$0xf]
  %v1037 = vld [vmem:[%s3 + $0x58] sm:$0xf]
  %v1038 = vld [vmem:[%s3 + $0x5c] sm:$0xf]
  %v1039 = vld [vmem:[%s3 + $0x60] sm:$0xf]
  %v1040 = vld [vmem:[%s3 + $0x64] sm:$0xf]
  %v1041 = vld [vmem:[%s3 + $0x68] sm:$0xf]
  %v1042 = vld [vmem:[%s3 + $0x6c] sm:$0xf]
  %v1043 = vld [vmem:[%s3 + $0x70] sm:$0xf]
  %v1044 = vld [vmem:[%s3 + $0x74] sm:$0xf]
  %v1045 = vld [vmem:[%s3 + $0x78] sm:$0xf]
  %v1046 = vld [vmem:[%s3 + $0x7c] sm:$0xf]
  %v1047 = vld [vmem:[%s3 + $0x80] sm:$0xf]
  %v1048 = vld [vmem:[%s3 + $0x84] sm:$0xf]
  %v1049 = vld [vmem:[%s3 + $0x88] sm:$0xf]
  %v1050 = vld [vmem:[%s3 + $0x8c] sm:$0xf]
  %v1051 = vld [vmem:[%s3 + $0x90] sm:$0xf]
  %v1052 = vld [vmem:[%s3 + $0x94] sm:$0xf]
  %v1053 = vld [vmem:[%s3 + $0x98] sm:$0xf]
  %v1054 = vld [vmem:[%s3 + $0x9c] sm:$0xf]
  %v1055 = vld [vmem:[%s3 + $0xa0] sm:$0xf]
  %v1056 = vld [vmem:[%s3 + $0xa4] sm:$0xf]
  %v1057 = vld [vmem:[%s3 + $0xa8] sm:$0xf]
  %v1058 = vld [vmem:[%s3 + $0xac] sm:$0xf]
  %v1059 = vld [vmem:[%s3 + $0xb0] sm:$0xf]
  %v1060 = vld [vmem:[%s3 + $0xb4] sm:$0xf]
  %v1061 = vld [vmem:[%s3 + $0xb8] sm:$0xf]
  %v1062 = vld [vmem:[%s3 + $0xbc] sm:$0xf]
  %v1063 = vld [vmem:[%s3 + $0xc0] sm:$0xf]
  %v1064 = vld [vmem:[%s3 + $0xc4] sm:$0xf]
  %v1065 = vld [vmem:[%s3 + $0xc8] sm:$0xf]
  %v1066 = vld [vmem:[%s3 + $0xcc] sm:$0xf]
  %v1067 = vld [vmem:[%s3 + $0xd0] sm:$0xf]
  %v1068 = vld [vmem:[%s3 + $0xd4] sm:$0xf]
  %v1069 = vld [vmem:[%s3 + $0xd8] sm:$0xf]
  %v1070 = vld [vmem:[%s3 + $0xdc] sm:$0xf]
  %v1071 = vld [vmem:[%s3 + $0xe0] sm:$0xf]
  %v1072 = vld [vmem:[%s3 + $0xe4] sm:$0xf]
  %v1073 = vld [vmem:[%s3 + $0xe8] sm:$0xf]
  %v1074 = vld [vmem:[%s3 + $0xec] sm:$0xf]
  %v1075 = vld [vmem:[%s3 + $0xf0] sm:$0xf]
  %v1076 = vld [vmem:[%s3 + $0xf4] sm:$0xf]
  %v1077 = vld [vmem:[%s3 + $0xf8] sm:$0xf]
  %v1078 = vld [vmem:[%s3 + $0xfc] sm:$0xf]
  %v1079 = vld [vmem:[%s3 + $0x100] sm:$0xf]
  %v1080 = vld [vmem:[%s3 + $0x104] sm:$0xf]
  %v1081 = vld [vmem:[%s3 + $0x108] sm:$0xf]
  %v1082 = vld [vmem:[%s3 + $0x10c] sm:$0xf]
  %v1083 = vld [vmem:[%s3 + $0x110] sm:$0xf]
  %v1084 = vld [vmem:[%s3 + $0x114] sm:$0xf]
  %v1085 = vld [vmem:[%s3 + $0x118] sm:$0xf]
  %v1086 = vld [vmem:[%s3 + $0x11c] sm:$0xf]
  %v1087 = vld [vmem:[%s3 + $0x120] sm:$0xf]
  %v1088 = vld [vmem:[%s3 + $0x124] sm:$0xf]
  %v1089 = vld [vmem:[%s3 + $0x128] sm:$0xf]
  %v1090 = vld [vmem:[%s3 + $0x12c] sm:$0xf]
  %v1091 = vld [vmem:[%s3 + $0x130] sm:$0xf]
  %v1092 = vld [vmem:[%s3 + $0x134] sm:$0xf]
  %v1093 = vld [vmem:[%s3 + $0x138] sm:$0xf]
  %v1094 = vld [vmem:[%s3 + $0x13c] sm:$0xf]
  %v1175 = vunpack.c.l.b16 %v1015
  %v1176 = vunpack.c.l.b16 %v1016
  %v1177 = vunpack.c.l.b16 %v1017
  %v1178 = vunpack.c.l.b16 %v1018
  %v1179 = vunpack.c.l.b16 %v1019
  %v1180 = vunpack.c.l.b16 %v1020
  %v1181 = vunpack.c.l.b16 %v1021
  %v1182 = vunpack.c.l.b16 %v1022
  %v1183 = vunpack.c.l.b16 %v1023
  %v1184 = vunpack.c.l.b16 %v1024
  %v1185 = vunpack.c.l.b16 %v1025
  %v1186 = vunpack.c.l.b16 %v1026
  %v1187 = vunpack.c.l.b16 %v1027
  %v1188 = vunpack.c.l.b16 %v1028
  %v1189 = vunpack.c.l.b16 %v1029
  %v1190 = vunpack.c.l.b16 %v1030
  %v1191 = vunpack.c.l.b16 %v1031
  %v1192 = vunpack.c.l.b16 %v1032
  %v1193 = vunpack.c.l.b16 %v1033
  %v1194 = vunpack.c.l.b16 %v1034
  %v1195 = vunpack.c.l.b16 %v1035
  %v1196 = vunpack.c.l.b16 %v1036
  %v1197 = vunpack.c.l.b16 %v1037
  %v1198 = vunpack.c.l.b16 %v1038
  %v1199 = vunpack.c.l.b16 %v1039
  %v1200 = vunpack.c.l.b16 %v1040
  %v1201 = vunpack.c.l.b16 %v1041
  %v1202 = vunpack.c.l.b16 %v1042
  %v1203 = vunpack.c.l.b16 %v1043
  %v1204 = vunpack.c.l.b16 %v1044
  %v1205 = vunpack.c.l.b16 %v1045
  %v1206 = vunpack.c.l.b16 %v1046
  %v1207 = vunpack.c.l.b16 %v1047
  %v1208 = vunpack.c.l.b16 %v1048
  %v1209 = vunpack.c.l.b16 %v1049
  %v1210 = vunpack.c.l.b16 %v1050
  %v1211 = vunpack.c.l.b16 %v1051
  %v1212 = vunpack.c.l.b16 %v1052
  %v1213 = vunpack.c.l.b16 %v1053
  %v1214 = vunpack.c.l.b16 %v1054
  %v1215 = vunpack.c.l.b16 %v1055
  %v1216 = vunpack.c.l.b16 %v1056
  %v1217 = vunpack.c.l.b16 %v1057
  %v1218 = vunpack.c.l.b16 %v1058
  %v1219 = vunpack.c.l.b16 %v1059
  %v1220 = vunpack.c.l.b16 %v1060
  %v1221 = vunpack.c.l.b16 %v1061
  %v1222 = vunpack.c.l.b16 %v1062
  %v1223 = vunpack.c.l.b16 %v1063
  %v1224 = vunpack.c.l.b16 %v1064
  %v1225 = vunpack.c.l.b16 %v1065
  %v1226 = vunpack.c.l.b16 %v1066
  %v1227 = vunpack.c.l.b16 %v1067
  %v1228 = vunpack.c.l.b16 %v1068
  %v1229 = vunpack.c.l.b16 %v1069
  %v1230 = vunpack.c.l.b16 %v1070
  %v1231 = vunpack.c.l.b16 %v1071
  %v1232 = vunpack.c.l.b16 %v1072
  %v1233 = vunpack.c.l.b16 %v1073
  %v1234 = vunpack.c.l.b16 %v1074
  %v1235 = vunpack.c.l.b16 %v1075
  %v1236 = vunpack.c.l.b16 %v1076
  %v1237 = vunpack.c.l.b16 %v1077
  %v1238 = vunpack.c.l.b16 %v1078
  %v1239 = vunpack.c.l.b16 %v1079
  %v1240 = vunpack.c.l.b16 %v1080
  %v1241 = vunpack.c.l.b16 %v1081
  %v1242 = vunpack.c.l.b16 %v1082
  %v1243 = vunpack.c.l.b16 %v1083
  %v1244 = vunpack.c.l.b16 %v1084
  %v1245 = vunpack.c.l.b16 %v1085
  %v1246 = vunpack.c.l.b16 %v1086
  %v1247 = vunpack.c.l.b16 %v1087
  %v1248 = vunpack.c.l.b16 %v1088
  %v1249 = vunpack.c.l.b16 %v1089
  %v1250 = vunpack.c.l.b16 %v1090
  %v1251 = vunpack.c.l.b16 %v1091
  %v1252 = vunpack.c.l.b16 %v1092
  %v1253 = vunpack.c.l.b16 %v1093
  %v1254 = vunpack.c.l.b16 %v1094
  %v1255 = vpack.c.b16 %v1176, %v1175
  %v1256 = vpack.c.b16 %v1178, %v1177
  %v1257 = vpack.c.b16 %v1180, %v1179
  %v1258 = vpack.c.b16 %v1182, %v1181
  %v1259 = vpack.c.b16 %v1184, %v1183
  %v1260 = vpack.c.b16 %v1186, %v1185
  %v1261 = vpack.c.b16 %v1188, %v1187
  %v1262 = vpack.c.b16 %v1190, %v1189
  %v1263 = vpack.c.b16 %v1192, %v1191
  %v1264 = vpack.c.b16 %v1194, %v1193
  %v1265 = vpack.c.b16 %v1196, %v1195
  %v1266 = vpack.c.b16 %v1198, %v1197
  %v1267 = vpack.c.b16 %v1200, %v1199
  %v1268 = vpack.c.b16 %v1202, %v1201
  %v1269 = vpack.c.b16 %v1204, %v1203
  %v1270 = vpack.c.b16 %v1206, %v1205
  %v1271 = vpack.c.b16 %v1208, %v1207
  %v1272 = vpack.c.b16 %v1210, %v1209
  %v1273 = vpack.c.b16 %v1212, %v1211
  %v1274 = vpack.c.b16 %v1214, %v1213
  %v1275 = vpack.c.b16 %v1216, %v1215
  %v1276 = vpack.c.b16 %v1218, %v1217
  %v1277 = vpack.c.b16 %v1220, %v1219
  %v1278 = vpack.c.b16 %v1222, %v1221
  %v1279 = vpack.c.b16 %v1224, %v1223
  %v1280 = vpack.c.b16 %v1226, %v1225
  %v1281 = vpack.c.b16 %v1228, %v1227
  %v1282 = vpack.c.b16 %v1230, %v1229
  %v1283 = vpack.c.b16 %v1232, %v1231
  %v1284 = vpack.c.b16 %v1234, %v1233
  %v1285 = vpack.c.b16 %v1236, %v1235
  %v1286 = vpack.c.b16 %v1238, %v1237
  %v1287 = vpack.c.b16 %v1240, %v1239
  %v1288 = vpack.c.b16 %v1242, %v1241
  %v1289 = vpack.c.b16 %v1244, %v1243
  %v1290 = vpack.c.b16 %v1246, %v1245
  %v1291 = vpack.c.b16 %v1248, %v1247
  %v1292 = vpack.c.b16 %v1250, %v1249
  %v1293 = vpack.c.b16 %v1252, %v1251
  %v1294 = vpack.c.b16 %v1254, %v1253
  %1335 = vmatprep.subr.bf16.mxu0 0
  %1336 = vmatpush1.bf16.msra.mxu0 %v1262
  %1337 = vmatprep.subr.bf16.mxu0 0
  %1338 = vmatpush1.bf16.msra.mxu0 %v1261
  %1339 = vmatprep.subr.bf16.mxu0 0
  %1340 = vmatpush1.bf16.msra.mxu0 %v1260
  %1341 = vmatprep.subr.bf16.mxu0 0
  %1342 = vmatpush1.bf16.msra.mxu0 %v1259
  %1343 = vmatprep.subr.bf16.mxu0 0
  %1344 = vmatpush1.bf16.msra.mxu0 %v1258
  %1345 = vmatprep.subr.bf16.mxu0 0
  %1346 = vmatpush1.bf16.msra.mxu0 %v1257
  %1347 = vmatprep.subr.bf16.mxu0 0
  %1348 = vmatpush1.bf16.msra.mxu0 %v1256
  %1349 = vmatprep.subr.bf16.mxu0 0
  %1350 = vmatpush1.bf16.msra.mxu0 %v1255
  %1351 = vmatprep.subr.bf16.mxu0 0
  %1352 = vmatpush2.bf16.msra.mxu0 %v1270
  %1353 = vmatprep.subr.bf16.mxu0 0
  %1354 = vmatpush2.bf16.msra.mxu0 %v1269
  %1355 = vmatprep.subr.bf16.mxu0 0
  %1356 = vmatpush2.bf16.msra.mxu0 %v1268
  %1357 = vmatprep.subr.bf16.mxu0 0
  %1358 = vmatpush2.bf16.msra.mxu0 %v1267
  %1359 = vmatprep.subr.bf16.mxu0 0
  %1360 = vmatpush2.bf16.msra.mxu0 %v1266
  %1361 = vmatprep.subr.bf16.mxu0 0
  %1362 = vmatpush2.bf16.msra.mxu0 %v1265
  %1363 = vmatprep.subr.bf16.mxu0 0
  %1364 = vmatpush2.bf16.msra.mxu0 %v1264
  %1365 = vmatprep.subr.bf16.mxu0 0
  %1366 = vmatpush2.bf16.msra.mxu0 %v1263
  %1367 = vmatprep.mubr.bf16.mxu0 %v1002
  %1368 = vmatmul.mubr.bf16.gmra.mxu0 %v1001
  %v1369 = vpop.f32.mrf.mxu0
  %v1370 = vadd.f32 0.0, %v1369
  %v1371 = vpop.f32.mrf.mxu0
  %v1372 = vpop.f32.mrf.mxu0
  %v1373 = vadd.f32 0.0, %v1372
  %v1374 = vpop.f32.mrf.mxu0
  %1375 = vmatprep.mubr.bf16.mxu0 %v1006
  %1376 = vmatmul.mubr.bf16.gmra.mxu0 %v1005
  %v1377 = vpop.f32.mrf.mxu0
  %v1378 = vadd.f32 0.0, %v1377
  %v1379 = vpop.f32.mrf.mxu0
  %v1380 = vpop.f32.mrf.mxu0
  %v1381 = vadd.f32 0.0, %v1380
  %v1382 = vpop.f32.mrf.mxu0
  %1383 = vmatprep.mubr.bf16.mxu0 %v1011
  %1384 = vmatmul.mubr.bf16.gmra.mxu0 %v1010
  %v1385 = vpop.f32.mrf.mxu0
  %v1386 = vadd.f32 0.0, %v1385
  %v1387 = vpop.f32.mrf.mxu0
  %v1388 = vpop.f32.mrf.mxu0
  %v1389 = vpop.f32.mrf.mxu0
  %1390 = vdwg.mxu0
  %1391 = vmatprep.subr.bf16.mxu0 0
  %1392 = vmatpush1.bf16.msra.mxu0 %v1278
  %1393 = vmatprep.subr.bf16.mxu0 0
  %1394 = vmatpush1.bf16.msra.mxu0 %v1277
  %1395 = vmatprep.subr.bf16.mxu0 0
  %1396 = vmatpush1.bf16.msra.mxu0 %v1276
  %1397 = vmatprep.subr.bf16.mxu0 0
  %1398 = vmatpush1.bf16.msra.mxu0 %v1275
  %1399 = vmatprep.subr.bf16.mxu0 0
  %1400 = vmatpush1.bf16.msra.mxu0 %v1274
  %1401 = vmatprep.subr.bf16.mxu0 0
  %1402 = vmatpush1.bf16.msra.mxu0 %v1273
  %1403 = vmatprep.subr.bf16.mxu0 0
  %1404 = vmatpush1.bf16.msra.mxu0 %v1272
  %1405 = vmatprep.subr.bf16.mxu0 0
  %1406 = vmatpush1.bf16.msra.mxu0 %v1271
  %1407 = vmatprep.subr.bf16.mxu0 0
  %1408 = vmatpush2.bf16.msra.mxu0 %v1286
  %1409 = vmatprep.subr.bf16.mxu0 0
  %1410 = vmatpush2.bf16.msra.mxu0 %v1285
  %1411 = vmatprep.subr.bf16.mxu0 0
  %1412 = vmatpush2.bf16.msra.mxu0 %v1284
  %1413 = vmatprep.subr.bf16.mxu0 0
  %1414 = vmatpush2.bf16.msra.mxu0 %v1283
  %1415 = vmatprep.subr.bf16.mxu0 0
  %1416 = vmatpush2.bf16.msra.mxu0 %v1282
  %1417 = vmatprep.subr.bf16.mxu0 0
  %1418 = vmatpush2.bf16.msra.mxu0 %v1281
  %1419 = vmatprep.subr.bf16.mxu0 0
  %1420 = vmatpush2.bf16.msra.mxu0 %v1280
  %1421 = vmatprep.subr.bf16.mxu0 0
  %1422 = vmatpush2.bf16.msra.mxu0 %v1279
  %1423 = vmatprep.mubr.bf16.mxu0 %v1004
  %1424 = vmatmul.mubr.bf16.gmra.mxu0 %v1003
  %v1425 = vpop.f32.mrf.mxu0
  %v1426 = vadd.f32 %v1370, %v1425
  %v1427 = vpop.f32.mrf.mxu0
  %v1428 = vpop.f32.mrf.mxu0
  %v1429 = vadd.f32 %v1373, %v1428
  %v1430 = vpop.f32.mrf.mxu0
  %1431 = vmatprep.mubr.bf16.mxu0 %v1008
  %1432 = vmatmul.mubr.bf16.gmra.mxu0 %v1007
  %v1433 = vpop.f32.mrf.mxu0
  %v1434 = vadd.f32 %v1378, %v1433
  %v1435 = vpop.f32.mrf.mxu0
  %v1436 = vpop.f32.mrf.mxu0
  %v1437 = vadd.f32 %v1381, %v1436
  %v1438 = vpop.f32.mrf.mxu0
  %1439 = vmatprep.mubr.bf16.mxu0 %v1013
  %1440 = vmatmul.mubr.bf16.gmra.mxu0 %v1012
  %v1441 = vpop.f32.mrf.mxu0
  %v1442 = vadd.f32 %v1386, %v1441
  %v1443 = vpop.f32.mrf.mxu0
  %v1444 = vpop.f32.mrf.mxu0
  %v1445 = vpop.f32.mrf.mxu0
  %1446 = vdwg.mxu0
  %1447 = vmatprep.subr.bf16.mxu0 0
  %1448 = vmatpush1.bf16.msra.mxu0 %v1294
  %1449 = vmatprep.subr.bf16.mxu0 0
  %1450 = vmatpush1.bf16.msra.mxu0 %v1293
  %1451 = vmatprep.subr.bf16.mxu0 0
  %1452 = vmatpush1.bf16.msra.mxu0 %v1292
  %1453 = vmatprep.subr.bf16.mxu0 0
  %1454 = vmatpush1.bf16.msra.mxu0 %v1291
  %1455 = vmatprep.subr.bf16.mxu0 0
  %1456 = vmatpush1.bf16.msra.mxu0 %v1290
  %1457 = vmatprep.subr.bf16.mxu0 0
  %1458 = vmatpush1.bf16.msra.mxu0 %v1289
  %1459 = vmatprep.subr.bf16.mxu0 0
  %1460 = vmatpush1.bf16.msra.mxu0 %v1288
  %1461 = vmatprep.subr.bf16.mxu0 0
  %1462 = vmatpush1.bf16.msra.mxu0 %v1287
  %1463 = vmatprep.subr.bf16.mxu0 0
  %1464 = vmatpush2.bf16.msra.mxu0 0
  %1465 = vmatprep.subr.bf16.mxu0 0
  %1466 = vmatpush2.bf16.msra.mxu0 0
  %1467 = vmatprep.subr.bf16.mxu0 0
  %1468 = vmatpush2.bf16.msra.mxu0 0
  %1469 = vmatprep.subr.bf16.mxu0 0
  %1470 = vmatpush2.bf16.msra.mxu0 0
  %1471 = vmatprep.subr.bf16.mxu0 0
  %1472 = vmatpush2.bf16.msra.mxu0 0
  %1473 = vmatprep.subr.bf16.mxu0 0
  %1474 = vmatpush2.bf16.msra.mxu0 0
  %1475 = vmatprep.subr.bf16.mxu0 0
  %1476 = vmatpush2.bf16.msra.mxu0 0
  %1477 = vmatprep.subr.bf16.mxu0 0
  %1478 = vmatpush2.bf16.msra.mxu0 0
  %1479 = vmatprep.mubr.bf16.mxu0 0
  %1480 = vmatmul.mubr.bf16.gmra.mxu0 %v1005
  %v1481 = vpop.f32.mrf.mxu0
  %v1482 = vadd.f32 %v1426, %v1481
  %v1483 = vpop.f32.mrf.mxu0
  %v1484 = vpop.f32.mrf.mxu0
  %v1485 = vadd.f32 %v1429, %v1484
  %v1486 = vpop.f32.mrf.mxu0
  %1487 = vmatprep.mubr.bf16.mxu0 0
  %1488 = vmatmul.mubr.bf16.gmra.mxu0 %v1009
  %v1489 = vpop.f32.mrf.mxu0
  %v1490 = vadd.f32 %v1434, %v1489
  %v1491 = vpop.f32.mrf.mxu0
  %v1492 = vpop.f32.mrf.mxu0
  %v1493 = vadd.f32 %v1437, %v1492
  %v1494 = vpop.f32.mrf.mxu0
  %1495 = vmatprep.mubr.bf16.mxu0 0
  %1496 = vmatmul.mubr.bf16.gmra.mxu0 %v1014
  %v1497 = vpop.f32.mrf.mxu0
  %v1498 = vadd.f32 %v1442, %v1497
  %v1499 = vpop.f32.mrf.mxu0
  %v1500 = vpop.f32.mrf.mxu0
  %v1501 = vpop.f32.mrf.mxu0
  %1502 = vdwg.mxu0
  %s1503 = scalar_lea.vmem %s3, 320
  %v1504 = vld [vmem:[%s1503] sm:$0xf]
  %v1505 = vld [vmem:[%s1503 + $0x4] sm:$0xf]
  %v1506 = vld [vmem:[%s1503 + $0x8] sm:$0xf]
  %v1507 = vld [vmem:[%s1503 + $0xc] sm:$0xf]
  %v1508 = vld [vmem:[%s1503 + $0x10] sm:$0xf]
  %v1509 = vld [vmem:[%s1503 + $0x14] sm:$0xf]
  %v1510 = vld [vmem:[%s1503 + $0x18] sm:$0xf]
  %v1511 = vld [vmem:[%s1503 + $0x1c] sm:$0xf]
  %v1512 = vld [vmem:[%s1503 + $0x20] sm:$0xf]
  %v1513 = vld [vmem:[%s1503 + $0x24] sm:$0xf]
  %v1514 = vld [vmem:[%s1503 + $0x28] sm:$0xf]
  %v1515 = vld [vmem:[%s1503 + $0x2c] sm:$0xf]
  %v1516 = vld [vmem:[%s1503 + $0x30] sm:$0xf]
  %v1517 = vld [vmem:[%s1503 + $0x34] sm:$0xf]
  %v1518 = vld [vmem:[%s1503 + $0x38] sm:$0xf]
  %v1519 = vld [vmem:[%s1503 + $0x3c] sm:$0xf]
  %v1520 = vld [vmem:[%s1503 + $0x40] sm:$0xf]
  %v1521 = vld [vmem:[%s1503 + $0x44] sm:$0xf]
  %v1522 = vld [vmem:[%s1503 + $0x48] sm:$0xf]
  %v1523 = vld [vmem:[%s1503 + $0x4c] sm:$0xf]
  %v1524 = vld [vmem:[%s1503 + $0x50] sm:$0xf]
  %v1525 = vld [vmem:[%s1503 + $0x54] sm:$0xf]
  %v1526 = vld [vmem:[%s1503 + $0x58] sm:$0xf]
  %v1527 = vld [vmem:[%s1503 + $0x5c] sm:$0xf]
  %v1528 = vld [vmem:[%s1503 + $0x60] sm:$0xf]
  %v1529 = vld [vmem:[%s1503 + $0x64] sm:$0xf]
  %v1530 = vld [vmem:[%s1503 + $0x68] sm:$0xf]
  %v1531 = vld [vmem:[%s1503 + $0x6c] sm:$0xf]
  %v1532 = vld [vmem:[%s1503 + $0x70] sm:$0xf]
  %v1533 = vld [vmem:[%s1503 + $0x74] sm:$0xf]
  %v1534 = vld [vmem:[%s1503 + $0x78] sm:$0xf]
  %v1535 = vld [vmem:[%s1503 + $0x7c] sm:$0xf]
  %v1536 = vld [vmem:[%s1503 + $0x80] sm:$0xf]
  %v1537 = vld [vmem:[%s1503 + $0x84] sm:$0xf]
  %v1538 = vld [vmem:[%s1503 + $0x88] sm:$0xf]
  %v1539 = vld [vmem:[%s1503 + $0x8c] sm:$0xf]
  %v1540 = vld [vmem:[%s1503 + $0x90] sm:$0xf]
  %v1541 = vld [vmem:[%s1503 + $0x94] sm:$0xf]
  %v1542 = vld [vmem:[%s1503 + $0x98] sm:$0xf]
  %v1543 = vld [vmem:[%s1503 + $0x9c] sm:$0xf]
  %v1544 = vld [vmem:[%s1503 + $0xa0] sm:$0xf]
  %v1545 = vld [vmem:[%s1503 + $0xa4] sm:$0xf]
  %v1546 = vld [vmem:[%s1503 + $0xa8] sm:$0xf]
  %v1547 = vld [vmem:[%s1503 + $0xac] sm:$0xf]
  %v1548 = vld [vmem:[%s1503 + $0xb0] sm:$0xf]
  %v1549 = vld [vmem:[%s1503 + $0xb4] sm:$0xf]
  %v1550 = vld [vmem:[%s1503 + $0xb8] sm:$0xf]
  %v1551 = vld [vmem:[%s1503 + $0xbc] sm:$0xf]
  %v1552 = vld [vmem:[%s1503 + $0xc0] sm:$0xf]
  %v1553 = vld [vmem:[%s1503 + $0xc4] sm:$0xf]
  %v1554 = vld [vmem:[%s1503 + $0xc8] sm:$0xf]
  %v1555 = vld [vmem:[%s1503 + $0xcc] sm:$0xf]
  %v1556 = vld [vmem:[%s1503 + $0xd0] sm:$0xf]
  %v1557 = vld [vmem:[%s1503 + $0xd4] sm:$0xf]
  %v1558 = vld [vmem:[%s1503 + $0xd8] sm:$0xf]
  %v1559 = vld [vmem:[%s1503 + $0xdc] sm:$0xf]
  %v1560 = vld [vmem:[%s1503 + $0xe0] sm:$0xf]
  %v1561 = vld [vmem:[%s1503 + $0xe4] sm:$0xf]
  %v1562 = vld [vmem:[%s1503 + $0xe8] sm:$0xf]
  %v1563 = vld [vmem:[%s1503 + $0xec] sm:$0xf]
  %v1564 = vld [vmem:[%s1503 + $0xf0] sm:$0xf]
  %v1565 = vld [vmem:[%s1503 + $0xf4] sm:$0xf]
  %v1566 = vld [vmem:[%s1503 + $0xf8] sm:$0xf]
  %v1567 = vld [vmem:[%s1503 + $0xfc] sm:$0xf]
  %v1568 = vld [vmem:[%s1503 + $0x100] sm:$0xf]
  %v1569 = vld [vmem:[%s1503 + $0x104] sm:$0xf]
  %v1570 = vld [vmem:[%s1503 + $0x108] sm:$0xf]
  %v1571 = vld [vmem:[%s1503 + $0x10c] sm:$0xf]
  %v1572 = vld [vmem:[%s1503 + $0x110] sm:$0xf]
  %v1573 = vld [vmem:[%s1503 + $0x114] sm:$0xf]
  %v1574 = vld [vmem:[%s1503 + $0x118] sm:$0xf]
  %v1575 = vld [vmem:[%s1503 + $0x11c] sm:$0xf]
  %v1576 = vld [vmem:[%s1503 + $0x120] sm:$0xf]
  %v1577 = vld [vmem:[%s1503 + $0x124] sm:$0xf]
  %v1578 = vld [vmem:[%s1503 + $0x128] sm:$0xf]
  %v1579 = vld [vmem:[%s1503 + $0x12c] sm:$0xf]
  %v1580 = vld [vmem:[%s1503 + $0x130] sm:$0xf]
  %v1581 = vld [vmem:[%s1503 + $0x134] sm:$0xf]
  %v1582 = vld [vmem:[%s1503 + $0x138] sm:$0xf]
  %v1583 = vld [vmem:[%s1503 + $0x13c] sm:$0xf]
  %v1664 = vunpack.c.l.b16 %v1504
  %v1665 = vunpack.c.l.b16 %v1505
  %v1666 = vunpack.c.l.b16 %v1506
  %v1667 = vunpack.c.l.b16 %v1507
  %v1668 = vunpack.c.l.b16 %v1508
  %v1669 = vunpack.c.l.b16 %v1509
  %v1670 = vunpack.c.l.b16 %v1510
  %v1671 = vunpack.c.l.b16 %v1511
  %v1672 = vunpack.c.l.b16 %v1512
  %v1673 = vunpack.c.l.b16 %v1513
  %v1674 = vunpack.c.l.b16 %v1514
  %v1675 = vunpack.c.l.b16 %v1515
  %v1676 = vunpack.c.l.b16 %v1516
  %v1677 = vunpack.c.l.b16 %v1517
  %v1678 = vunpack.c.l.b16 %v1518
  %v1679 = vunpack.c.l.b16 %v1519
  %v1680 = vunpack.c.l.b16 %v1520
  %v1681 = vunpack.c.l.b16 %v1521
  %v1682 = vunpack.c.l.b16 %v1522
  %v1683 = vunpack.c.l.b16 %v1523
  %v1684 = vunpack.c.l.b16 %v1524
  %v1685 = vunpack.c.l.b16 %v1525
  %v1686 = vunpack.c.l.b16 %v1526
  %v1687 = vunpack.c.l.b16 %v1527
  %v1688 = vunpack.c.l.b16 %v1528
  %v1689 = vunpack.c.l.b16 %v1529
  %v1690 = vunpack.c.l.b16 %v1530
  %v1691 = vunpack.c.l.b16 %v1531
  %v1692 = vunpack.c.l.b16 %v1532
  %v1693 = vunpack.c.l.b16 %v1533
  %v1694 = vunpack.c.l.b16 %v1534
  %v1695 = vunpack.c.l.b16 %v1535
  %v1696 = vunpack.c.l.b16 %v1536
  %v1697 = vunpack.c.l.b16 %v1537
  %v1698 = vunpack.c.l.b16 %v1538
  %v1699 = vunpack.c.l.b16 %v1539
  %v1700 = vunpack.c.l.b16 %v1540
  %v1701 = vunpack.c.l.b16 %v1541
  %v1702 = vunpack.c.l.b16 %v1542
  %v1703 = vunpack.c.l.b16 %v1543
  %v1704 = vunpack.c.l.b16 %v1544
  %v1705 = vunpack.c.l.b16 %v1545
  %v1706 = vunpack.c.l.b16 %v1546
  %v1707 = vunpack.c.l.b16 %v1547
  %v1708 = vunpack.c.l.b16 %v1548
  %v1709 = vunpack.c.l.b16 %v1549
  %v1710 = vunpack.c.l.b16 %v1550
  %v1711 = vunpack.c.l.b16 %v1551
  %v1712 = vunpack.c.l.b16 %v1552
  %v1713 = vunpack.c.l.b16 %v1553
  %v1714 = vunpack.c.l.b16 %v1554
  %v1715 = vunpack.c.l.b16 %v1555
  %v1716 = vunpack.c.l.b16 %v1556
  %v1717 = vunpack.c.l.b16 %v1557
  %v1718 = vunpack.c.l.b16 %v1558
  %v1719 = vunpack.c.l.b16 %v1559
  %v1720 = vunpack.c.l.b16 %v1560
  %v1721 = vunpack.c.l.b16 %v1561
  %v1722 = vunpack.c.l.b16 %v1562
  %v1723 = vunpack.c.l.b16 %v1563
  %v1724 = vunpack.c.l.b16 %v1564
  %v1725 = vunpack.c.l.b16 %v1565
  %v1726 = vunpack.c.l.b16 %v1566
  %v1727 = vunpack.c.l.b16 %v1567
  %v1728 = vunpack.c.l.b16 %v1568
  %v1729 = vunpack.c.l.b16 %v1569
  %v1730 = vunpack.c.l.b16 %v1570
  %v1731 = vunpack.c.l.b16 %v1571
  %v1732 = vunpack.c.l.b16 %v1572
  %v1733 = vunpack.c.l.b16 %v1573
  %v1734 = vunpack.c.l.b16 %v1574
  %v1735 = vunpack.c.l.b16 %v1575
  %v1736 = vunpack.c.l.b16 %v1576
  %v1737 = vunpack.c.l.b16 %v1577
  %v1738 = vunpack.c.l.b16 %v1578
  %v1739 = vunpack.c.l.b16 %v1579
  %v1740 = vunpack.c.l.b16 %v1580
  %v1741 = vunpack.c.l.b16 %v1581
  %v1742 = vunpack.c.l.b16 %v1582
  %v1743 = vunpack.c.l.b16 %v1583
  %v1744 = vpack.c.b16 %v1665, %v1664
  %v1745 = vpack.c.b16 %v1667, %v1666
  %v1746 = vpack.c.b16 %v1669, %v1668
  %v1747 = vpack.c.b16 %v1671, %v1670
  %v1748 = vpack.c.b16 %v1673, %v1672
  %v1749 = vpack.c.b16 %v1675, %v1674
  %v1750 = vpack.c.b16 %v1677, %v1676
  %v1751 = vpack.c.b16 %v1679, %v1678
  %v1752 = vpack.c.b16 %v1681, %v1680
  %v1753 = vpack.c.b16 %v1683, %v1682
  %v1754 = vpack.c.b16 %v1685, %v1684
  %v1755 = vpack.c.b16 %v1687, %v1686
  %v1756 = vpack.c.b16 %v1689, %v1688
  %v1757 = vpack.c.b16 %v1691, %v1690
  %v1758 = vpack.c.b16 %v1693, %v1692
  %v1759 = vpack.c.b16 %v1695, %v1694
  %v1760 = vpack.c.b16 %v1697, %v1696
  %v1761 = vpack.c.b16 %v1699, %v1698
  %v1762 = vpack.c.b16 %v1701, %v1700
  %v1763 = vpack.c.b16 %v1703, %v1702
  %v1764 = vpack.c.b16 %v1705, %v1704
  %v1765 = vpack.c.b16 %v1707, %v1706
  %v1766 = vpack.c.b16 %v1709, %v1708
  %v1767 = vpack.c.b16 %v1711, %v1710
  %v1768 = vpack.c.b16 %v1713, %v1712
  %v1769 = vpack.c.b16 %v1715, %v1714
  %v1770 = vpack.c.b16 %v1717, %v1716
  %v1771 = vpack.c.b16 %v1719, %v1718
  %v1772 = vpack.c.b16 %v1721, %v1720
  %v1773 = vpack.c.b16 %v1723, %v1722
  %v1774 = vpack.c.b16 %v1725, %v1724
  %v1775 = vpack.c.b16 %v1727, %v1726
  %v1776 = vpack.c.b16 %v1729, %v1728
  %v1777 = vpack.c.b16 %v1731, %v1730
  %v1778 = vpack.c.b16 %v1733, %v1732
  %v1779 = vpack.c.b16 %v1735, %v1734
  %v1780 = vpack.c.b16 %v1737, %v1736
  %v1781 = vpack.c.b16 %v1739, %v1738
  %v1782 = vpack.c.b16 %v1741, %v1740
  %v1783 = vpack.c.b16 %v1743, %v1742
  %1824 = vmatprep.subr.bf16.mxu0 0
  %1825 = vmatpush1.bf16.msra.mxu0 %v1751
  %1826 = vmatprep.subr.bf16.mxu0 0
  %1827 = vmatpush1.bf16.msra.mxu0 %v1750
  %1828 = vmatprep.subr.bf16.mxu0 0
  %1829 = vmatpush1.bf16.msra.mxu0 %v1749
  %1830 = vmatprep.subr.bf16.mxu0 0
  %1831 = vmatpush1.bf16.msra.mxu0 %v1748
  %1832 = vmatprep.subr.bf16.mxu0 0
  %1833 = vmatpush1.bf16.msra.mxu0 %v1747
  %1834 = vmatprep.subr.bf16.mxu0 0
  %1835 = vmatpush1.bf16.msra.mxu0 %v1746
  %1836 = vmatprep.subr.bf16.mxu0 0
  %1837 = vmatpush1.bf16.msra.mxu0 %v1745
  %1838 = vmatprep.subr.bf16.mxu0 0
  %1839 = vmatpush1.bf16.msra.mxu0 %v1744
  %1840 = vmatprep.subr.bf16.mxu0 0
  %1841 = vmatpush2.bf16.msra.mxu0 %v1759
  %1842 = vmatprep.subr.bf16.mxu0 0
  %1843 = vmatpush2.bf16.msra.mxu0 %v1758
  %1844 = vmatprep.subr.bf16.mxu0 0
  %1845 = vmatpush2.bf16.msra.mxu0 %v1757
  %1846 = vmatprep.subr.bf16.mxu0 0
  %1847 = vmatpush2.bf16.msra.mxu0 %v1756
  %1848 = vmatprep.subr.bf16.mxu0 0
  %1849 = vmatpush2.bf16.msra.mxu0 %v1755
  %1850 = vmatprep.subr.bf16.mxu0 0
  %1851 = vmatpush2.bf16.msra.mxu0 %v1754
  %1852 = vmatprep.subr.bf16.mxu0 0
  %1853 = vmatpush2.bf16.msra.mxu0 %v1753
  %1854 = vmatprep.subr.bf16.mxu0 0
  %1855 = vmatpush2.bf16.msra.mxu0 %v1752
  %1856 = vmatprep.mubr.bf16.mxu0 %v1002
  %1857 = vmatmul.mubr.bf16.gmra.mxu0 %v1001
  %v1858 = vpop.f32.mrf.mxu0
  %v1859 = vadd.f32 0.0, %v1858
  %v1860 = vpop.f32.mrf.mxu0
  %v1861 = vpop.f32.mrf.mxu0
  %v1862 = vadd.f32 0.0, %v1861
  %v1863 = vpop.f32.mrf.mxu0
  %1864 = vmatprep.mubr.bf16.mxu0 %v1006
  %1865 = vmatmul.mubr.bf16.gmra.mxu0 %v1005
  %v1866 = vpop.f32.mrf.mxu0
  %v1867 = vadd.f32 0.0, %v1866
  %v1868 = vpop.f32.mrf.mxu0
  %v1869 = vpop.f32.mrf.mxu0
  %v1870 = vadd.f32 0.0, %v1869
  %v1871 = vpop.f32.mrf.mxu0
  %1872 = vmatprep.mubr.bf16.mxu0 %v1011
  %1873 = vmatmul.mubr.bf16.gmra.mxu0 %v1010
  %v1874 = vpop.f32.mrf.mxu0
  %v1875 = vadd.f32 0.0, %v1874
  %v1876 = vpop.f32.mrf.mxu0
  %v1877 = vpop.f32.mrf.mxu0
  %v1878 = vpop.f32.mrf.mxu0
  %1879 = vdwg.mxu0
  %1880 = vmatprep.subr.bf16.mxu0 0
  %1881 = vmatpush1.bf16.msra.mxu0 %v1767
  %1882 = vmatprep.subr.bf16.mxu0 0
  %1883 = vmatpush1.bf16.msra.mxu0 %v1766
  %1884 = vmatprep.subr.bf16.mxu0 0
  %1885 = vmatpush1.bf16.msra.mxu0 %v1765
  %1886 = vmatprep.subr.bf16.mxu0 0
  %1887 = vmatpush1.bf16.msra.mxu0 %v1764
  %1888 = vmatprep.subr.bf16.mxu0 0
  %1889 = vmatpush1.bf16.msra.mxu0 %v1763
  %1890 = vmatprep.subr.bf16.mxu0 0
  %1891 = vmatpush1.bf16.msra.mxu0 %v1762
  %1892 = vmatprep.subr.bf16.mxu0 0
  %1893 = vmatpush1.bf16.msra.mxu0 %v1761
  %1894 = vmatprep.subr.bf16.mxu0 0
  %1895 = vmatpush1.bf16.msra.mxu0 %v1760
  %1896 = vmatprep.subr.bf16.mxu0 0
  %1897 = vmatpush2.bf16.msra.mxu0 %v1775
  %1898 = vmatprep.subr.bf16.mxu0 0
  %1899 = vmatpush2.bf16.msra.mxu0 %v1774
  %1900 = vmatprep.subr.bf16.mxu0 0
  %1901 = vmatpush2.bf16.msra.mxu0 %v1773
  %1902 = vmatprep.subr.bf16.mxu0 0
  %1903 = vmatpush2.bf16.msra.mxu0 %v1772
  %1904 = vmatprep.subr.bf16.mxu0 0
  %1905 = vmatpush2.bf16.msra.mxu0 %v1771
  %1906 = vmatprep.subr.bf16.mxu0 0
  %1907 = vmatpush2.bf16.msra.mxu0 %v1770
  %1908 = vmatprep.subr.bf16.mxu0 0
  %1909 = vmatpush2.bf16.msra.mxu0 %v1769
  %1910 = vmatprep.subr.bf16.mxu0 0
  %1911 = vmatpush2.bf16.msra.mxu0 %v1768
  %1912 = vmatprep.mubr.bf16.mxu0 %v1004
  %1913 = vmatmul.mubr.bf16.gmra.mxu0 %v1003
  %v1914 = vpop.f32.mrf.mxu0
  %v1915 = vadd.f32 %v1859, %v1914
  %v1916 = vpop.f32.mrf.mxu0
  %v1917 = vpop.f32.mrf.mxu0
  %v1918 = vadd.f32 %v1862, %v1917
  %v1919 = vpop.f32.mrf.mxu0
  %1920 = vmatprep.mubr.bf16.mxu0 %v1008
  %1921 = vmatmul.mubr.bf16.gmra.mxu0 %v1007
  %v1922 = vpop.f32.mrf.mxu0
  %v1923 = vadd.f32 %v1867, %v1922
  %v1924 = vpop.f32.mrf.mxu0
  %v1925 = vpop.f32.mrf.mxu0
  %v1926 = vadd.f32 %v1870, %v1925
  %v1927 = vpop.f32.mrf.mxu0
  %1928 = vmatprep.mubr.bf16.mxu0 %v1013
  %1929 = vmatmul.mubr.bf16.gmra.mxu0 %v1012
  %v1930 = vpop.f32.mrf.mxu0
  %v1931 = vadd.f32 %v1875, %v1930
  %v1932 = vpop.f32.mrf.mxu0
  %v1933 = vpop.f32.mrf.mxu0
  %v1934 = vpop.f32.mrf.mxu0
  %1935 = vdwg.mxu0
  %1936 = vmatprep.subr.bf16.mxu0 0
  %1937 = vmatpush1.bf16.msra.mxu0 %v1783
  %1938 = vmatprep.subr.bf16.mxu0 0
  %1939 = vmatpush1.bf16.msra.mxu0 %v1782
  %1940 = vmatprep.subr.bf16.mxu0 0
  %1941 = vmatpush1.bf16.msra.mxu0 %v1781
  %1942 = vmatprep.subr.bf16.mxu0 0
  %1943 = vmatpush1.bf16.msra.mxu0 %v1780
  %1944 = vmatprep.subr.bf16.mxu0 0
  %1945 = vmatpush1.bf16.msra.mxu0 %v1779
  %1946 = vmatprep.subr.bf16.mxu0 0
  %1947 = vmatpush1.bf16.msra.mxu0 %v1778
  %1948 = vmatprep.subr.bf16.mxu0 0
  %1949 = vmatpush1.bf16.msra.mxu0 %v1777
  %1950 = vmatprep.subr.bf16.mxu0 0
  %1951 = vmatpush1.bf16.msra.mxu0 %v1776
  %1952 = vmatprep.subr.bf16.mxu0 0
  %1953 = vmatpush2.bf16.msra.mxu0 0
  %1954 = vmatprep.subr.bf16.mxu0 0
  %1955 = vmatpush2.bf16.msra.mxu0 0
  %1956 = vmatprep.subr.bf16.mxu0 0
  %1957 = vmatpush2.bf16.msra.mxu0 0
  %1958 = vmatprep.subr.bf16.mxu0 0
  %1959 = vmatpush2.bf16.msra.mxu0 0
  %1960 = vmatprep.subr.bf16.mxu0 0
  %1961 = vmatpush2.bf16.msra.mxu0 0
  %1962 = vmatprep.subr.bf16.mxu0 0
  %1963 = vmatpush2.bf16.msra.mxu0 0
  %1964 = vmatprep.subr.bf16.mxu0 0
  %1965 = vmatpush2.bf16.msra.mxu0 0
  %1966 = vmatprep.subr.bf16.mxu0 0
  %1967 = vmatpush2.bf16.msra.mxu0 0
  %1968 = vmatprep.mubr.bf16.mxu0 0
  %1969 = vmatmul.mubr.bf16.gmra.mxu0 %v1005
  %v1970 = vpop.f32.mrf.mxu0
  %v1971 = vadd.f32 %v1915, %v1970
  %v1972 = vpop.f32.mrf.mxu0
  %v1973 = vpop.f32.mrf.mxu0
  %v1974 = vadd.f32 %v1918, %v1973
  %v1975 = vpop.f32.mrf.mxu0
  %1976 = vmatprep.mubr.bf16.mxu0 0
  %1977 = vmatmul.mubr.bf16.gmra.mxu0 %v1009
  %v1978 = vpop.f32.mrf.mxu0
  %v1979 = vadd.f32 %v1923, %v1978
  %v1980 = vpop.f32.mrf.mxu0
  %v1981 = vpop.f32.mrf.mxu0
  %v1982 = vadd.f32 %v1926, %v1981
  %v1983 = vpop.f32.mrf.mxu0
  %1984 = vmatprep.mubr.bf16.mxu0 0
  %1985 = vmatmul.mubr.bf16.gmra.mxu0 %v1014
  %v1986 = vpop.f32.mrf.mxu0
  %v1987 = vadd.f32 %v1931, %v1986
  %v1988 = vpop.f32.mrf.mxu0
  %v1989 = vpop.f32.mrf.mxu0
  %v1990 = vpop.f32.mrf.mxu0
  %1991 = vdwg.mxu0
  %v1992 = vpack.c.bf16 %v999, %v998
  %v1993 = vpack.c.bf16 %v1000, %v1000
  %1994 = vmatprep.subr.bf16.mxu0 0
  %1995 = vmatpush1.bf16.msra.mxu0 %v1262
  %1996 = vmatprep.subr.bf16.mxu0 0
  %1997 = vmatpush1.bf16.msra.mxu0 %v1261
  %1998 = vmatprep.subr.bf16.mxu0 0
  %1999 = vmatpush1.bf16.msra.mxu0 %v1260
  %2000 = vmatprep.subr.bf16.mxu0 0
  %2001 = vmatpush1.bf16.msra.mxu0 %v1259
  %2002 = vmatprep.subr.bf16.mxu0 0
  %2003 = vmatpush1.bf16.msra.mxu0 %v1258
  %2004 = vmatprep.subr.bf16.mxu0 0
  %2005 = vmatpush1.bf16.msra.mxu0 %v1257
  %2006 = vmatprep.subr.bf16.mxu0 0
  %2007 = vmatpush1.bf16.msra.mxu0 %v1256
  %2008 = vmatprep.subr.bf16.mxu0 0
  %2009 = vmatpush1.bf16.msra.mxu0 %v1255
  %2010 = vmatprep.subr.bf16.mxu0 0
  %2011 = vmatpush2.bf16.msra.mxu0 %v1270
  %2012 = vmatprep.subr.bf16.mxu0 0
  %2013 = vmatpush2.bf16.msra.mxu0 %v1269
  %2014 = vmatprep.subr.bf16.mxu0 0
  %2015 = vmatpush2.bf16.msra.mxu0 %v1268
  %2016 = vmatprep.subr.bf16.mxu0 0
  %2017 = vmatpush2.bf16.msra.mxu0 %v1267
  %2018 = vmatprep.subr.bf16.mxu0 0
  %2019 = vmatpush2.bf16.msra.mxu0 %v1266
  %2020 = vmatprep.subr.bf16.mxu0 0
  %2021 = vmatpush2.bf16.msra.mxu0 %v1265
  %2022 = vmatprep.subr.bf16.mxu0 0
  %2023 = vmatpush2.bf16.msra.mxu0 %v1264
  %2024 = vmatprep.subr.bf16.mxu0 0
  %2025 = vmatpush2.bf16.msra.mxu0 %v1263
  %2026 = vmatprep.mubr.bf16.mxu0 %v1003
  %2027 = vmatmul.mubr.bf16.gmra.mxu0 %v1002
  %v2028 = vpop.f32.mrf.mxu0
  %v2029 = vadd.f32 0.0, %v2028
  %v2030 = vpop.f32.mrf.mxu0
  %v2031 = vpop.f32.mrf.mxu0
  %v2032 = vadd.f32 0.0, %v2031
  %v2033 = vpop.f32.mrf.mxu0
  %2034 = vmatprep.mubr.bf16.mxu0 %v1007
  %2035 = vmatmul.mubr.bf16.gmra.mxu0 %v1006
  %v2036 = vpop.f32.mrf.mxu0
  %v2037 = vadd.f32 0.0, %v2036
  %v2038 = vpop.f32.mrf.mxu0
  %v2039 = vpop.f32.mrf.mxu0
  %v2040 = vadd.f32 0.0, %v2039
  %v2041 = vpop.f32.mrf.mxu0
  %2042 = vmatprep.mubr.bf16.mxu0 %v1012
  %2043 = vmatmul.mubr.bf16.gmra.mxu0 %v1011
  %v2044 = vpop.f32.mrf.mxu0
  %v2045 = vadd.f32 0.0, %v2044
  %v2046 = vpop.f32.mrf.mxu0
  %v2047 = vpop.f32.mrf.mxu0
  %v2048 = vpop.f32.mrf.mxu0
  %2049 = vdwg.mxu0
  %2050 = vmatprep.subr.bf16.mxu0 0
  %2051 = vmatpush1.bf16.msra.mxu0 %v1278
  %2052 = vmatprep.subr.bf16.mxu0 0
  %2053 = vmatpush1.bf16.msra.mxu0 %v1277
  %2054 = vmatprep.subr.bf16.mxu0 0
  %2055 = vmatpush1.bf16.msra.mxu0 %v1276
  %2056 = vmatprep.subr.bf16.mxu0 0
  %2057 = vmatpush1.bf16.msra.mxu0 %v1275
  %2058 = vmatprep.subr.bf16.mxu0 0
  %2059 = vmatpush1.bf16.msra.mxu0 %v1274
  %2060 = vmatprep.subr.bf16.mxu0 0
  %2061 = vmatpush1.bf16.msra.mxu0 %v1273
  %2062 = vmatprep.subr.bf16.mxu0 0
  %2063 = vmatpush1.bf16.msra.mxu0 %v1272
  %2064 = vmatprep.subr.bf16.mxu0 0
  %2065 = vmatpush1.bf16.msra.mxu0 %v1271
  %2066 = vmatprep.subr.bf16.mxu0 0
  %2067 = vmatpush2.bf16.msra.mxu0 %v1286
  %2068 = vmatprep.subr.bf16.mxu0 0
  %2069 = vmatpush2.bf16.msra.mxu0 %v1285
  %2070 = vmatprep.subr.bf16.mxu0 0
  %2071 = vmatpush2.bf16.msra.mxu0 %v1284
  %2072 = vmatprep.subr.bf16.mxu0 0
  %2073 = vmatpush2.bf16.msra.mxu0 %v1283
  %2074 = vmatprep.subr.bf16.mxu0 0
  %2075 = vmatpush2.bf16.msra.mxu0 %v1282
  %2076 = vmatprep.subr.bf16.mxu0 0
  %2077 = vmatpush2.bf16.msra.mxu0 %v1281
  %2078 = vmatprep.subr.bf16.mxu0 0
  %2079 = vmatpush2.bf16.msra.mxu0 %v1280
  %2080 = vmatprep.subr.bf16.mxu0 0
  %2081 = vmatpush2.bf16.msra.mxu0 %v1279
  %2082 = vmatprep.mubr.bf16.mxu0 %v1005
  %2083 = vmatmul.mubr.bf16.gmra.mxu0 %v1004
  %v2084 = vpop.f32.mrf.mxu0
  %v2085 = vadd.f32 %v2029, %v2084
  %v2086 = vpop.f32.mrf.mxu0
  %v2087 = vpop.f32.mrf.mxu0
  %v2088 = vadd.f32 %v2032, %v2087
  %v2089 = vpop.f32.mrf.mxu0
  %2090 = vmatprep.mubr.bf16.mxu0 %v1009
  %2091 = vmatmul.mubr.bf16.gmra.mxu0 %v1008
  %v2092 = vpop.f32.mrf.mxu0
  %v2093 = vadd.f32 %v2037, %v2092
  %v2094 = vpop.f32.mrf.mxu0
  %v2095 = vpop.f32.mrf.mxu0
  %v2096 = vadd.f32 %v2040, %v2095
  %v2097 = vpop.f32.mrf.mxu0
  %2098 = vmatprep.mubr.bf16.mxu0 %v1014
  %2099 = vmatmul.mubr.bf16.gmra.mxu0 %v1013
  %v2100 = vpop.f32.mrf.mxu0
  %v2101 = vadd.f32 %v2045, %v2100
  %v2102 = vpop.f32.mrf.mxu0
  %v2103 = vpop.f32.mrf.mxu0
  %v2104 = vpop.f32.mrf.mxu0
  %2105 = vdwg.mxu0
  %2106 = vmatprep.subr.bf16.mxu0 0
  %2107 = vmatpush1.bf16.msra.mxu0 %v1294
  %2108 = vmatprep.subr.bf16.mxu0 0
  %2109 = vmatpush1.bf16.msra.mxu0 %v1293
  %2110 = vmatprep.subr.bf16.mxu0 0
  %2111 = vmatpush1.bf16.msra.mxu0 %v1292
  %2112 = vmatprep.subr.bf16.mxu0 0
  %2113 = vmatpush1.bf16.msra.mxu0 %v1291
  %2114 = vmatprep.subr.bf16.mxu0 0
  %2115 = vmatpush1.bf16.msra.mxu0 %v1290
  %2116 = vmatprep.subr.bf16.mxu0 0
  %2117 = vmatpush1.bf16.msra.mxu0 %v1289
  %2118 = vmatprep.subr.bf16.mxu0 0
  %2119 = vmatpush1.bf16.msra.mxu0 %v1288
  %2120 = vmatprep.subr.bf16.mxu0 0
  %2121 = vmatpush1.bf16.msra.mxu0 %v1287
  %2122 = vmatprep.subr.bf16.mxu0 0
  %2123 = vmatpush2.bf16.msra.mxu0 0
  %2124 = vmatprep.subr.bf16.mxu0 0
  %2125 = vmatpush2.bf16.msra.mxu0 0
  %2126 = vmatprep.subr.bf16.mxu0 0
  %2127 = vmatpush2.bf16.msra.mxu0 0
  %2128 = vmatprep.subr.bf16.mxu0 0
  %2129 = vmatpush2.bf16.msra.mxu0 0
  %2130 = vmatprep.subr.bf16.mxu0 0
  %2131 = vmatpush2.bf16.msra.mxu0 0
  %2132 = vmatprep.subr.bf16.mxu0 0
  %2133 = vmatpush2.bf16.msra.mxu0 0
  %2134 = vmatprep.subr.bf16.mxu0 0
  %2135 = vmatpush2.bf16.msra.mxu0 0
  %2136 = vmatprep.subr.bf16.mxu0 0
  %2137 = vmatpush2.bf16.msra.mxu0 0
  %2138 = vmatprep.mubr.bf16.mxu0 0
  %2139 = vmatmul.mubr.bf16.gmra.mxu0 %v1006
  %v2140 = vpop.f32.mrf.mxu0
  %v2141 = vadd.f32 %v2085, %v2140
  %v2142 = vpop.f32.mrf.mxu0
  %v2143 = vpop.f32.mrf.mxu0
  %v2144 = vadd.f32 %v2088, %v2143
  %v2145 = vpop.f32.mrf.mxu0
  %2146 = vmatprep.mubr.bf16.mxu0 0
  %2147 = vmatmul.mubr.bf16.gmra.mxu0 %v1992
  %v2148 = vpop.f32.mrf.mxu0
  %v2149 = vadd.f32 %v2093, %v2148
  %v2150 = vpop.f32.mrf.mxu0
  %v2151 = vpop.f32.mrf.mxu0
  %v2152 = vadd.f32 %v2096, %v2151
  %v2153 = vpop.f32.mrf.mxu0
  %2154 = vmatprep.mubr.bf16.mxu0 0
  %2155 = vmatmul.mubr.bf16.gmra.mxu0 %v1993
  %v2156 = vpop.f32.mrf.mxu0
  %v2157 = vadd.f32 %v2101, %v2156
  %v2158 = vpop.f32.mrf.mxu0
  %v2159 = vpop.f32.mrf.mxu0
  %v2160 = vpop.f32.mrf.mxu0
  %2161 = vdwg.mxu0
  %2162 = vmatprep.subr.bf16.mxu0 0
  %2163 = vmatpush1.bf16.msra.mxu0 %v1751
  %2164 = vmatprep.subr.bf16.mxu0 0
  %2165 = vmatpush1.bf16.msra.mxu0 %v1750
  %2166 = vmatprep.subr.bf16.mxu0 0
  %2167 = vmatpush1.bf16.msra.mxu0 %v1749
  %2168 = vmatprep.subr.bf16.mxu0 0
  %2169 = vmatpush1.bf16.msra.mxu0 %v1748
  %2170 = vmatprep.subr.bf16.mxu0 0
  %2171 = vmatpush1.bf16.msra.mxu0 %v1747
  %2172 = vmatprep.subr.bf16.mxu0 0
  %2173 = vmatpush1.bf16.msra.mxu0 %v1746
  %2174 = vmatprep.subr.bf16.mxu0 0
  %2175 = vmatpush1.bf16.msra.mxu0 %v1745
  %2176 = vmatprep.subr.bf16.mxu0 0
  %2177 = vmatpush1.bf16.msra.mxu0 %v1744
  %2178 = vmatprep.subr.bf16.mxu0 0
  %2179 = vmatpush2.bf16.msra.mxu0 %v1759
  %2180 = vmatprep.subr.bf16.mxu0 0
  %2181 = vmatpush2.bf16.msra.mxu0 %v1758
  %2182 = vmatprep.subr.bf16.mxu0 0
  %2183 = vmatpush2.bf16.msra.mxu0 %v1757
  %2184 = vmatprep.subr.bf16.mxu0 0
  %2185 = vmatpush2.bf16.msra.mxu0 %v1756
  %2186 = vmatprep.subr.bf16.mxu0 0
  %2187 = vmatpush2.bf16.msra.mxu0 %v1755
  %2188 = vmatprep.subr.bf16.mxu0 0
  %2189 = vmatpush2.bf16.msra.mxu0 %v1754
  %2190 = vmatprep.subr.bf16.mxu0 0
  %2191 = vmatpush2.bf16.msra.mxu0 %v1753
  %2192 = vmatprep.subr.bf16.mxu0 0
  %2193 = vmatpush2.bf16.msra.mxu0 %v1752
  %2194 = vmatprep.mubr.bf16.mxu0 %v1003
  %2195 = vmatmul.mubr.bf16.gmra.mxu0 %v1002
  %v2196 = vpop.f32.mrf.mxu0
  %v2197 = vadd.f32 0.0, %v2196
  %v2198 = vpop.f32.mrf.mxu0
  %v2199 = vpop.f32.mrf.mxu0
  %v2200 = vadd.f32 0.0, %v2199
  %v2201 = vpop.f32.mrf.mxu0
  %2202 = vmatprep.mubr.bf16.mxu0 %v1007
  %2203 = vmatmul.mubr.bf16.gmra.mxu0 %v1006
  %v2204 = vpop.f32.mrf.mxu0
  %v2205 = vadd.f32 0.0, %v2204
  %v2206 = vpop.f32.mrf.mxu0
  %v2207 = vpop.f32.mrf.mxu0
  %v2208 = vadd.f32 0.0, %v2207
  %v2209 = vpop.f32.mrf.mxu0
  %2210 = vmatprep.mubr.bf16.mxu0 %v1012
  %2211 = vmatmul.mubr.bf16.gmra.mxu0 %v1011
  %v2212 = vpop.f32.mrf.mxu0
  %v2213 = vadd.f32 0.0, %v2212
  %v2214 = vpop.f32.mrf.mxu0
  %v2215 = vpop.f32.mrf.mxu0
  %v2216 = vpop.f32.mrf.mxu0
  %2217 = vdwg.mxu0
  %2218 = vmatprep.subr.bf16.mxu0 0
  %2219 = vmatpush1.bf16.msra.mxu0 %v1767
  %2220 = vmatprep.subr.bf16.mxu0 0
  %2221 = vmatpush1.bf16.msra.mxu0 %v1766
  %2222 = vmatprep.subr.bf16.mxu0 0
  %2223 = vmatpush1.bf16.msra.mxu0 %v1765
  %2224 = vmatprep.subr.bf16.mxu0 0
  %2225 = vmatpush1.bf16.msra.mxu0 %v1764
  %2226 = vmatprep.subr.bf16.mxu0 0
  %2227 = vmatpush1.bf16.msra.mxu0 %v1763
  %2228 = vmatprep.subr.bf16.mxu0 0
  %2229 = vmatpush1.bf16.msra.mxu0 %v1762
  %2230 = vmatprep.subr.bf16.mxu0 0
  %2231 = vmatpush1.bf16.msra.mxu0 %v1761
  %2232 = vmatprep.subr.bf16.mxu0 0
  %2233 = vmatpush1.bf16.msra.mxu0 %v1760
  %2234 = vmatprep.subr.bf16.mxu0 0
  %2235 = vmatpush2.bf16.msra.mxu0 %v1775
  %2236 = vmatprep.subr.bf16.mxu0 0
  %2237 = vmatpush2.bf16.msra.mxu0 %v1774
  %2238 = vmatprep.subr.bf16.mxu0 0
  %2239 = vmatpush2.bf16.msra.mxu0 %v1773
  %2240 = vmatprep.subr.bf16.mxu0 0
  %2241 = vmatpush2.bf16.msra.mxu0 %v1772
  %2242 = vmatprep.subr.bf16.mxu0 0
  %2243 = vmatpush2.bf16.msra.mxu0 %v1771
  %2244 = vmatprep.subr.bf16.mxu0 0
  %2245 = vmatpush2.bf16.msra.mxu0 %v1770
  %2246 = vmatprep.subr.bf16.mxu0 0
  %2247 = vmatpush2.bf16.msra.mxu0 %v1769
  %2248 = vmatprep.subr.bf16.mxu0 0
  %2249 = vmatpush2.bf16.msra.mxu0 %v1768
  %2250 = vmatprep.mubr.bf16.mxu0 %v1005
  %2251 = vmatmul.mubr.bf16.gmra.mxu0 %v1004
  %v2252 = vpop.f32.mrf.mxu0
  %v2253 = vadd.f32 %v2197, %v2252
  %v2254 = vpop.f32.mrf.mxu0
  %v2255 = vpop.f32.mrf.mxu0
  %v2256 = vadd.f32 %v2200, %v2255
  %v2257 = vpop.f32.mrf.mxu0
  %2258 = vmatprep.mubr.bf16.mxu0 %v1009
  %2259 = vmatmul.mubr.bf16.gmra.mxu0 %v1008
  %v2260 = vpop.f32.mrf.mxu0
  %v2261 = vadd.f32 %v2205, %v2260
  %v2262 = vpop.f32.mrf.mxu0
  %v2263 = vpop.f32.mrf.mxu0
  %v2264 = vadd.f32 %v2208, %v2263
  %v2265 = vpop.f32.mrf.mxu0
  %2266 = vmatprep.mubr.bf16.mxu0 %v1014
  %2267 = vmatmul.mubr.bf16.gmra.mxu0 %v1013
  %v2268 = vpop.f32.mrf.mxu0
  %v2269 = vadd.f32 %v2213, %v2268
  %v2270 = vpop.f32.mrf.mxu0
  %v2271 = vpop.f32.mrf.mxu0
  %v2272 = vpop.f32.mrf.mxu0
  %2273 = vdwg.mxu0
  %2274 = vmatprep.subr.bf16.mxu0 0
  %2275 = vmatpush1.bf16.msra.mxu0 %v1783
  %2276 = vmatprep.subr.bf16.mxu0 0
  %2277 = vmatpush1.bf16.msra.mxu0 %v1782
  %2278 = vmatprep.subr.bf16.mxu0 0
  %2279 = vmatpush1.bf16.msra.mxu0 %v1781
  %2280 = vmatprep.subr.bf16.mxu0 0
  %2281 = vmatpush1.bf16.msra.mxu0 %v1780
  %2282 = vmatprep.subr.bf16.mxu0 0
  %2283 = vmatpush1.bf16.msra.mxu0 %v1779
  %2284 = vmatprep.subr.bf16.mxu0 0
  %2285 = vmatpush1.bf16.msra.mxu0 %v1778
  %2286 = vmatprep.subr.bf16.mxu0 0
  %2287 = vmatpush1.bf16.msra.mxu0 %v1777
  %2288 = vmatprep.subr.bf16.mxu0 0
  %2289 = vmatpush1.bf16.msra.mxu0 %v1776
  %2290 = vmatprep.subr.bf16.mxu0 0
  %2291 = vmatpush2.bf16.msra.mxu0 0
  %2292 = vmatprep.subr.bf16.mxu0 0
  %2293 = vmatpush2.bf16.msra.mxu0 0
  %2294 = vmatprep.subr.bf16.mxu0 0
  %2295 = vmatpush2.bf16.msra.mxu0 0
  %2296 = vmatprep.subr.bf16.mxu0 0
  %2297 = vmatpush2.bf16.msra.mxu0 0
  %2298 = vmatprep.subr.bf16.mxu0 0
  %2299 = vmatpush2.bf16.msra.mxu0 0
  %2300 = vmatprep.subr.bf16.mxu0 0
  %2301 = vmatpush2.bf16.msra.mxu0 0
  %2302 = vmatprep.subr.bf16.mxu0 0
  %2303 = vmatpush2.bf16.msra.mxu0 0
  %2304 = vmatprep.subr.bf16.mxu0 0
  %2305 = vmatpush2.bf16.msra.mxu0 0
  %2306 = vmatprep.mubr.bf16.mxu0 0
  %2307 = vmatmul.mubr.bf16.gmra.mxu0 %v1006
  %v2308 = vpop.f32.mrf.mxu0
  %v2309 = vadd.f32 %v2253, %v2308
  %v2310 = vpop.f32.mrf.mxu0
  %v2311 = vpop.f32.mrf.mxu0
  %v2312 = vadd.f32 %v2256, %v2311
  %v2313 = vpop.f32.mrf.mxu0
  %2314 = vmatprep.mubr.bf16.mxu0 0
  %2315 = vmatmul.mubr.bf16.gmra.mxu0 %v1992
  %v2316 = vpop.f32.mrf.mxu0
  %v2317 = vadd.f32 %v2261, %v2316
  %v2318 = vpop.f32.mrf.mxu0
  %v2319 = vpop.f32.mrf.mxu0
  %v2320 = vadd.f32 %v2264, %v2319
  %v2321 = vpop.f32.mrf.mxu0
  %2322 = vmatprep.mubr.bf16.mxu0 0
  %2323 = vmatmul.mubr.bf16.gmra.mxu0 %v1993
  %v2324 = vpop.f32.mrf.mxu0
  %v2325 = vadd.f32 %v2269, %v2324
  %v2326 = vpop.f32.mrf.mxu0
  %v2327 = vpop.f32.mrf.mxu0
  %v2328 = vpop.f32.mrf.mxu0
  %2329 = vdwg.mxu0
  %v2330 = vmax.f32 %v1482, %v1971
  %v2331 = vmax.f32 %v1485, %v1974
  %v2332 = vmax.f32 %v1490, %v1979
  %v2333 = vmax.f32 %v1493, %v1982
  %v2334 = vmax.f32 %v1498, %v1987
  %v2335 = vmax.f32 %v2141, %v2309
  %v2336 = vmax.f32 %v2144, %v2312
  %v2337 = vmax.f32 %v2149, %v2317
  %v2338 = vmax.f32 %v2152, %v2320
  %v2339 = vmax.f32 %v2157, %v2325
  %v2340 = vmax.f32 %v2330, %v2335
  %v2341 = vmax.f32 %v2331, %v2336
  %v2342 = vmax.f32 %v2332, %v2337
  %v2343 = vmax.f32 %v2333, %v2338
  %v2344 = vmax.f32 %v2334, %v2339
  %v2345 = vld [vmem:[%s4] sm:$0x1]
  %v2347 = vlaneseq
  %v2348 = vshrl.u32 %v2347, 7
  %v2349 = vsub.s32 0, %v2348
  %v2350 = vrot.slane %v2345, %v2349
  %v2352 = vadd.f32 %v2340, %v2350
  %v2353 = vadd.f32 %v2341, %v2350
  %v2354 = vadd.f32 %v2342, %v2350
  %v2355 = vadd.f32 %v2343, %v2350
  %v2356 = vadd.f32 %v2344, %v2350
  %v2357 = vmax.f32 %v2352, 0.0
  %v2358 = vmax.f32 %v2353, 0.0
  %v2359 = vmax.f32 %v2354, 0.0
  %v2360 = vmax.f32 %v2355, 0.0
  %v2361 = vmax.f32 %v2356, 0.0
  %v2362 = vpack.c.bf16 %v2357, %v2357
  %v2363 = vpack.c.bf16 %v2358, %v2358
  %v2364 = vpack.c.bf16 %v2359, %v2359
  %v2365 = vpack.c.bf16 %v2360, %v2360
  %v2366 = vpack.c.bf16 %v2361, %v2361
  %v2367 = vld [vmem:[%s5] sm:$0xf]
  %v2368 = vld [vmem:[%s5 + $0x4] sm:$0xf]
  %v2369 = vld [vmem:[%s5 + $0x8] sm:$0xf]
  %v2370 = vld [vmem:[%s5 + $0xc] sm:$0xf]
  %v2371 = vld [vmem:[%s5 + $0x10] sm:$0xf]
  %v2372 = vld [vmem:[%s5 + $0x14] sm:$0xf]
  %v2373 = vld [vmem:[%s5 + $0x18] sm:$0xf]
  %v2374 = vld [vmem:[%s5 + $0x1c] sm:$0xf]
  %v2375 = vld [vmem:[%s5 + $0x20] sm:$0xf]
  %v2376 = vld [vmem:[%s5 + $0x24] sm:$0xf]
  %v2377 = vld [vmem:[%s5 + $0x28] sm:$0xf]
  %v2378 = vld [vmem:[%s5 + $0x2c] sm:$0xf]
  %v2379 = vld [vmem:[%s5 + $0x30] sm:$0xf]
  %v2380 = vld [vmem:[%s5 + $0x34] sm:$0xf]
  %v2381 = vld [vmem:[%s5 + $0x38] sm:$0xf]
  %v2382 = vld [vmem:[%s5 + $0x3c] sm:$0xf]
  %v2383 = vld [vmem:[%s5 + $0x40] sm:$0xf]
  %v2384 = vld [vmem:[%s5 + $0x44] sm:$0xf]
  %v2385 = vld [vmem:[%s5 + $0x48] sm:$0xf]
  %v2386 = vld [vmem:[%s5 + $0x4c] sm:$0xf]
  %v2387 = vld [vmem:[%s5 + $0x50] sm:$0xf]
  %v2388 = vld [vmem:[%s5 + $0x54] sm:$0xf]
  %v2389 = vld [vmem:[%s5 + $0x58] sm:$0xf]
  %v2390 = vld [vmem:[%s5 + $0x5c] sm:$0xf]
  %v2391 = vld [vmem:[%s5 + $0x60] sm:$0xf]
  %v2392 = vld [vmem:[%s5 + $0x64] sm:$0xf]
  %v2393 = vld [vmem:[%s5 + $0x68] sm:$0xf]
  %v2394 = vld [vmem:[%s5 + $0x6c] sm:$0xf]
  %v2395 = vld [vmem:[%s5 + $0x70] sm:$0xf]
  %v2396 = vld [vmem:[%s5 + $0x74] sm:$0xf]
  %v2397 = vld [vmem:[%s5 + $0x78] sm:$0xf]
  %v2398 = vld [vmem:[%s5 + $0x7c] sm:$0xf]
  %v2399 = vld [vmem:[%s5 + $0x80] sm:$0xf]
  %v2400 = vld [vmem:[%s5 + $0x84] sm:$0xf]
  %v2401 = vld [vmem:[%s5 + $0x88] sm:$0xf]
  %v2402 = vld [vmem:[%s5 + $0x8c] sm:$0xf]
  %v2403 = vld [vmem:[%s5 + $0x90] sm:$0xf]
  %v2404 = vld [vmem:[%s5 + $0x94] sm:$0xf]
  %v2405 = vld [vmem:[%s5 + $0x98] sm:$0xf]
  %v2406 = vld [vmem:[%s5 + $0x9c] sm:$0xf]
  %v2407 = vld [vmem:[%s5 + $0xa0] sm:$0xf]
  %v2408 = vld [vmem:[%s5 + $0xa4] sm:$0xf]
  %v2409 = vld [vmem:[%s5 + $0xa8] sm:$0xf]
  %v2410 = vld [vmem:[%s5 + $0xac] sm:$0xf]
  %v2411 = vld [vmem:[%s5 + $0xb0] sm:$0xf]
  %v2412 = vld [vmem:[%s5 + $0xb4] sm:$0xf]
  %v2413 = vld [vmem:[%s5 + $0xb8] sm:$0xf]
  %v2414 = vld [vmem:[%s5 + $0xbc] sm:$0xf]
  %v2415 = vld [vmem:[%s5 + $0xc0] sm:$0xf]
  %v2416 = vld [vmem:[%s5 + $0xc4] sm:$0xf]
  %v2417 = vld [vmem:[%s5 + $0xc8] sm:$0xf]
  %v2418 = vld [vmem:[%s5 + $0xcc] sm:$0xf]
  %v2419 = vld [vmem:[%s5 + $0xd0] sm:$0xf]
  %v2420 = vld [vmem:[%s5 + $0xd4] sm:$0xf]
  %v2421 = vld [vmem:[%s5 + $0xd8] sm:$0xf]
  %v2422 = vld [vmem:[%s5 + $0xdc] sm:$0xf]
  %v2423 = vld [vmem:[%s5 + $0xe0] sm:$0xf]
  %v2424 = vld [vmem:[%s5 + $0xe4] sm:$0xf]
  %v2425 = vld [vmem:[%s5 + $0xe8] sm:$0xf]
  %v2426 = vld [vmem:[%s5 + $0xec] sm:$0xf]
  %v2427 = vld [vmem:[%s5 + $0xf0] sm:$0xf]
  %v2428 = vld [vmem:[%s5 + $0xf4] sm:$0xf]
  %v2429 = vld [vmem:[%s5 + $0xf8] sm:$0xf]
  %v2430 = vld [vmem:[%s5 + $0xfc] sm:$0xf]
  %v2431 = vld [vmem:[%s5 + $0x100] sm:$0xf]
  %v2432 = vld [vmem:[%s5 + $0x104] sm:$0xf]
  %v2433 = vld [vmem:[%s5 + $0x108] sm:$0xf]
  %v2434 = vld [vmem:[%s5 + $0x10c] sm:$0xf]
  %v2435 = vld [vmem:[%s5 + $0x110] sm:$0xf]
  %v2436 = vld [vmem:[%s5 + $0x114] sm:$0xf]
  %v2437 = vld [vmem:[%s5 + $0x118] sm:$0xf]
  %v2438 = vld [vmem:[%s5 + $0x11c] sm:$0xf]
  %v2439 = vld [vmem:[%s5 + $0x120] sm:$0xf]
  %v2440 = vld [vmem:[%s5 + $0x124] sm:$0xf]
  %v2441 = vld [vmem:[%s5 + $0x128] sm:$0xf]
  %v2442 = vld [vmem:[%s5 + $0x12c] sm:$0xf]
  %v2443 = vld [vmem:[%s5 + $0x130] sm:$0xf]
  %v2444 = vld [vmem:[%s5 + $0x134] sm:$0xf]
  %v2445 = vld [vmem:[%s5 + $0x138] sm:$0xf]
  %v2446 = vld [vmem:[%s5 + $0x13c] sm:$0xf]
  %v2447 = vld [vmem:[%s6] sm:$0x1]
  %v2449 = vlaneseq
  %v2450 = vshrl.u32 %v2449, 7
  %v2451 = vsub.s32 0, %v2450
  %v2452 = vrot.slane %v2447, %v2451
  %v2534 = vunpack.c.l.b16 %v2367
  %v2535 = vunpack.c.l.b16 %v2368
  %v2536 = vunpack.c.l.b16 %v2369
  %v2537 = vunpack.c.l.b16 %v2370
  %v2538 = vunpack.c.l.b16 %v2371
  %v2539 = vunpack.c.l.b16 %v2372
  %v2540 = vunpack.c.l.b16 %v2373
  %v2541 = vunpack.c.l.b16 %v2374
  %v2542 = vunpack.c.l.b16 %v2375
  %v2543 = vunpack.c.l.b16 %v2376
  %v2544 = vunpack.c.l.b16 %v2377
  %v2545 = vunpack.c.l.b16 %v2378
  %v2546 = vunpack.c.l.b16 %v2379
  %v2547 = vunpack.c.l.b16 %v2380
  %v2548 = vunpack.c.l.b16 %v2381
  %v2549 = vunpack.c.l.b16 %v2382
  %v2550 = vunpack.c.l.b16 %v2383
  %v2551 = vunpack.c.l.b16 %v2384
  %v2552 = vunpack.c.l.b16 %v2385
  %v2553 = vunpack.c.l.b16 %v2386
  %v2554 = vunpack.c.l.b16 %v2387
  %v2555 = vunpack.c.l.b16 %v2388
  %v2556 = vunpack.c.l.b16 %v2389
  %v2557 = vunpack.c.l.b16 %v2390
  %v2558 = vunpack.c.l.b16 %v2391
  %v2559 = vunpack.c.l.b16 %v2392
  %v2560 = vunpack.c.l.b16 %v2393
  %v2561 = vunpack.c.l.b16 %v2394
  %v2562 = vunpack.c.l.b16 %v2395
  %v2563 = vunpack.c.l.b16 %v2396
  %v2564 = vunpack.c.l.b16 %v2397
  %v2565 = vunpack.c.l.b16 %v2398
  %v2566 = vunpack.c.l.b16 %v2399
  %v2567 = vunpack.c.l.b16 %v2400
  %v2568 = vunpack.c.l.b16 %v2401
  %v2569 = vunpack.c.l.b16 %v2402
  %v2570 = vunpack.c.l.b16 %v2403
  %v2571 = vunpack.c.l.b16 %v2404
  %v2572 = vunpack.c.l.b16 %v2405
  %v2573 = vunpack.c.l.b16 %v2406
  %v2574 = vunpack.c.l.b16 %v2407
  %v2575 = vunpack.c.l.b16 %v2408
  %v2576 = vunpack.c.l.b16 %v2409
  %v2577 = vunpack.c.l.b16 %v2410
  %v2578 = vunpack.c.l.b16 %v2411
  %v2579 = vunpack.c.l.b16 %v2412
  %v2580 = vunpack.c.l.b16 %v2413
  %v2581 = vunpack.c.l.b16 %v2414
  %v2582 = vunpack.c.l.b16 %v2415
  %v2583 = vunpack.c.l.b16 %v2416
  %v2584 = vunpack.c.l.b16 %v2417
  %v2585 = vunpack.c.l.b16 %v2418
  %v2586 = vunpack.c.l.b16 %v2419
  %v2587 = vunpack.c.l.b16 %v2420
  %v2588 = vunpack.c.l.b16 %v2421
  %v2589 = vunpack.c.l.b16 %v2422
  %v2590 = vunpack.c.l.b16 %v2423
  %v2591 = vunpack.c.l.b16 %v2424
  %v2592 = vunpack.c.l.b16 %v2425
  %v2593 = vunpack.c.l.b16 %v2426
  %v2594 = vunpack.c.l.b16 %v2427
  %v2595 = vunpack.c.l.b16 %v2428
  %v2596 = vunpack.c.l.b16 %v2429
  %v2597 = vunpack.c.l.b16 %v2430
  %v2598 = vunpack.c.l.b16 %v2431
  %v2599 = vunpack.c.l.b16 %v2432
  %v2600 = vunpack.c.l.b16 %v2433
  %v2601 = vunpack.c.l.b16 %v2434
  %v2602 = vunpack.c.l.b16 %v2435
  %v2603 = vunpack.c.l.b16 %v2436
  %v2604 = vunpack.c.l.b16 %v2437
  %v2605 = vunpack.c.l.b16 %v2438
  %v2606 = vunpack.c.l.b16 %v2439
  %v2607 = vunpack.c.l.b16 %v2440
  %v2608 = vunpack.c.l.b16 %v2441
  %v2609 = vunpack.c.l.b16 %v2442
  %v2610 = vunpack.c.l.b16 %v2443
  %v2611 = vunpack.c.l.b16 %v2444
  %v2612 = vunpack.c.l.b16 %v2445
  %v2613 = vunpack.c.l.b16 %v2446
  %v2614 = vpack.c.b16 %v2535, %v2534
  %v2615 = vpack.c.b16 %v2537, %v2536
  %v2616 = vpack.c.b16 %v2539, %v2538
  %v2617 = vpack.c.b16 %v2541, %v2540
  %v2618 = vpack.c.b16 %v2543, %v2542
  %v2619 = vpack.c.b16 %v2545, %v2544
  %v2620 = vpack.c.b16 %v2547, %v2546
  %v2621 = vpack.c.b16 %v2549, %v2548
  %v2622 = vpack.c.b16 %v2551, %v2550
  %v2623 = vpack.c.b16 %v2553, %v2552
  %v2624 = vpack.c.b16 %v2555, %v2554
  %v2625 = vpack.c.b16 %v2557, %v2556
  %v2626 = vpack.c.b16 %v2559, %v2558
  %v2627 = vpack.c.b16 %v2561, %v2560
  %v2628 = vpack.c.b16 %v2563, %v2562
  %v2629 = vpack.c.b16 %v2565, %v2564
  %v2630 = vpack.c.b16 %v2567, %v2566
  %v2631 = vpack.c.b16 %v2569, %v2568
  %v2632 = vpack.c.b16 %v2571, %v2570
  %v2633 = vpack.c.b16 %v2573, %v2572
  %v2634 = vpack.c.b16 %v2575, %v2574
  %v2635 = vpack.c.b16 %v2577, %v2576
  %v2636 = vpack.c.b16 %v2579, %v2578
  %v2637 = vpack.c.b16 %v2581, %v2580
  %v2638 = vpack.c.b16 %v2583, %v2582
  %v2639 = vpack.c.b16 %v2585, %v2584
  %v2640 = vpack.c.b16 %v2587, %v2586
  %v2641 = vpack.c.b16 %v2589, %v2588
  %v2642 = vpack.c.b16 %v2591, %v2590
  %v2643 = vpack.c.b16 %v2593, %v2592
  %v2644 = vpack.c.b16 %v2595, %v2594
  %v2645 = vpack.c.b16 %v2597, %v2596
  %v2646 = vpack.c.b16 %v2599, %v2598
  %v2647 = vpack.c.b16 %v2601, %v2600
  %v2648 = vpack.c.b16 %v2603, %v2602
  %v2649 = vpack.c.b16 %v2605, %v2604
  %v2650 = vpack.c.b16 %v2607, %v2606
  %v2651 = vpack.c.b16 %v2609, %v2608
  %v2652 = vpack.c.b16 %v2611, %v2610
  %v2653 = vpack.c.b16 %v2613, %v2612
  %2694 = vmatprep.subr.bf16.mxu0 0
  %2695 = vmatpush1.bf16.msra.mxu0 %v2621
  %2696 = vmatprep.subr.bf16.mxu0 0
  %2697 = vmatpush1.bf16.msra.mxu0 %v2620
  %2698 = vmatprep.subr.bf16.mxu0 0
  %2699 = vmatpush1.bf16.msra.mxu0 %v2619
  %2700 = vmatprep.subr.bf16.mxu0 0
  %2701 = vmatpush1.bf16.msra.mxu0 %v2618
  %2702 = vmatprep.subr.bf16.mxu0 0
  %2703 = vmatpush1.bf16.msra.mxu0 %v2617
  %2704 = vmatprep.subr.bf16.mxu0 0
  %2705 = vmatpush1.bf16.msra.mxu0 %v2616
  %2706 = vmatprep.subr.bf16.mxu0 0
  %2707 = vmatpush1.bf16.msra.mxu0 %v2615
  %2708 = vmatprep.subr.bf16.mxu0 0
  %2709 = vmatpush1.bf16.msra.mxu0 %v2614
  %2710 = vmatprep.subr.bf16.mxu0 0
  %2711 = vmatpush2.bf16.msra.mxu0 %v2629
  %2712 = vmatprep.subr.bf16.mxu0 0
  %2713 = vmatpush2.bf16.msra.mxu0 %v2628
  %2714 = vmatprep.subr.bf16.mxu0 0
  %2715 = vmatpush2.bf16.msra.mxu0 %v2627
  %2716 = vmatprep.subr.bf16.mxu0 0
  %2717 = vmatpush2.bf16.msra.mxu0 %v2626
  %2718 = vmatprep.subr.bf16.mxu0 0
  %2719 = vmatpush2.bf16.msra.mxu0 %v2625
  %2720 = vmatprep.subr.bf16.mxu0 0
  %2721 = vmatpush2.bf16.msra.mxu0 %v2624
  %2722 = vmatprep.subr.bf16.mxu0 0
  %2723 = vmatpush2.bf16.msra.mxu0 %v2623
  %2724 = vmatprep.subr.bf16.mxu0 0
  %2725 = vmatpush2.bf16.msra.mxu0 %v2622
  %2726 = vmatprep.mubr.bf16.mxu0 %v2363
  %2727 = vmatmul.mubr.bf16.gmra.mxu0 %v2362
  %v2728 = vpop.f32.mrf.mxu0
  %v2729 = vadd.f32 %v2452, %v2728
  %v2730 = vpop.f32.mrf.mxu0
  %v2731 = vpop.f32.mrf.mxu0
  %v2732 = vpop.f32.mrf.mxu0
  %2733 = vdwg.mxu0
  %2734 = vmatprep.subr.bf16.mxu0 0
  %2735 = vmatpush1.bf16.msra.mxu0 %v2637
  %2736 = vmatprep.subr.bf16.mxu0 0
  %2737 = vmatpush1.bf16.msra.mxu0 %v2636
  %2738 = vmatprep.subr.bf16.mxu0 0
  %2739 = vmatpush1.bf16.msra.mxu0 %v2635
  %2740 = vmatprep.subr.bf16.mxu0 0
  %2741 = vmatpush1.bf16.msra.mxu0 %v2634
  %2742 = vmatprep.subr.bf16.mxu0 0
  %2743 = vmatpush1.bf16.msra.mxu0 %v2633
  %2744 = vmatprep.subr.bf16.mxu0 0
  %2745 = vmatpush1.bf16.msra.mxu0 %v2632
  %2746 = vmatprep.subr.bf16.mxu0 0
  %2747 = vmatpush1.bf16.msra.mxu0 %v2631
  %2748 = vmatprep.subr.bf16.mxu0 0
  %2749 = vmatpush1.bf16.msra.mxu0 %v2630
  %2750 = vmatprep.subr.bf16.mxu0 0
  %2751 = vmatpush2.bf16.msra.mxu0 %v2645
  %2752 = vmatprep.subr.bf16.mxu0 0
  %2753 = vmatpush2.bf16.msra.mxu0 %v2644
  %2754 = vmatprep.subr.bf16.mxu0 0
  %2755 = vmatpush2.bf16.msra.mxu0 %v2643
  %2756 = vmatprep.subr.bf16.mxu0 0
  %2757 = vmatpush2.bf16.msra.mxu0 %v2642
  %2758 = vmatprep.subr.bf16.mxu0 0
  %2759 = vmatpush2.bf16.msra.mxu0 %v2641
  %2760 = vmatprep.subr.bf16.mxu0 0
  %2761 = vmatpush2.bf16.msra.mxu0 %v2640
  %2762 = vmatprep.subr.bf16.mxu0 0
  %2763 = vmatpush2.bf16.msra.mxu0 %v2639
  %2764 = vmatprep.subr.bf16.mxu0 0
  %2765 = vmatpush2.bf16.msra.mxu0 %v2638
  %2766 = vmatprep.mubr.bf16.mxu0 %v2365
  %2767 = vmatmul.mubr.bf16.gmra.mxu0 %v2364
  %v2768 = vpop.f32.mrf.mxu0
  %v2769 = vadd.f32 %v2729, %v2768
  %v2770 = vpop.f32.mrf.mxu0
  %v2771 = vpop.f32.mrf.mxu0
  %v2772 = vpop.f32.mrf.mxu0
  %2773 = vdwg.mxu0
  %2774 = vmatprep.subr.bf16.mxu0 0
  %2775 = vmatpush1.bf16.msra.mxu0 %v2653
  %2776 = vmatprep.subr.bf16.mxu0 0
  %2777 = vmatpush1.bf16.msra.mxu0 %v2652
  %2778 = vmatprep.subr.bf16.mxu0 0
  %2779 = vmatpush1.bf16.msra.mxu0 %v2651
  %2780 = vmatprep.subr.bf16.mxu0 0
  %2781 = vmatpush1.bf16.msra.mxu0 %v2650
  %2782 = vmatprep.subr.bf16.mxu0 0
  %2783 = vmatpush1.bf16.msra.mxu0 %v2649
  %2784 = vmatprep.subr.bf16.mxu0 0
  %2785 = vmatpush1.bf16.msra.mxu0 %v2648
  %2786 = vmatprep.subr.bf16.mxu0 0
  %2787 = vmatpush1.bf16.msra.mxu0 %v2647
  %2788 = vmatprep.subr.bf16.mxu0 0
  %2789 = vmatpush1.bf16.msra.mxu0 %v2646
  %2790 = vmatprep.subr.bf16.mxu0 0
  %2791 = vmatpush2.bf16.msra.mxu0 0
  %2792 = vmatprep.subr.bf16.mxu0 0
  %2793 = vmatpush2.bf16.msra.mxu0 0
  %2794 = vmatprep.subr.bf16.mxu0 0
  %2795 = vmatpush2.bf16.msra.mxu0 0
  %2796 = vmatprep.subr.bf16.mxu0 0
  %2797 = vmatpush2.bf16.msra.mxu0 0
  %2798 = vmatprep.subr.bf16.mxu0 0
  %2799 = vmatpush2.bf16.msra.mxu0 0
  %2800 = vmatprep.subr.bf16.mxu0 0
  %2801 = vmatpush2.bf16.msra.mxu0 0
  %2802 = vmatprep.subr.bf16.mxu0 0
  %2803 = vmatpush2.bf16.msra.mxu0 0
  %2804 = vmatprep.subr.bf16.mxu0 0
  %2805 = vmatpush2.bf16.msra.mxu0 0
  %2806 = vmatprep.mubr.bf16.mxu0 0
  %2807 = vmatmul.mubr.bf16.gmra.mxu0 %v2366
  %v2808 = vpop.f32.mrf.mxu0
  %v2809 = vadd.f32 %v2769, %v2808
  %v2810 = vpop.f32.mrf.mxu0
  %v2811 = vpop.f32.mrf.mxu0
  %v2812 = vpop.f32.mrf.mxu0
  %2813 = vdwg.mxu0
  %v2814 = vmax.f32 %v2809, 0.0
  %v2815 = vpack.c.bf16 %v2814, %v2814
  %v2816 = vld [vmem:[%s7] sm:$0xf]
  %v2817 = vld [vmem:[%s7 + $0x4] sm:$0xf]
  %v2818 = vld [vmem:[%s7 + $0x8] sm:$0xf]
  %v2819 = vld [vmem:[%s7 + $0xc] sm:$0xf]
  %v2820 = vld [vmem:[%s7 + $0x10] sm:$0xf]
  %v2821 = vld [vmem:[%s7 + $0x14] sm:$0xf]
  %v2822 = vld [vmem:[%s7 + $0x18] sm:$0xf]
  %v2823 = vld [vmem:[%s7 + $0x1c] sm:$0xf]
  %v2824 = vld [vmem:[%s7 + $0x20] sm:$0xf]
  %v2825 = vld [vmem:[%s7 + $0x24] sm:$0xf]
  %v2826 = vld [vmem:[%s7 + $0x28] sm:$0xf]
  %v2827 = vld [vmem:[%s7 + $0x2c] sm:$0xf]
  %v2828 = vld [vmem:[%s7 + $0x30] sm:$0xf]
  %v2829 = vld [vmem:[%s7 + $0x34] sm:$0xf]
  %v2830 = vld [vmem:[%s7 + $0x38] sm:$0xf]
  %v2831 = vld [vmem:[%s7 + $0x3c] sm:$0xf]
  %v2832 = vld [vmem:[%s8] sm:$0x1]
  %v2834 = vlaneseq
  %v2835 = vshrl.u32 %v2834, 7
  %v2836 = vsub.s32 0, %v2835
  %v2837 = vrot.slane %v2832, %v2836
  %v2855 = vunpack.c.l.b16 %v2816
  %v2856 = vunpack.c.l.b16 %v2817
  %v2857 = vunpack.c.l.b16 %v2818
  %v2858 = vunpack.c.l.b16 %v2819
  %v2859 = vunpack.c.l.b16 %v2820
  %v2860 = vunpack.c.l.b16 %v2821
  %v2861 = vunpack.c.l.b16 %v2822
  %v2862 = vunpack.c.l.b16 %v2823
  %v2863 = vunpack.c.l.b16 %v2824
  %v2864 = vunpack.c.l.b16 %v2825
  %v2865 = vunpack.c.l.b16 %v2826
  %v2866 = vunpack.c.l.b16 %v2827
  %v2867 = vunpack.c.l.b16 %v2828
  %v2868 = vunpack.c.l.b16 %v2829
  %v2869 = vunpack.c.l.b16 %v2830
  %v2870 = vunpack.c.l.b16 %v2831
  %v2871 = vpack.c.b16 %v2856, %v2855
  %v2872 = vpack.c.b16 %v2858, %v2857
  %v2873 = vpack.c.b16 %v2860, %v2859
  %v2874 = vpack.c.b16 %v2862, %v2861
  %v2875 = vpack.c.b16 %v2864, %v2863
  %v2876 = vpack.c.b16 %v2866, %v2865
  %v2877 = vpack.c.b16 %v2868, %v2867
  %v2878 = vpack.c.b16 %v2870, %v2869
  %2887 = vmatprep.subr.bf16.mxu0 0
  %2888 = vmatpush1.bf16.msra.mxu0 %v2878
  %2889 = vmatprep.subr.bf16.mxu0 0
  %2890 = vmatpush1.bf16.msra.mxu0 %v2877
  %2891 = vmatprep.subr.bf16.mxu0 0
  %2892 = vmatpush1.bf16.msra.mxu0 %v2876
  %2893 = vmatprep.subr.bf16.mxu0 0
  %2894 = vmatpush1.bf16.msra.mxu0 %v2875
  %2895 = vmatprep.subr.bf16.mxu0 0
  %2896 = vmatpush1.bf16.msra.mxu0 %v2874
  %2897 = vmatprep.subr.bf16.mxu0 0
  %2898 = vmatpush1.bf16.msra.mxu0 %v2873
  %2899 = vmatprep.subr.bf16.mxu0 0
  %2900 = vmatpush1.bf16.msra.mxu0 %v2872
  %2901 = vmatprep.subr.bf16.mxu0 0
  %2902 = vmatpush1.bf16.msra.mxu0 %v2871
  %2903 = vmatprep.subr.bf16.mxu0 0
  %2904 = vmatpush2.bf16.msra.mxu0 0
  %2905 = vmatprep.subr.bf16.mxu0 0
  %2906 = vmatpush2.bf16.msra.mxu0 0
  %2907 = vmatprep.subr.bf16.mxu0 0
  %2908 = vmatpush2.bf16.msra.mxu0 0
  %2909 = vmatprep.subr.bf16.mxu0 0
  %2910 = vmatpush2.bf16.msra.mxu0 0
  %2911 = vmatprep.subr.bf16.mxu0 0
  %2912 = vmatpush2.bf16.msra.mxu0 0
  %2913 = vmatprep.subr.bf16.mxu0 0
  %2914 = vmatpush2.bf16.msra.mxu0 0
  %2915 = vmatprep.subr.bf16.mxu0 0
  %2916 = vmatpush2.bf16.msra.mxu0 0
  %2917 = vmatprep.subr.bf16.mxu0 0
  %2918 = vmatpush2.bf16.msra.mxu0 0
  %2919 = vmatprep.mubr.bf16.mxu0 0
  %2920 = vmatmul.mubr.bf16.gmra.mxu0 %v2815
  %v2921 = vpop.f32.mrf.mxu0
  %v2922 = vadd.f32 %v2837, %v2921
  %v2923 = vpop.f32.mrf.mxu0
  %v2924 = vpop.f32.mrf.mxu0
  %v2925 = vpop.f32.mrf.mxu0
  %2926 = vdwg.mxu0
  %v2927 = vmax.f32 %v2922, 0.0
  %v2928 = vpack.c.bf16 %v2927, %v2927
  %v2929 = vld [vmem:[%s9] sm:$0xf]
  %v2930 = vld [vmem:[%s9 + $0x4] sm:$0xf]
  %v2931 = vld [vmem:[%s9 + $0x8] sm:$0xf]
  %v2932 = vld [vmem:[%s9 + $0xc] sm:$0xf]
  %v2933 = vld [vmem:[%s9 + $0x10] sm:$0xf]
  %v2934 = vld [vmem:[%s9 + $0x14] sm:$0xf]
  %v2935 = vld [vmem:[%s9 + $0x18] sm:$0xf]
  %v2936 = vld [vmem:[%s9 + $0x1c] sm:$0xf]
  %v2937 = vld [vmem:[%s9 + $0x20] sm:$0xf]
  %v2938 = vld [vmem:[%s9 + $0x24] sm:$0xf]
  %v2939 = vld [vmem:[%s9 + $0x28] sm:$0xf]
  %v2940 = vld [vmem:[%s9 + $0x2c] sm:$0xf]
  %v2941 = vld [vmem:[%s9 + $0x30] sm:$0xf]
  %v2942 = vld [vmem:[%s9 + $0x34] sm:$0xf]
  %v2943 = vld [vmem:[%s9 + $0x38] sm:$0xf]
  %v2944 = vld [vmem:[%s9 + $0x3c] sm:$0xf]
  %v2945 = vld [vmem:[%s10] sm:$0x1]
  %v2947 = vlaneseq
  %v2948 = vshrl.u32 %v2947, 7
  %v2949 = vsub.s32 0, %v2948
  %v2950 = vrot.slane %v2945, %v2949
  %v2968 = vunpack.c.l.b16 %v2929
  %v2969 = vunpack.c.l.b16 %v2930
  %v2970 = vunpack.c.l.b16 %v2931
  %v2971 = vunpack.c.l.b16 %v2932
  %v2972 = vunpack.c.l.b16 %v2933
  %v2973 = vunpack.c.l.b16 %v2934
  %v2974 = vunpack.c.l.b16 %v2935
  %v2975 = vunpack.c.l.b16 %v2936
  %v2976 = vunpack.c.l.b16 %v2937
  %v2977 = vunpack.c.l.b16 %v2938
  %v2978 = vunpack.c.l.b16 %v2939
  %v2979 = vunpack.c.l.b16 %v2940
  %v2980 = vunpack.c.l.b16 %v2941
  %v2981 = vunpack.c.l.b16 %v2942
  %v2982 = vunpack.c.l.b16 %v2943
  %v2983 = vunpack.c.l.b16 %v2944
  %v2984 = vpack.c.b16 %v2969, %v2968
  %v2985 = vpack.c.b16 %v2971, %v2970
  %v2986 = vpack.c.b16 %v2973, %v2972
  %v2987 = vpack.c.b16 %v2975, %v2974
  %v2988 = vpack.c.b16 %v2977, %v2976
  %v2989 = vpack.c.b16 %v2979, %v2978
  %v2990 = vpack.c.b16 %v2981, %v2980
  %v2991 = vpack.c.b16 %v2983, %v2982
  %3000 = vmatprep.subr.bf16.mxu0 0
  %3001 = vmatpush1.bf16.msra.mxu0 %v2991
  %3002 = vmatprep.subr.bf16.mxu0 0
  %3003 = vmatpush1.bf16.msra.mxu0 %v2990
  %3004 = vmatprep.subr.bf16.mxu0 0
  %3005 = vmatpush1.bf16.msra.mxu0 %v2989
  %3006 = vmatprep.subr.bf16.mxu0 0
  %3007 = vmatpush1.bf16.msra.mxu0 %v2988
  %3008 = vmatprep.subr.bf16.mxu0 0
  %3009 = vmatpush1.bf16.msra.mxu0 %v2987
  %3010 = vmatprep.subr.bf16.mxu0 0
  %3011 = vmatpush1.bf16.msra.mxu0 %v2986
  %3012 = vmatprep.subr.bf16.mxu0 0
  %3013 = vmatpush1.bf16.msra.mxu0 %v2985
  %3014 = vmatprep.subr.bf16.mxu0 0
  %3015 = vmatpush1.bf16.msra.mxu0 %v2984
  %3016 = vmatprep.subr.bf16.mxu0 0
  %3017 = vmatpush2.bf16.msra.mxu0 0
  %3018 = vmatprep.subr.bf16.mxu0 0
  %3019 = vmatpush2.bf16.msra.mxu0 0
  %3020 = vmatprep.subr.bf16.mxu0 0
  %3021 = vmatpush2.bf16.msra.mxu0 0
  %3022 = vmatprep.subr.bf16.mxu0 0
  %3023 = vmatpush2.bf16.msra.mxu0 0
  %3024 = vmatprep.subr.bf16.mxu0 0
  %3025 = vmatpush2.bf16.msra.mxu0 0
  %3026 = vmatprep.subr.bf16.mxu0 0
  %3027 = vmatpush2.bf16.msra.mxu0 0
  %3028 = vmatprep.subr.bf16.mxu0 0
  %3029 = vmatpush2.bf16.msra.mxu0 0
  %3030 = vmatprep.subr.bf16.mxu0 0
  %3031 = vmatpush2.bf16.msra.mxu0 0
  %3032 = vmatprep.mubr.bf16.mxu0 0
  %3033 = vmatmul.mubr.bf16.gmra.mxu0 %v2928
  %v3034 = vpop.f32.mrf.mxu0
  %v3035 = vadd.f32 %v2950, %v3034
  %v3036 = vpop.f32.mrf.mxu0
  %v3037 = vpop.f32.mrf.mxu0
  %v3038 = vpop.f32.mrf.mxu0
  %3039 = vdwg.mxu0
  %3040 = vst [vmem:[%s11] sm:$0xff] %v3035
  // Predicated region
  $region46: #{net_forward.1} parent=0 // pred_check
    _
  $region47: #{net_forward.1} parent=0 // pred_check_branch
    %3042 = sbr.rel (0) target = $region49
  $region48: #{net_forward.1} parent=0 // pred_region
    _
  $region49: #{net_forward.1} parent=0 // pred_fallthru
    _
  // Predicated region
  $region50: #{net_forward.1} parent=0 // pred_check
    _
  $region51: #{net_forward.1} parent=0 // pred_check_branch
    %3044 = sbr.rel (0) target = $region53
  $region52: #{net_forward.1} parent=0 // pred_region
    _
  $region53: #{net_forward.1} parent=0 // pred_fallthru
    _

</llo_original>
